<compile_context>
chip_gen: v6e
topology: v6e:2x2x1
jax: 0.10.0
libtpu: 0.0.40
codegen_flags: <defaults>
</compile_context>

<pallas_src>
import jax
import jax.numpy as jnp
from jax.experimental import pallas as pl
from jax.experimental.pallas import tpu as pltpu

HIDDEN = 4096  # fixed by the module: layer_size = [in_size, 4096, out_size]


def _mlp_kernel(x_ref, w1_ref, b1_ref, w2_ref, b2_ref, o_ref):
    # fc1 + ReLU: operands in the weight dtype (bf16 by default) on the MXU,
    # f32 accumulation; bias-add / ReLU in f32.
    x = x_ref[...].astype(w1_ref.dtype)
    h = jnp.dot(x, w1_ref[...], preferred_element_type=jnp.float32)
    h = jnp.maximum(h + b1_ref[...], 0.0)

    # fc2 + sigmoid. W2 is unpadded (HIDDEN, out_size); the resulting single
    # masked narrow store is negligible, and no dead lanes hit the EUP.
    z = jnp.dot(h.astype(w2_ref.dtype), w2_ref[...],
                preferred_element_type=jnp.float32) + b2_ref[...]
    o_ref[...] = jax.nn.sigmoid(z).astype(o_ref.dtype)


def mlp_forward(x, w1, b1, w2, b2):
    """x: (B, in) f32; w1: (in, H); b1: (1, H) f32; w2: (H, out); b2: (1, out) f32.

    Parameters must already be laid out (in, out) and cast (see prepare_params):
    there is deliberately NO per-call padding / casting / transposing here.
    """
    B, in_size = x.shape
    out_size = w2.shape[1]
    assert w1.shape == (in_size, HIDDEN)
    assert b1.shape == (1, HIDDEN)
    assert w2.shape == (HIDDEN, out_size)
    assert b2.shape == (1, out_size)

    nbytes = lambda a: a.size * a.dtype.itemsize
    cost = pl.CostEstimate(
        flops=2 * B * in_size * HIDDEN + 2 * B * HIDDEN * out_size,
        transcendentals=B * out_size,  # sigmoid exp
        bytes_accessed=(nbytes(x) + nbytes(w1) + nbytes(b1) + nbytes(w2)
                        + nbytes(b2) + B * out_size * x.dtype.itemsize),
    )

    vmem = pl.BlockSpec(memory_space=pltpu.MemorySpace.VMEM)
    return pl.pallas_call(
        _mlp_kernel,
        out_shape=jax.ShapeDtypeStruct((B, out_size), x.dtype),
        in_specs=[vmem, vmem, vmem, vmem, vmem],
        out_specs=vmem,
        cost_estimate=cost,
    )(x, w1, b1, w2, b2)


def prepare_params(w1, b1, w2, b2, weight_dtype=jnp.bfloat16):
    """One-time parameter prep — keep OUT of the per-call forward path.

    Weights -> weight_dtype (bf16 halves HBM bytes of a DMA-bound kernel;
    pass jnp.float32 for exact torch-f32 numerics).  Biases stay f32 so the
    elementwise epilogue is f32 on all chip generations.
    """
    return (w1.astype(weight_dtype), b1.astype(jnp.float32),
            w2.astype(weight_dtype), b2.astype(jnp.float32))


def init_params(key, in_size, out_size):
    """Deterministic f32 init mimicking torch.nn.Linear (uniform(-1/sqrt(fan_in), ...)),
    already laid out as (in_features, out_features)."""
    k1, k2, k3, k4 = jax.random.split(key, 4)
    bound1 = 1.0 / jnp.sqrt(in_size)
    bound2 = 1.0 / jnp.sqrt(HIDDEN)
    w1 = jax.random.uniform(k1, (in_size, HIDDEN), jnp.float32, -bound1, bound1)
    b1 = jax.random.uniform(k2, (1, HIDDEN), jnp.float32, -bound1, bound1)
    w2 = jax.random.uniform(k3, (HIDDEN, out_size), jnp.float32, -bound2, bound2)
    b2 = jax.random.uniform(k4, (1, out_size), jnp.float32, -bound2, bound2)
    return w1, b1, w2, b2


if __name__ == "__main__":
    batch, in_size, out_size = 8, 32, 16

    key = jax.random.PRNGKey(0)
    kx, kp = jax.random.split(key)
    x = jax.random.normal(kx, (batch, in_size), jnp.float32)

    # f32 master params, then one-time prep (hoisted out of the forward path).
    w1_f32, b1_f32, w2_f32, b2_f32 = init_params(kp, in_size, out_size)
    w1, b1, w2, b2 = prepare_params(w1_f32, b1_f32, w2_f32, b2_f32,
                                    weight_dtype=jnp.bfloat16)

    fwd = jax.jit(mlp_forward)
    y = jax.block_until_ready(fwd(x, w1, b1, w2, b2))
    assert y.shape == (batch, out_size)

    # Reference 1: identical math in plain JAX (bf16 weights, f32 accumulation)
    # -> tight tolerance.
    h_ref = jnp.maximum(
        jnp.dot(x.astype(w1.dtype), w1, preferred_element_type=jnp.float32) + b1,
        0.0)
    z_ref = jnp.dot(h_ref.astype(w2.dtype), w2,
                    preferred_element_type=jnp.float32) + b2
    y_ref = jax.nn.sigmoid(z_ref)
    assert jnp.allclose(y, y_ref, atol=1e-5, rtol=1e-5)

    # Reference 2: original torch-module f32 semantics -> loose tolerance
    # (bf16 weights shift the pre-sigmoid logits by O(1e-3)).
    h32 = jnp.maximum(x @ w1_f32 + b1_f32, 0.0)
    y32 = jax.nn.sigmoid(h32 @ w2_f32 + b2_f32)
    assert jnp.allclose(y, y32, atol=2e-2)

    print("KERNEL_OK")
</pallas_src>

<mosaic_0001>
module attributes {stable_mosaic.version = 11 : i64} {
  func.func @_mlp_kernel(%arg0: memref<8x32xf32, #tpu.memory_space<vmem>>, %arg1: memref<32x4096xbf16, #tpu.memory_space<vmem>>, %arg2: memref<1x4096xf32, #tpu.memory_space<vmem>>, %arg3: memref<4096x16xbf16, #tpu.memory_space<vmem>>, %arg4: memref<1x16xf32, #tpu.memory_space<vmem>>, %arg5: memref<8x16xf32, #tpu.memory_space<vmem>>) attributes {dimension_semantics = [], scalar_prefetch = 0 : i64, scratch_operands = 0 : i64, tpu.core_type = #tpu.core_type<tc>} {
    %c0 = arith.constant 0 : index
    %c0_0 = arith.constant 0 : index
    %0 = vector.load %arg0[%c0, %c0_0] : memref<8x32xf32, #tpu.memory_space<vmem>>, vector<8x32xf32>
    %1 = arith.truncf %0 : vector<8x32xf32> to vector<8x32xbf16>
    %c0_1 = arith.constant 0 : index
    %c0_2 = arith.constant 0 : index
    %2 = vector.load %arg1[%c0_1, %c0_2] : memref<32x4096xbf16, #tpu.memory_space<vmem>>, vector<32x4096xbf16>
    %cst = arith.constant dense<0.000000e+00> : vector<8x4096xf32>
    %3 = tpu.matmul %1, %2, %cst {dimension_numbers = #tpu.dot_dimension_numbers<[1], [0], [0], [1], [0, 0, 1, 1], [], []>} : vector<8x32xbf16>, vector<32x4096xbf16>, vector<8x4096xf32> -> vector<8x4096xf32>
    %c0_3 = arith.constant 0 : index
    %c0_4 = arith.constant 0 : index
    %4 = vector.load %arg2[%c0_3, %c0_4] : memref<1x4096xf32, #tpu.memory_space<vmem>>, vector<1x4096xf32>
    %5 = vector.broadcast %4 : vector<1x4096xf32> to vector<8x4096xf32>
    %6 = arith.addf %3, %5 : vector<8x4096xf32>
    %cst_5 = arith.constant 0.000000e+00 : f32
    %7 = vector.broadcast %cst_5 : f32 to vector<8x4096xf32>
    %8 = arith.maximumf %6, %7 : vector<8x4096xf32>
    %9 = arith.truncf %8 : vector<8x4096xf32> to vector<8x4096xbf16>
    %c0_6 = arith.constant 0 : index
    %c0_7 = arith.constant 0 : index
    %10 = vector.load %arg3[%c0_6, %c0_7] : memref<4096x16xbf16, #tpu.memory_space<vmem>>, vector<4096x16xbf16>
    %cst_8 = arith.constant dense<0.000000e+00> : vector<8x16xf32>
    %11 = tpu.matmul %9, %10, %cst_8 {dimension_numbers = #tpu.dot_dimension_numbers<[1], [0], [0], [1], [0, 0, 1, 1], [], []>} : vector<8x4096xbf16>, vector<4096x16xbf16>, vector<8x16xf32> -> vector<8x16xf32>
    %c0_9 = arith.constant 0 : index
    %c0_10 = arith.constant 0 : index
    %12 = vector.load %arg4[%c0_9, %c0_10] : memref<1x16xf32, #tpu.memory_space<vmem>>, vector<1x16xf32>
    %13 = vector.broadcast %12 : vector<1x16xf32> to vector<8x16xf32>
    %14 = arith.addf %11, %13 : vector<8x16xf32>
    %15 = arith.negf %14 : vector<8x16xf32>
    %16 = math.exp %15 : vector<8x16xf32>
    %cst_11 = arith.constant 1.000000e+00 : f32
    %17 = vector.broadcast %cst_11 : f32 to vector<8x16xf32>
    %18 = arith.addf %17, %16 : vector<8x16xf32>
    %19 = arith.divf %17, %18 : vector<8x16xf32>
    %c0_12 = arith.constant 0 : index
    %c0_13 = arith.constant 0 : index
    %20 = vector.load %arg5[%c0_12, %c0_13] : memref<8x16xf32, #tpu.memory_space<vmem>>, vector<8x16xf32>
    tpu.vector_store %arg5[%c0_12, %c0_13], %19 {strides = array<i32>} : memref<8x16xf32, #tpu.memory_space<vmem>>, vector<8x16xf32>,
    return
  }
}

</mosaic_0001>

<llo_original>
// kernel: mlp_forward.1
$region0: #{mlp_forward.1}
  #allocation0 [shape = 'u32[]', space=smem, size = 0x4, offset = 0x4, fixed_abs, tag = 'smem constant byte address 0x4 - core index']
  #allocation1 [shape = 'u32[144,128]{1,0:T(1,128)}', space=vmem, size = 0x12000, scoped, tag = 'internal scratch']
  %s0 = inlined_call_operand.vmem [shape: f32[8,32], index: 0, kind: input, shape index: {}]
  %s1 = inlined_call_operand.vmem [shape: bf16[32,4096], index: 1, kind: input, shape index: {}]
  %s2 = inlined_call_operand.vmem [shape: f32[1,4096], index: 2, kind: input, shape index: {}]
  %s3 = inlined_call_operand.vmem [shape: bf16[4096,16], index: 3, kind: input, shape index: {}]
  %s4 = inlined_call_operand.vmem [shape: f32[1,16], index: 4, kind: input, shape index: {}]
  %s5 = inlined_call_operand.hbm [shape: f32[8,16], index: 5, kind: output, shape index: {}]
  %s6 = sld [smem:[#allocation0]]
  $region30: #{mlp_forward.1} parent=0
    _
  %s8 = ssub.s32 1, %s6
  %s9 = scalar_select 0, %s8, %s6
  $region1: #{mlp_forward.1} parent=0
    #allocation2 [shape = 'u8[4096]{0}', space=vmem, size = 0x1000, scoped, tag = 'output window, operand 0, single buffered']
    #allocation3 [shape = 's32[1]{0}', space=sflag, size = 0x4, scoped, tag = 'scoped memory for mlp_forward.1']
    %10 = vsyncpa [#allocation3], 0
    // Predicated region
    $region2: #{mlp_forward.1} parent=1 // pred_check
      _
    $region3: #{mlp_forward.1} parent=1 // pred_check_branch
      %12 = sbr.rel (0) target = $region5
    $region4: #{mlp_forward.1} parent=1 // pred_region
      _
    $region5: #{mlp_forward.1} parent=1 // pred_fallthru
      _
    // Predicated region
    $region6: #{mlp_forward.1} parent=1 // pred_check
      _
    $region7: #{mlp_forward.1} parent=1 // pred_check_branch
      %14 = sbr.rel (0) target = $region9
    $region8: #{mlp_forward.1} parent=1 // pred_region
      _
    $region9: #{mlp_forward.1} parent=1 // pred_fallthru
      _
    // Predicated region
    $region10: #{mlp_forward.1} parent=1 // pred_check
      _
    $region11: #{mlp_forward.1} parent=1 // pred_check_branch
      %16 = sbr.rel (0) target = $region13
    $region12: #{mlp_forward.1} parent=1 // pred_region
      _
    $region13: #{mlp_forward.1} parent=1 // pred_fallthru
      _
    // Predicated region
    $region14: #{mlp_forward.1} parent=1 // pred_check
      _
    $region15: #{mlp_forward.1} parent=1 // pred_check_branch
      %18 = sbr.rel (0) target = $region17
    $region16: #{mlp_forward.1} parent=1 // pred_region
      _
    $region17: #{mlp_forward.1} parent=1 // pred_fallthru
      _
    // Predicated region
    $region18: #{mlp_forward.1} parent=1 // pred_check
      _
    $region19: #{mlp_forward.1} parent=1 // pred_check_branch
      %20 = sbr.rel (0) target = $region21
    $region20: #{mlp_forward.1} parent=1 // pred_region
      _
    $region21: #{mlp_forward.1} parent=1 // pred_fallthru
      _
    %v22 = vld [vmem:[%s0] sm:$0xff]
    %v23 = vpack.c.bf16 %v22, %v22
    %v24 = vld [vmem:[%s1] sm:$0xff]
    %v25 = vld [vmem:[%s1 + $0x8] sm:$0xff]
    %v26 = vld [vmem:[%s1 + $0x10] sm:$0xff]
    %v27 = vld [vmem:[%s1 + $0x18] sm:$0xff]
    %v28 = vld [vmem:[%s1 + $0x20] sm:$0xff]
    %v29 = vld [vmem:[%s1 + $0x28] sm:$0xff]
    %v30 = vld [vmem:[%s1 + $0x30] sm:$0xff]
    %v31 = vld [vmem:[%s1 + $0x38] sm:$0xff]
    %v32 = vld [vmem:[%s1 + $0x40] sm:$0xff]
    %v33 = vld [vmem:[%s1 + $0x48] sm:$0xff]
    %v34 = vld [vmem:[%s1 + $0x50] sm:$0xff]
    %v35 = vld [vmem:[%s1 + $0x58] sm:$0xff]
    %v36 = vld [vmem:[%s1 + $0x60] sm:$0xff]
    %v37 = vld [vmem:[%s1 + $0x68] sm:$0xff]
    %v38 = vld [vmem:[%s1 + $0x70] sm:$0xff]
    %v39 = vld [vmem:[%s1 + $0x78] sm:$0xff]
    %v40 = vld [vmem:[%s1 + $0x80] sm:$0xff]
    %v41 = vld [vmem:[%s1 + $0x88] sm:$0xff]
    %v42 = vld [vmem:[%s1 + $0x90] sm:$0xff]
    %v43 = vld [vmem:[%s1 + $0x98] sm:$0xff]
    %v44 = vld [vmem:[%s1 + $0xa0] sm:$0xff]
    %v45 = vld [vmem:[%s1 + $0xa8] sm:$0xff]
    %v46 = vld [vmem:[%s1 + $0xb0] sm:$0xff]
    %v47 = vld [vmem:[%s1 + $0xb8] sm:$0xff]
    %v48 = vld [vmem:[%s1 + $0xc0] sm:$0xff]
    %v49 = vld [vmem:[%s1 + $0xc8] sm:$0xff]
    %v50 = vld [vmem:[%s1 + $0xd0] sm:$0xff]
    %v51 = vld [vmem:[%s1 + $0xd8] sm:$0xff]
    %v52 = vld [vmem:[%s1 + $0xe0] sm:$0xff]
    %v53 = vld [vmem:[%s1 + $0xe8] sm:$0xff]
    %v54 = vld [vmem:[%s1 + $0xf0] sm:$0xff]
    %v55 = vld [vmem:[%s1 + $0xf8] sm:$0xff]
    %v56 = vld [vmem:[%s1 + $0x100] sm:$0xff]
    %v57 = vld [vmem:[%s1 + $0x108] sm:$0xff]
    %v58 = vld [vmem:[%s1 + $0x110] sm:$0xff]
    %v59 = vld [vmem:[%s1 + $0x118] sm:$0xff]
    %v60 = vld [vmem:[%s1 + $0x120] sm:$0xff]
    %v61 = vld [vmem:[%s1 + $0x128] sm:$0xff]
    %v62 = vld [vmem:[%s1 + $0x130] sm:$0xff]
    %v63 = vld [vmem:[%s1 + $0x138] sm:$0xff]
    %v64 = vld [vmem:[%s1 + $0x140] sm:$0xff]
    %v65 = vld [vmem:[%s1 + $0x148] sm:$0xff]
    %v66 = vld [vmem:[%s1 + $0x150] sm:$0xff]
    %v67 = vld [vmem:[%s1 + $0x158] sm:$0xff]
    %v68 = vld [vmem:[%s1 + $0x160] sm:$0xff]
    %v69 = vld [vmem:[%s1 + $0x168] sm:$0xff]
    %v70 = vld [vmem:[%s1 + $0x170] sm:$0xff]
    %v71 = vld [vmem:[%s1 + $0x178] sm:$0xff]
    %v72 = vld [vmem:[%s1 + $0x180] sm:$0xff]
    %v73 = vld [vmem:[%s1 + $0x188] sm:$0xff]
    %v74 = vld [vmem:[%s1 + $0x190] sm:$0xff]
    %v75 = vld [vmem:[%s1 + $0x198] sm:$0xff]
    %v76 = vld [vmem:[%s1 + $0x1a0] sm:$0xff]
    %v77 = vld [vmem:[%s1 + $0x1a8] sm:$0xff]
    %v78 = vld [vmem:[%s1 + $0x1b0] sm:$0xff]
    %v79 = vld [vmem:[%s1 + $0x1b8] sm:$0xff]
    %v80 = vld [vmem:[%s1 + $0x1c0] sm:$0xff]
    %v81 = vld [vmem:[%s1 + $0x1c8] sm:$0xff]
    %v82 = vld [vmem:[%s1 + $0x1d0] sm:$0xff]
    %v83 = vld [vmem:[%s1 + $0x1d8] sm:$0xff]
    %v84 = vld [vmem:[%s1 + $0x1e0] sm:$0xff]
    %v85 = vld [vmem:[%s1 + $0x1e8] sm:$0xff]
    %v86 = vld [vmem:[%s1 + $0x1f0] sm:$0xff]
    %v87 = vld [vmem:[%s1 + $0x1f8] sm:$0xff]
    %v88 = vld [vmem:[%s2] sm:$0xff]
    %v89 = vld [vmem:[%s2 + $0x8] sm:$0xff]
    %v90 = vld [vmem:[%s2 + $0x10] sm:$0xff]
    %v91 = vld [vmem:[%s2 + $0x18] sm:$0xff]
    %v96 = vlaneseq
    %v97 = vshrl.u32 %v96, 7
    %v98 = vsub.s32 0, %v97
    %v99 = vrot.slane %v88, %v98
    %v100 = vlaneseq
    %v101 = vshrl.u32 %v100, 7
    %v102 = vsub.s32 1, %v101
    %v103 = vrot.slane %v88, %v102
    %v104 = vlaneseq
    %v105 = vshrl.u32 %v104, 7
    %v106 = vsub.s32 2, %v105
    %v107 = vrot.slane %v88, %v106
    %v108 = vlaneseq
    %v109 = vshrl.u32 %v108, 7
    %v110 = vsub.s32 3, %v109
    %v111 = vrot.slane %v88, %v110
    %v112 = vlaneseq
    %v113 = vshrl.u32 %v112, 7
    %v114 = vsub.s32 4, %v113
    %v115 = vrot.slane %v88, %v114
    %v116 = vlaneseq
    %v117 = vshrl.u32 %v116, 7
    %v118 = vsub.s32 5, %v117
    %v119 = vrot.slane %v88, %v118
    %v120 = vlaneseq
    %v121 = vshrl.u32 %v120, 7
    %v122 = vsub.s32 6, %v121
    %v123 = vrot.slane %v88, %v122
    %v124 = vlaneseq
    %v125 = vshrl.u32 %v124, 7
    %v126 = vsub.s32 7, %v125
    %v127 = vrot.slane %v88, %v126
    %v128 = vlaneseq
    %v129 = vshrl.u32 %v128, 7
    %v130 = vsub.s32 0, %v129
    %v131 = vrot.slane %v89, %v130
    %v132 = vlaneseq
    %v133 = vshrl.u32 %v132, 7
    %v134 = vsub.s32 1, %v133
    %v135 = vrot.slane %v89, %v134
    %v136 = vlaneseq
    %v137 = vshrl.u32 %v136, 7
    %v138 = vsub.s32 2, %v137
    %v139 = vrot.slane %v89, %v138
    %v140 = vlaneseq
    %v141 = vshrl.u32 %v140, 7
    %v142 = vsub.s32 3, %v141
    %v143 = vrot.slane %v89, %v142
    %v144 = vlaneseq
    %v145 = vshrl.u32 %v144, 7
    %v146 = vsub.s32 4, %v145
    %v147 = vrot.slane %v89, %v146
    %v148 = vlaneseq
    %v149 = vshrl.u32 %v148, 7
    %v150 = vsub.s32 5, %v149
    %v151 = vrot.slane %v89, %v150
    %v152 = vlaneseq
    %v153 = vshrl.u32 %v152, 7
    %v154 = vsub.s32 6, %v153
    %v155 = vrot.slane %v89, %v154
    %v156 = vlaneseq
    %v157 = vshrl.u32 %v156, 7
    %v158 = vsub.s32 7, %v157
    %v159 = vrot.slane %v89, %v158
    %v160 = vlaneseq
    %v161 = vshrl.u32 %v160, 7
    %v162 = vsub.s32 0, %v161
    %v163 = vrot.slane %v90, %v162
    %v164 = vlaneseq
    %v165 = vshrl.u32 %v164, 7
    %v166 = vsub.s32 1, %v165
    %v167 = vrot.slane %v90, %v166
    %v168 = vlaneseq
    %v169 = vshrl.u32 %v168, 7
    %v170 = vsub.s32 2, %v169
    %v171 = vrot.slane %v90, %v170
    %v172 = vlaneseq
    %v173 = vshrl.u32 %v172, 7
    %v174 = vsub.s32 3, %v173
    %v175 = vrot.slane %v90, %v174
    %v176 = vlaneseq
    %v177 = vshrl.u32 %v176, 7
    %v178 = vsub.s32 4, %v177
    %v179 = vrot.slane %v90, %v178
    %v180 = vlaneseq
    %v181 = vshrl.u32 %v180, 7
    %v182 = vsub.s32 5, %v181
    %v183 = vrot.slane %v90, %v182
    %v184 = vlaneseq
    %v185 = vshrl.u32 %v184, 7
    %v186 = vsub.s32 6, %v185
    %v187 = vrot.slane %v90, %v186
    %v188 = vlaneseq
    %v189 = vshrl.u32 %v188, 7
    %v190 = vsub.s32 7, %v189
    %v191 = vrot.slane %v90, %v190
    %v192 = vlaneseq
    %v193 = vshrl.u32 %v192, 7
    %v194 = vsub.s32 0, %v193
    %v195 = vrot.slane %v91, %v194
    %v196 = vlaneseq
    %v197 = vshrl.u32 %v196, 7
    %v198 = vsub.s32 1, %v197
    %v199 = vrot.slane %v91, %v198
    %v200 = vlaneseq
    %v201 = vshrl.u32 %v200, 7
    %v202 = vsub.s32 2, %v201
    %v203 = vrot.slane %v91, %v202
    %v204 = vlaneseq
    %v205 = vshrl.u32 %v204, 7
    %v206 = vsub.s32 3, %v205
    %v207 = vrot.slane %v91, %v206
    %v208 = vlaneseq
    %v209 = vshrl.u32 %v208, 7
    %v210 = vsub.s32 4, %v209
    %v211 = vrot.slane %v91, %v210
    %v212 = vlaneseq
    %v213 = vshrl.u32 %v212, 7
    %v214 = vsub.s32 5, %v213
    %v215 = vrot.slane %v91, %v214
    %v216 = vlaneseq
    %v217 = vshrl.u32 %v216, 7
    %v218 = vsub.s32 6, %v217
    %v219 = vrot.slane %v91, %v218
    %v220 = vlaneseq
    %v221 = vshrl.u32 %v220, 7
    %v222 = vsub.s32 7, %v221
    %v223 = vrot.slane %v91, %v222
    %v320 = vunpack.c.l.b16 %v24
    %v321 = vunpack.c.h.b16 %v24
    %v322 = vunpack.c.l.b16 %v25
    %v323 = vunpack.c.h.b16 %v25
    %v324 = vunpack.c.l.b16 %v26
    %v325 = vunpack.c.h.b16 %v26
    %v326 = vunpack.c.l.b16 %v27
    %v327 = vunpack.c.h.b16 %v27
    %v328 = vunpack.c.l.b16 %v28
    %v329 = vunpack.c.h.b16 %v28
    %v330 = vunpack.c.l.b16 %v29
    %v331 = vunpack.c.h.b16 %v29
    %v332 = vunpack.c.l.b16 %v30
    %v333 = vunpack.c.h.b16 %v30
    %v334 = vunpack.c.l.b16 %v31
    %v335 = vunpack.c.h.b16 %v31
    %v336 = vunpack.c.l.b16 %v32
    %v337 = vunpack.c.h.b16 %v32
    %v338 = vunpack.c.l.b16 %v33
    %v339 = vunpack.c.h.b16 %v33
    %v340 = vunpack.c.l.b16 %v34
    %v341 = vunpack.c.h.b16 %v34
    %v342 = vunpack.c.l.b16 %v35
    %v343 = vunpack.c.h.b16 %v35
    %v344 = vunpack.c.l.b16 %v36
    %v345 = vunpack.c.h.b16 %v36
    %v346 = vunpack.c.l.b16 %v37
    %v347 = vunpack.c.h.b16 %v37
    %v348 = vunpack.c.l.b16 %v38
    %v349 = vunpack.c.h.b16 %v38
    %v350 = vunpack.c.l.b16 %v39
    %v351 = vunpack.c.h.b16 %v39
    %v352 = vunpack.c.l.b16 %v40
    %v353 = vunpack.c.h.b16 %v40
    %v354 = vunpack.c.l.b16 %v41
    %v355 = vunpack.c.h.b16 %v41
    %v356 = vunpack.c.l.b16 %v42
    %v357 = vunpack.c.h.b16 %v42
    %v358 = vunpack.c.l.b16 %v43
    %v359 = vunpack.c.h.b16 %v43
    %v360 = vunpack.c.l.b16 %v44
    %v361 = vunpack.c.h.b16 %v44
    %v362 = vunpack.c.l.b16 %v45
    %v363 = vunpack.c.h.b16 %v45
    %v364 = vunpack.c.l.b16 %v46
    %v365 = vunpack.c.h.b16 %v46
    %v366 = vunpack.c.l.b16 %v47
    %v367 = vunpack.c.h.b16 %v47
    %v368 = vunpack.c.l.b16 %v48
    %v369 = vunpack.c.h.b16 %v48
    %v370 = vunpack.c.l.b16 %v49
    %v371 = vunpack.c.h.b16 %v49
    %v372 = vunpack.c.l.b16 %v50
    %v373 = vunpack.c.h.b16 %v50
    %v374 = vunpack.c.l.b16 %v51
    %v375 = vunpack.c.h.b16 %v51
    %v376 = vunpack.c.l.b16 %v52
    %v377 = vunpack.c.h.b16 %v52
    %v378 = vunpack.c.l.b16 %v53
    %v379 = vunpack.c.h.b16 %v53
    %v380 = vunpack.c.l.b16 %v54
    %v381 = vunpack.c.h.b16 %v54
    %v382 = vunpack.c.l.b16 %v55
    %v383 = vunpack.c.h.b16 %v55
    %v384 = vunpack.c.l.b16 %v56
    %v385 = vunpack.c.h.b16 %v56
    %v386 = vunpack.c.l.b16 %v57
    %v387 = vunpack.c.h.b16 %v57
    %v388 = vunpack.c.l.b16 %v58
    %v389 = vunpack.c.h.b16 %v58
    %v390 = vunpack.c.l.b16 %v59
    %v391 = vunpack.c.h.b16 %v59
    %v392 = vunpack.c.l.b16 %v60
    %v393 = vunpack.c.h.b16 %v60
    %v394 = vunpack.c.l.b16 %v61
    %v395 = vunpack.c.h.b16 %v61
    %v396 = vunpack.c.l.b16 %v62
    %v397 = vunpack.c.h.b16 %v62
    %v398 = vunpack.c.l.b16 %v63
    %v399 = vunpack.c.h.b16 %v63
    %v400 = vunpack.c.l.b16 %v64
    %v401 = vunpack.c.h.b16 %v64
    %v402 = vunpack.c.l.b16 %v65
    %v403 = vunpack.c.h.b16 %v65
    %v404 = vunpack.c.l.b16 %v66
    %v405 = vunpack.c.h.b16 %v66
    %v406 = vunpack.c.l.b16 %v67
    %v407 = vunpack.c.h.b16 %v67
    %v408 = vunpack.c.l.b16 %v68
    %v409 = vunpack.c.h.b16 %v68
    %v410 = vunpack.c.l.b16 %v69
    %v411 = vunpack.c.h.b16 %v69
    %v412 = vunpack.c.l.b16 %v70
    %v413 = vunpack.c.h.b16 %v70
    %v414 = vunpack.c.l.b16 %v71
    %v415 = vunpack.c.h.b16 %v71
    %v416 = vunpack.c.l.b16 %v72
    %v417 = vunpack.c.h.b16 %v72
    %v418 = vunpack.c.l.b16 %v73
    %v419 = vunpack.c.h.b16 %v73
    %v420 = vunpack.c.l.b16 %v74
    %v421 = vunpack.c.h.b16 %v74
    %v422 = vunpack.c.l.b16 %v75
    %v423 = vunpack.c.h.b16 %v75
    %v424 = vunpack.c.l.b16 %v76
    %v425 = vunpack.c.h.b16 %v76
    %v426 = vunpack.c.l.b16 %v77
    %v427 = vunpack.c.h.b16 %v77
    %v428 = vunpack.c.l.b16 %v78
    %v429 = vunpack.c.h.b16 %v78
    %v430 = vunpack.c.l.b16 %v79
    %v431 = vunpack.c.h.b16 %v79
    %v432 = vunpack.c.l.b16 %v80
    %v433 = vunpack.c.h.b16 %v80
    %v434 = vunpack.c.l.b16 %v81
    %v435 = vunpack.c.h.b16 %v81
    %v436 = vunpack.c.l.b16 %v82
    %v437 = vunpack.c.h.b16 %v82
    %v438 = vunpack.c.l.b16 %v83
    %v439 = vunpack.c.h.b16 %v83
    %v440 = vunpack.c.l.b16 %v84
    %v441 = vunpack.c.h.b16 %v84
    %v442 = vunpack.c.l.b16 %v85
    %v443 = vunpack.c.h.b16 %v85
    %v444 = vunpack.c.l.b16 %v86
    %v445 = vunpack.c.h.b16 %v86
    %v446 = vunpack.c.l.b16 %v87
    %v447 = vunpack.c.h.b16 %v87
    %v448 = vpack.c.b16 %v352, %v320
    %v449 = vpack.c.b16 %v353, %v321
    %v450 = vpack.c.b16 %v354, %v322
    %v451 = vpack.c.b16 %v355, %v323
    %v452 = vpack.c.b16 %v356, %v324
    %v453 = vpack.c.b16 %v357, %v325
    %v454 = vpack.c.b16 %v358, %v326
    %v455 = vpack.c.b16 %v359, %v327
    %v456 = vpack.c.b16 %v360, %v328
    %v457 = vpack.c.b16 %v361, %v329
    %v458 = vpack.c.b16 %v362, %v330
    %v459 = vpack.c.b16 %v363, %v331
    %v460 = vpack.c.b16 %v364, %v332
    %v461 = vpack.c.b16 %v365, %v333
    %v462 = vpack.c.b16 %v366, %v334
    %v463 = vpack.c.b16 %v367, %v335
    %v464 = vpack.c.b16 %v368, %v336
    %v465 = vpack.c.b16 %v369, %v337
    %v466 = vpack.c.b16 %v370, %v338
    %v467 = vpack.c.b16 %v371, %v339
    %v468 = vpack.c.b16 %v372, %v340
    %v469 = vpack.c.b16 %v373, %v341
    %v470 = vpack.c.b16 %v374, %v342
    %v471 = vpack.c.b16 %v375, %v343
    %v472 = vpack.c.b16 %v376, %v344
    %v473 = vpack.c.b16 %v377, %v345
    %v474 = vpack.c.b16 %v378, %v346
    %v475 = vpack.c.b16 %v379, %v347
    %v476 = vpack.c.b16 %v380, %v348
    %v477 = vpack.c.b16 %v381, %v349
    %v478 = vpack.c.b16 %v382, %v350
    %v479 = vpack.c.b16 %v383, %v351
    %v480 = vpack.c.b16 %v416, %v384
    %v481 = vpack.c.b16 %v417, %v385
    %v482 = vpack.c.b16 %v418, %v386
    %v483 = vpack.c.b16 %v419, %v387
    %v484 = vpack.c.b16 %v420, %v388
    %v485 = vpack.c.b16 %v421, %v389
    %v486 = vpack.c.b16 %v422, %v390
    %v487 = vpack.c.b16 %v423, %v391
    %v488 = vpack.c.b16 %v424, %v392
    %v489 = vpack.c.b16 %v425, %v393
    %v490 = vpack.c.b16 %v426, %v394
    %v491 = vpack.c.b16 %v427, %v395
    %v492 = vpack.c.b16 %v428, %v396
    %v493 = vpack.c.b16 %v429, %v397
    %v494 = vpack.c.b16 %v430, %v398
    %v495 = vpack.c.b16 %v431, %v399
    %v496 = vpack.c.b16 %v432, %v400
    %v497 = vpack.c.b16 %v433, %v401
    %v498 = vpack.c.b16 %v434, %v402
    %v499 = vpack.c.b16 %v435, %v403
    %v500 = vpack.c.b16 %v436, %v404
    %v501 = vpack.c.b16 %v437, %v405
    %v502 = vpack.c.b16 %v438, %v406
    %v503 = vpack.c.b16 %v439, %v407
    %v504 = vpack.c.b16 %v440, %v408
    %v505 = vpack.c.b16 %v441, %v409
    %v506 = vpack.c.b16 %v442, %v410
    %v507 = vpack.c.b16 %v443, %v411
    %v508 = vpack.c.b16 %v444, %v412
    %v509 = vpack.c.b16 %v445, %v413
    %v510 = vpack.c.b16 %v446, %v414
    %v511 = vpack.c.b16 %v447, %v415
    %vm576 = vcmask 261120
    %v578 = vsel %vm576, %v23, 0
    %580 = vmatprep.subr.bf16.mxu0 0
    %581 = vmatpush1.bf16.msra.mxu0 0
    %582 = vmatprep.subr.bf16.mxu0 0
    %583 = vmatpush1.bf16.msra.mxu0 0
    %584 = vmatprep.subr.bf16.mxu0 0
    %585 = vmatpush1.bf16.msra.mxu0 0
    %586 = vmatprep.subr.bf16.mxu0 0
    %587 = vmatpush1.bf16.msra.mxu0 0
    %588 = vmatprep.subr.bf16.mxu0 0
    %589 = vmatpush1.bf16.msra.mxu0 0
    %590 = vmatprep.subr.bf16.mxu0 0
    %591 = vmatpush1.bf16.msra.mxu0 0
    %592 = vmatprep.subr.bf16.mxu0 %v481
    %593 = vmatpush1.bf16.msra.mxu0 %v480
    %594 = vmatprep.subr.bf16.mxu0 %v449
    %595 = vmatpush1.bf16.msra.mxu0 %v448
    %596 = vmatprep.subr.bf16.mxu0 0
    %597 = vmatpush2.bf16.msra.mxu0 0
    %598 = vmatprep.subr.bf16.mxu0 0
    %599 = vmatpush2.bf16.msra.mxu0 0
    %600 = vmatprep.subr.bf16.mxu0 0
    %601 = vmatpush2.bf16.msra.mxu0 0
    %602 = vmatprep.subr.bf16.mxu0 0
    %603 = vmatpush2.bf16.msra.mxu0 0
    %604 = vmatprep.subr.bf16.mxu0 0
    %605 = vmatpush2.bf16.msra.mxu0 0
    %606 = vmatprep.subr.bf16.mxu0 0
    %607 = vmatpush2.bf16.msra.mxu0 0
    %608 = vmatprep.subr.bf16.mxu0 0
    %609 = vmatpush2.bf16.msra.mxu0 0
    %610 = vmatprep.subr.bf16.mxu0 0
    %611 = vmatpush2.bf16.msra.mxu0 0
    %612 = vmatprep.mubr.bf16.mxu0 0
    %613 = vmatmul.mubr.bf16.gmra.mxu0 %v578
    %v614 = vpop.f32.mrf.mxu0
    %v615 = vadd.f32 %v99, %v614
    %v616 = vpop.f32.mrf.mxu0
    %v617 = vadd.f32 %v103, %v616
    %v618 = vpop.f32.mrf.mxu0
    %v619 = vpop.f32.mrf.mxu0
    %620 = vdwg.mxu0
    %621 = vmatprep.subr.bf16.mxu0 0
    %622 = vmatpush1.bf16.msra.mxu0 0
    %623 = vmatprep.subr.bf16.mxu0 0
    %624 = vmatpush1.bf16.msra.mxu0 0
    %625 = vmatprep.subr.bf16.mxu0 0
    %626 = vmatpush1.bf16.msra.mxu0 0
    %627 = vmatprep.subr.bf16.mxu0 0
    %628 = vmatpush1.bf16.msra.mxu0 0
    %629 = vmatprep.subr.bf16.mxu0 0
    %630 = vmatpush1.bf16.msra.mxu0 0
    %631 = vmatprep.subr.bf16.mxu0 0
    %632 = vmatpush1.bf16.msra.mxu0 0
    %633 = vmatprep.subr.bf16.mxu0 %v483
    %634 = vmatpush1.bf16.msra.mxu0 %v482
    %635 = vmatprep.subr.bf16.mxu0 %v451
    %636 = vmatpush1.bf16.msra.mxu0 %v450
    %637 = vmatprep.subr.bf16.mxu0 0
    %638 = vmatpush2.bf16.msra.mxu0 0
    %639 = vmatprep.subr.bf16.mxu0 0
    %640 = vmatpush2.bf16.msra.mxu0 0
    %641 = vmatprep.subr.bf16.mxu0 0
    %642 = vmatpush2.bf16.msra.mxu0 0
    %643 = vmatprep.subr.bf16.mxu0 0
    %644 = vmatpush2.bf16.msra.mxu0 0
    %645 = vmatprep.subr.bf16.mxu0 0
    %646 = vmatpush2.bf16.msra.mxu0 0
    %647 = vmatprep.subr.bf16.mxu0 0
    %648 = vmatpush2.bf16.msra.mxu0 0
    %649 = vmatprep.subr.bf16.mxu0 0
    %650 = vmatpush2.bf16.msra.mxu0 0
    %651 = vmatprep.subr.bf16.mxu0 0
    %652 = vmatpush2.bf16.msra.mxu0 0
    %653 = vmatprep.mubr.bf16.mxu0 0
    %654 = vmatmul.mubr.bf16.gmra.mxu0 %v578
    %v655 = vpop.f32.mrf.mxu0
    %v656 = vadd.f32 %v107, %v655
    %v657 = vpop.f32.mrf.mxu0
    %v658 = vadd.f32 %v111, %v657
    %v659 = vpop.f32.mrf.mxu0
    %v660 = vpop.f32.mrf.mxu0
    %661 = vdwg.mxu0
    %662 = vmatprep.subr.bf16.mxu0 0
    %663 = vmatpush1.bf16.msra.mxu0 0
    %664 = vmatprep.subr.bf16.mxu0 0
    %665 = vmatpush1.bf16.msra.mxu0 0
    %666 = vmatprep.subr.bf16.mxu0 0
    %667 = vmatpush1.bf16.msra.mxu0 0
    %668 = vmatprep.subr.bf16.mxu0 0
    %669 = vmatpush1.bf16.msra.mxu0 0
    %670 = vmatprep.subr.bf16.mxu0 0
    %671 = vmatpush1.bf16.msra.mxu0 0
    %672 = vmatprep.subr.bf16.mxu0 0
    %673 = vmatpush1.bf16.msra.mxu0 0
    %674 = vmatprep.subr.bf16.mxu0 %v485
    %675 = vmatpush1.bf16.msra.mxu0 %v484
    %676 = vmatprep.subr.bf16.mxu0 %v453
    %677 = vmatpush1.bf16.msra.mxu0 %v452
    %678 = vmatprep.subr.bf16.mxu0 0
    %679 = vmatpush2.bf16.msra.mxu0 0
    %680 = vmatprep.subr.bf16.mxu0 0
    %681 = vmatpush2.bf16.msra.mxu0 0
    %682 = vmatprep.subr.bf16.mxu0 0
    %683 = vmatpush2.bf16.msra.mxu0 0
    %684 = vmatprep.subr.bf16.mxu0 0
    %685 = vmatpush2.bf16.msra.mxu0 0
    %686 = vmatprep.subr.bf16.mxu0 0
    %687 = vmatpush2.bf16.msra.mxu0 0
    %688 = vmatprep.subr.bf16.mxu0 0
    %689 = vmatpush2.bf16.msra.mxu0 0
    %690 = vmatprep.subr.bf16.mxu0 0
    %691 = vmatpush2.bf16.msra.mxu0 0
    %692 = vmatprep.subr.bf16.mxu0 0
    %693 = vmatpush2.bf16.msra.mxu0 0
    %694 = vmatprep.mubr.bf16.mxu0 0
    %695 = vmatmul.mubr.bf16.gmra.mxu0 %v578
    %v696 = vpop.f32.mrf.mxu0
    %v697 = vadd.f32 %v115, %v696
    %v698 = vpop.f32.mrf.mxu0
    %v699 = vadd.f32 %v119, %v698
    %v700 = vpop.f32.mrf.mxu0
    %v701 = vpop.f32.mrf.mxu0
    %702 = vdwg.mxu0
    %703 = vmatprep.subr.bf16.mxu0 0
    %704 = vmatpush1.bf16.msra.mxu0 0
    %705 = vmatprep.subr.bf16.mxu0 0
    %706 = vmatpush1.bf16.msra.mxu0 0
    %707 = vmatprep.subr.bf16.mxu0 0
    %708 = vmatpush1.bf16.msra.mxu0 0
    %709 = vmatprep.subr.bf16.mxu0 0
    %710 = vmatpush1.bf16.msra.mxu0 0
    %711 = vmatprep.subr.bf16.mxu0 0
    %712 = vmatpush1.bf16.msra.mxu0 0
    %713 = vmatprep.subr.bf16.mxu0 0
    %714 = vmatpush1.bf16.msra.mxu0 0
    %715 = vmatprep.subr.bf16.mxu0 %v487
    %716 = vmatpush1.bf16.msra.mxu0 %v486
    %717 = vmatprep.subr.bf16.mxu0 %v455
    %718 = vmatpush1.bf16.msra.mxu0 %v454
    %719 = vmatprep.subr.bf16.mxu0 0
    %720 = vmatpush2.bf16.msra.mxu0 0
    %721 = vmatprep.subr.bf16.mxu0 0
    %722 = vmatpush2.bf16.msra.mxu0 0
    %723 = vmatprep.subr.bf16.mxu0 0
    %724 = vmatpush2.bf16.msra.mxu0 0
    %725 = vmatprep.subr.bf16.mxu0 0
    %726 = vmatpush2.bf16.msra.mxu0 0
    %727 = vmatprep.subr.bf16.mxu0 0
    %728 = vmatpush2.bf16.msra.mxu0 0
    %729 = vmatprep.subr.bf16.mxu0 0
    %730 = vmatpush2.bf16.msra.mxu0 0
    %731 = vmatprep.subr.bf16.mxu0 0
    %732 = vmatpush2.bf16.msra.mxu0 0
    %733 = vmatprep.subr.bf16.mxu0 0
    %734 = vmatpush2.bf16.msra.mxu0 0
    %735 = vmatprep.mubr.bf16.mxu0 0
    %736 = vmatmul.mubr.bf16.gmra.mxu0 %v578
    %v737 = vpop.f32.mrf.mxu0
    %v738 = vadd.f32 %v123, %v737
    %v739 = vpop.f32.mrf.mxu0
    %v740 = vadd.f32 %v127, %v739
    %v741 = vpop.f32.mrf.mxu0
    %v742 = vpop.f32.mrf.mxu0
    %743 = vdwg.mxu0
    %744 = vmatprep.subr.bf16.mxu0 0
    %745 = vmatpush1.bf16.msra.mxu0 0
    %746 = vmatprep.subr.bf16.mxu0 0
    %747 = vmatpush1.bf16.msra.mxu0 0
    %748 = vmatprep.subr.bf16.mxu0 0
    %749 = vmatpush1.bf16.msra.mxu0 0
    %750 = vmatprep.subr.bf16.mxu0 0
    %751 = vmatpush1.bf16.msra.mxu0 0
    %752 = vmatprep.subr.bf16.mxu0 0
    %753 = vmatpush1.bf16.msra.mxu0 0
    %754 = vmatprep.subr.bf16.mxu0 0
    %755 = vmatpush1.bf16.msra.mxu0 0
    %756 = vmatprep.subr.bf16.mxu0 %v489
    %757 = vmatpush1.bf16.msra.mxu0 %v488
    %758 = vmatprep.subr.bf16.mxu0 %v457
    %759 = vmatpush1.bf16.msra.mxu0 %v456
    %760 = vmatprep.subr.bf16.mxu0 0
    %761 = vmatpush2.bf16.msra.mxu0 0
    %762 = vmatprep.subr.bf16.mxu0 0
    %763 = vmatpush2.bf16.msra.mxu0 0
    %764 = vmatprep.subr.bf16.mxu0 0
    %765 = vmatpush2.bf16.msra.mxu0 0
    %766 = vmatprep.subr.bf16.mxu0 0
    %767 = vmatpush2.bf16.msra.mxu0 0
    %768 = vmatprep.subr.bf16.mxu0 0
    %769 = vmatpush2.bf16.msra.mxu0 0
    %770 = vmatprep.subr.bf16.mxu0 0
    %771 = vmatpush2.bf16.msra.mxu0 0
    %772 = vmatprep.subr.bf16.mxu0 0
    %773 = vmatpush2.bf16.msra.mxu0 0
    %774 = vmatprep.subr.bf16.mxu0 0
    %775 = vmatpush2.bf16.msra.mxu0 0
    %776 = vmatprep.mubr.bf16.mxu0 0
    %777 = vmatmul.mubr.bf16.gmra.mxu0 %v578
    %v778 = vpop.f32.mrf.mxu0
    %v779 = vadd.f32 %v131, %v778
    %v780 = vpop.f32.mrf.mxu0
    %v781 = vadd.f32 %v135, %v780
    %v782 = vpop.f32.mrf.mxu0
    %v783 = vpop.f32.mrf.mxu0
    %784 = vdwg.mxu0
    %785 = vmatprep.subr.bf16.mxu0 0
    %786 = vmatpush1.bf16.msra.mxu0 0
    %787 = vmatprep.subr.bf16.mxu0 0
    %788 = vmatpush1.bf16.msra.mxu0 0
    %789 = vmatprep.subr.bf16.mxu0 0
    %790 = vmatpush1.bf16.msra.mxu0 0
    %791 = vmatprep.subr.bf16.mxu0 0
    %792 = vmatpush1.bf16.msra.mxu0 0
    %793 = vmatprep.subr.bf16.mxu0 0
    %794 = vmatpush1.bf16.msra.mxu0 0
    %795 = vmatprep.subr.bf16.mxu0 0
    %796 = vmatpush1.bf16.msra.mxu0 0
    %797 = vmatprep.subr.bf16.mxu0 %v491
    %798 = vmatpush1.bf16.msra.mxu0 %v490
    %799 = vmatprep.subr.bf16.mxu0 %v459
    %800 = vmatpush1.bf16.msra.mxu0 %v458
    %801 = vmatprep.subr.bf16.mxu0 0
    %802 = vmatpush2.bf16.msra.mxu0 0
    %803 = vmatprep.subr.bf16.mxu0 0
    %804 = vmatpush2.bf16.msra.mxu0 0
    %805 = vmatprep.subr.bf16.mxu0 0
    %806 = vmatpush2.bf16.msra.mxu0 0
    %807 = vmatprep.subr.bf16.mxu0 0
    %808 = vmatpush2.bf16.msra.mxu0 0
    %809 = vmatprep.subr.bf16.mxu0 0
    %810 = vmatpush2.bf16.msra.mxu0 0
    %811 = vmatprep.subr.bf16.mxu0 0
    %812 = vmatpush2.bf16.msra.mxu0 0
    %813 = vmatprep.subr.bf16.mxu0 0
    %814 = vmatpush2.bf16.msra.mxu0 0
    %815 = vmatprep.subr.bf16.mxu0 0
    %816 = vmatpush2.bf16.msra.mxu0 0
    %817 = vmatprep.mubr.bf16.mxu0 0
    %818 = vmatmul.mubr.bf16.gmra.mxu0 %v578
    %v819 = vpop.f32.mrf.mxu0
    %v820 = vadd.f32 %v139, %v819
    %v821 = vpop.f32.mrf.mxu0
    %v822 = vadd.f32 %v143, %v821
    %v823 = vpop.f32.mrf.mxu0
    %v824 = vpop.f32.mrf.mxu0
    %825 = vdwg.mxu0
    %826 = vmatprep.subr.bf16.mxu0 0
    %827 = vmatpush1.bf16.msra.mxu0 0
    %828 = vmatprep.subr.bf16.mxu0 0
    %829 = vmatpush1.bf16.msra.mxu0 0
    %830 = vmatprep.subr.bf16.mxu0 0
    %831 = vmatpush1.bf16.msra.mxu0 0
    %832 = vmatprep.subr.bf16.mxu0 0
    %833 = vmatpush1.bf16.msra.mxu0 0
    %834 = vmatprep.subr.bf16.mxu0 0
    %835 = vmatpush1.bf16.msra.mxu0 0
    %836 = vmatprep.subr.bf16.mxu0 0
    %837 = vmatpush1.bf16.msra.mxu0 0
    %838 = vmatprep.subr.bf16.mxu0 %v493
    %839 = vmatpush1.bf16.msra.mxu0 %v492
    %840 = vmatprep.subr.bf16.mxu0 %v461
    %841 = vmatpush1.bf16.msra.mxu0 %v460
    %842 = vmatprep.subr.bf16.mxu0 0
    %843 = vmatpush2.bf16.msra.mxu0 0
    %844 = vmatprep.subr.bf16.mxu0 0
    %845 = vmatpush2.bf16.msra.mxu0 0
    %846 = vmatprep.subr.bf16.mxu0 0
    %847 = vmatpush2.bf16.msra.mxu0 0
    %848 = vmatprep.subr.bf16.mxu0 0
    %849 = vmatpush2.bf16.msra.mxu0 0
    %850 = vmatprep.subr.bf16.mxu0 0
    %851 = vmatpush2.bf16.msra.mxu0 0
    %852 = vmatprep.subr.bf16.mxu0 0
    %853 = vmatpush2.bf16.msra.mxu0 0
    %854 = vmatprep.subr.bf16.mxu0 0
    %855 = vmatpush2.bf16.msra.mxu0 0
    %856 = vmatprep.subr.bf16.mxu0 0
    %857 = vmatpush2.bf16.msra.mxu0 0
    %858 = vmatprep.mubr.bf16.mxu0 0
    %859 = vmatmul.mubr.bf16.gmra.mxu0 %v578
    %v860 = vpop.f32.mrf.mxu0
    %v861 = vadd.f32 %v147, %v860
    %v862 = vpop.f32.mrf.mxu0
    %v863 = vadd.f32 %v151, %v862
    %v864 = vpop.f32.mrf.mxu0
    %v865 = vpop.f32.mrf.mxu0
    %866 = vdwg.mxu0
    %867 = vmatprep.subr.bf16.mxu0 0
    %868 = vmatpush1.bf16.msra.mxu0 0
    %869 = vmatprep.subr.bf16.mxu0 0
    %870 = vmatpush1.bf16.msra.mxu0 0
    %871 = vmatprep.subr.bf16.mxu0 0
    %872 = vmatpush1.bf16.msra.mxu0 0
    %873 = vmatprep.subr.bf16.mxu0 0
    %874 = vmatpush1.bf16.msra.mxu0 0
    %875 = vmatprep.subr.bf16.mxu0 0
    %876 = vmatpush1.bf16.msra.mxu0 0
    %877 = vmatprep.subr.bf16.mxu0 0
    %878 = vmatpush1.bf16.msra.mxu0 0
    %879 = vmatprep.subr.bf16.mxu0 %v495
    %880 = vmatpush1.bf16.msra.mxu0 %v494
    %881 = vmatprep.subr.bf16.mxu0 %v463
    %882 = vmatpush1.bf16.msra.mxu0 %v462
    %883 = vmatprep.subr.bf16.mxu0 0
    %884 = vmatpush2.bf16.msra.mxu0 0
    %885 = vmatprep.subr.bf16.mxu0 0
    %886 = vmatpush2.bf16.msra.mxu0 0
    %887 = vmatprep.subr.bf16.mxu0 0
    %888 = vmatpush2.bf16.msra.mxu0 0
    %889 = vmatprep.subr.bf16.mxu0 0
    %890 = vmatpush2.bf16.msra.mxu0 0
    %891 = vmatprep.subr.bf16.mxu0 0
    %892 = vmatpush2.bf16.msra.mxu0 0
    %893 = vmatprep.subr.bf16.mxu0 0
    %894 = vmatpush2.bf16.msra.mxu0 0
    %895 = vmatprep.subr.bf16.mxu0 0
    %896 = vmatpush2.bf16.msra.mxu0 0
    %897 = vmatprep.subr.bf16.mxu0 0
    %898 = vmatpush2.bf16.msra.mxu0 0
    %899 = vmatprep.mubr.bf16.mxu0 0
    %900 = vmatmul.mubr.bf16.gmra.mxu0 %v578
    %v901 = vpop.f32.mrf.mxu0
    %v902 = vadd.f32 %v155, %v901
    %v903 = vpop.f32.mrf.mxu0
    %v904 = vadd.f32 %v159, %v903
    %v905 = vpop.f32.mrf.mxu0
    %v906 = vpop.f32.mrf.mxu0
    %907 = vdwg.mxu0
    %908 = vmatprep.subr.bf16.mxu0 0
    %909 = vmatpush1.bf16.msra.mxu0 0
    %910 = vmatprep.subr.bf16.mxu0 0
    %911 = vmatpush1.bf16.msra.mxu0 0
    %912 = vmatprep.subr.bf16.mxu0 0
    %913 = vmatpush1.bf16.msra.mxu0 0
    %914 = vmatprep.subr.bf16.mxu0 0
    %915 = vmatpush1.bf16.msra.mxu0 0
    %916 = vmatprep.subr.bf16.mxu0 0
    %917 = vmatpush1.bf16.msra.mxu0 0
    %918 = vmatprep.subr.bf16.mxu0 0
    %919 = vmatpush1.bf16.msra.mxu0 0
    %920 = vmatprep.subr.bf16.mxu0 %v497
    %921 = vmatpush1.bf16.msra.mxu0 %v496
    %922 = vmatprep.subr.bf16.mxu0 %v465
    %923 = vmatpush1.bf16.msra.mxu0 %v464
    %924 = vmatprep.subr.bf16.mxu0 0
    %925 = vmatpush2.bf16.msra.mxu0 0
    %926 = vmatprep.subr.bf16.mxu0 0
    %927 = vmatpush2.bf16.msra.mxu0 0
    %928 = vmatprep.subr.bf16.mxu0 0
    %929 = vmatpush2.bf16.msra.mxu0 0
    %930 = vmatprep.subr.bf16.mxu0 0
    %931 = vmatpush2.bf16.msra.mxu0 0
    %932 = vmatprep.subr.bf16.mxu0 0
    %933 = vmatpush2.bf16.msra.mxu0 0
    %934 = vmatprep.subr.bf16.mxu0 0
    %935 = vmatpush2.bf16.msra.mxu0 0
    %936 = vmatprep.subr.bf16.mxu0 0
    %937 = vmatpush2.bf16.msra.mxu0 0
    %938 = vmatprep.subr.bf16.mxu0 0
    %939 = vmatpush2.bf16.msra.mxu0 0
    %940 = vmatprep.mubr.bf16.mxu0 0
    %941 = vmatmul.mubr.bf16.gmra.mxu0 %v578
    %v942 = vpop.f32.mrf.mxu0
    %v943 = vadd.f32 %v163, %v942
    %v944 = vpop.f32.mrf.mxu0
    %v945 = vadd.f32 %v167, %v944
    %v946 = vpop.f32.mrf.mxu0
    %v947 = vpop.f32.mrf.mxu0
    %948 = vdwg.mxu0
    %949 = vmatprep.subr.bf16.mxu0 0
    %950 = vmatpush1.bf16.msra.mxu0 0
    %951 = vmatprep.subr.bf16.mxu0 0
    %952 = vmatpush1.bf16.msra.mxu0 0
    %953 = vmatprep.subr.bf16.mxu0 0
    %954 = vmatpush1.bf16.msra.mxu0 0
    %955 = vmatprep.subr.bf16.mxu0 0
    %956 = vmatpush1.bf16.msra.mxu0 0
    %957 = vmatprep.subr.bf16.mxu0 0
    %958 = vmatpush1.bf16.msra.mxu0 0
    %959 = vmatprep.subr.bf16.mxu0 0
    %960 = vmatpush1.bf16.msra.mxu0 0
    %961 = vmatprep.subr.bf16.mxu0 %v499
    %962 = vmatpush1.bf16.msra.mxu0 %v498
    %963 = vmatprep.subr.bf16.mxu0 %v467
    %964 = vmatpush1.bf16.msra.mxu0 %v466
    %965 = vmatprep.subr.bf16.mxu0 0
    %966 = vmatpush2.bf16.msra.mxu0 0
    %967 = vmatprep.subr.bf16.mxu0 0
    %968 = vmatpush2.bf16.msra.mxu0 0
    %969 = vmatprep.subr.bf16.mxu0 0
    %970 = vmatpush2.bf16.msra.mxu0 0
    %971 = vmatprep.subr.bf16.mxu0 0
    %972 = vmatpush2.bf16.msra.mxu0 0
    %973 = vmatprep.subr.bf16.mxu0 0
    %974 = vmatpush2.bf16.msra.mxu0 0
    %975 = vmatprep.subr.bf16.mxu0 0
    %976 = vmatpush2.bf16.msra.mxu0 0
    %977 = vmatprep.subr.bf16.mxu0 0
    %978 = vmatpush2.bf16.msra.mxu0 0
    %979 = vmatprep.subr.bf16.mxu0 0
    %980 = vmatpush2.bf16.msra.mxu0 0
    %981 = vmatprep.mubr.bf16.mxu0 0
    %982 = vmatmul.mubr.bf16.gmra.mxu0 %v578
    %v983 = vpop.f32.mrf.mxu0
    %v984 = vadd.f32 %v171, %v983
    %v985 = vpop.f32.mrf.mxu0
    %v986 = vadd.f32 %v175, %v985
    %v987 = vpop.f32.mrf.mxu0
    %v988 = vpop.f32.mrf.mxu0
    %989 = vdwg.mxu0
    %990 = vmatprep.subr.bf16.mxu0 0
    %991 = vmatpush1.bf16.msra.mxu0 0
    %992 = vmatprep.subr.bf16.mxu0 0
    %993 = vmatpush1.bf16.msra.mxu0 0
    %994 = vmatprep.subr.bf16.mxu0 0
    %995 = vmatpush1.bf16.msra.mxu0 0
    %996 = vmatprep.subr.bf16.mxu0 0
    %997 = vmatpush1.bf16.msra.mxu0 0
    %998 = vmatprep.subr.bf16.mxu0 0
    %999 = vmatpush1.bf16.msra.mxu0 0
    %1000 = vmatprep.subr.bf16.mxu0 0
    %1001 = vmatpush1.bf16.msra.mxu0 0
    %1002 = vmatprep.subr.bf16.mxu0 %v501
    %1003 = vmatpush1.bf16.msra.mxu0 %v500
    %1004 = vmatprep.subr.bf16.mxu0 %v469
    %1005 = vmatpush1.bf16.msra.mxu0 %v468
    %1006 = vmatprep.subr.bf16.mxu0 0
    %1007 = vmatpush2.bf16.msra.mxu0 0
    %1008 = vmatprep.subr.bf16.mxu0 0
    %1009 = vmatpush2.bf16.msra.mxu0 0
    %1010 = vmatprep.subr.bf16.mxu0 0
    %1011 = vmatpush2.bf16.msra.mxu0 0
    %1012 = vmatprep.subr.bf16.mxu0 0
    %1013 = vmatpush2.bf16.msra.mxu0 0
    %1014 = vmatprep.subr.bf16.mxu0 0
    %1015 = vmatpush2.bf16.msra.mxu0 0
    %1016 = vmatprep.subr.bf16.mxu0 0
    %1017 = vmatpush2.bf16.msra.mxu0 0
    %1018 = vmatprep.subr.bf16.mxu0 0
    %1019 = vmatpush2.bf16.msra.mxu0 0
    %1020 = vmatprep.subr.bf16.mxu0 0
    %1021 = vmatpush2.bf16.msra.mxu0 0
    %1022 = vmatprep.mubr.bf16.mxu0 0
    %1023 = vmatmul.mubr.bf16.gmra.mxu0 %v578
    %v1024 = vpop.f32.mrf.mxu0
    %v1025 = vadd.f32 %v179, %v1024
    %v1026 = vpop.f32.mrf.mxu0
    %v1027 = vadd.f32 %v183, %v1026
    %v1028 = vpop.f32.mrf.mxu0
    %v1029 = vpop.f32.mrf.mxu0
    %1030 = vdwg.mxu0
    %1031 = vmatprep.subr.bf16.mxu0 0
    %1032 = vmatpush1.bf16.msra.mxu0 0
    %1033 = vmatprep.subr.bf16.mxu0 0
    %1034 = vmatpush1.bf16.msra.mxu0 0
    %1035 = vmatprep.subr.bf16.mxu0 0
    %1036 = vmatpush1.bf16.msra.mxu0 0
    %1037 = vmatprep.subr.bf16.mxu0 0
    %1038 = vmatpush1.bf16.msra.mxu0 0
    %1039 = vmatprep.subr.bf16.mxu0 0
    %1040 = vmatpush1.bf16.msra.mxu0 0
    %1041 = vmatprep.subr.bf16.mxu0 0
    %1042 = vmatpush1.bf16.msra.mxu0 0
    %1043 = vmatprep.subr.bf16.mxu0 %v503
    %1044 = vmatpush1.bf16.msra.mxu0 %v502
    %1045 = vmatprep.subr.bf16.mxu0 %v471
    %1046 = vmatpush1.bf16.msra.mxu0 %v470
    %1047 = vmatprep.subr.bf16.mxu0 0
    %1048 = vmatpush2.bf16.msra.mxu0 0
    %1049 = vmatprep.subr.bf16.mxu0 0
    %1050 = vmatpush2.bf16.msra.mxu0 0
    %1051 = vmatprep.subr.bf16.mxu0 0
    %1052 = vmatpush2.bf16.msra.mxu0 0
    %1053 = vmatprep.subr.bf16.mxu0 0
    %1054 = vmatpush2.bf16.msra.mxu0 0
    %1055 = vmatprep.subr.bf16.mxu0 0
    %1056 = vmatpush2.bf16.msra.mxu0 0
    %1057 = vmatprep.subr.bf16.mxu0 0
    %1058 = vmatpush2.bf16.msra.mxu0 0
    %1059 = vmatprep.subr.bf16.mxu0 0
    %1060 = vmatpush2.bf16.msra.mxu0 0
    %1061 = vmatprep.subr.bf16.mxu0 0
    %1062 = vmatpush2.bf16.msra.mxu0 0
    %1063 = vmatprep.mubr.bf16.mxu0 0
    %1064 = vmatmul.mubr.bf16.gmra.mxu0 %v578
    %v1065 = vpop.f32.mrf.mxu0
    %v1066 = vadd.f32 %v187, %v1065
    %v1067 = vpop.f32.mrf.mxu0
    %v1068 = vadd.f32 %v191, %v1067
    %v1069 = vpop.f32.mrf.mxu0
    %v1070 = vpop.f32.mrf.mxu0
    %1071 = vdwg.mxu0
    %1072 = vmatprep.subr.bf16.mxu0 0
    %1073 = vmatpush1.bf16.msra.mxu0 0
    %1074 = vmatprep.subr.bf16.mxu0 0
    %1075 = vmatpush1.bf16.msra.mxu0 0
    %1076 = vmatprep.subr.bf16.mxu0 0
    %1077 = vmatpush1.bf16.msra.mxu0 0
    %1078 = vmatprep.subr.bf16.mxu0 0
    %1079 = vmatpush1.bf16.msra.mxu0 0
    %1080 = vmatprep.subr.bf16.mxu0 0
    %1081 = vmatpush1.bf16.msra.mxu0 0
    %1082 = vmatprep.subr.bf16.mxu0 0
    %1083 = vmatpush1.bf16.msra.mxu0 0
    %1084 = vmatprep.subr.bf16.mxu0 %v505
    %1085 = vmatpush1.bf16.msra.mxu0 %v504
    %1086 = vmatprep.subr.bf16.mxu0 %v473
    %1087 = vmatpush1.bf16.msra.mxu0 %v472
    %1088 = vmatprep.subr.bf16.mxu0 0
    %1089 = vmatpush2.bf16.msra.mxu0 0
    %1090 = vmatprep.subr.bf16.mxu0 0
    %1091 = vmatpush2.bf16.msra.mxu0 0
    %1092 = vmatprep.subr.bf16.mxu0 0
    %1093 = vmatpush2.bf16.msra.mxu0 0
    %1094 = vmatprep.subr.bf16.mxu0 0
    %1095 = vmatpush2.bf16.msra.mxu0 0
    %1096 = vmatprep.subr.bf16.mxu0 0
    %1097 = vmatpush2.bf16.msra.mxu0 0
    %1098 = vmatprep.subr.bf16.mxu0 0
    %1099 = vmatpush2.bf16.msra.mxu0 0
    %1100 = vmatprep.subr.bf16.mxu0 0
    %1101 = vmatpush2.bf16.msra.mxu0 0
    %1102 = vmatprep.subr.bf16.mxu0 0
    %1103 = vmatpush2.bf16.msra.mxu0 0
    %1104 = vmatprep.mubr.bf16.mxu0 0
    %1105 = vmatmul.mubr.bf16.gmra.mxu0 %v578
    %v1106 = vpop.f32.mrf.mxu0
    %v1107 = vadd.f32 %v195, %v1106
    %v1108 = vpop.f32.mrf.mxu0
    %v1109 = vadd.f32 %v199, %v1108
    %v1110 = vpop.f32.mrf.mxu0
    %v1111 = vpop.f32.mrf.mxu0
    %1112 = vdwg.mxu0
    %1113 = vmatprep.subr.bf16.mxu0 0
    %1114 = vmatpush1.bf16.msra.mxu0 0
    %1115 = vmatprep.subr.bf16.mxu0 0
    %1116 = vmatpush1.bf16.msra.mxu0 0
    %1117 = vmatprep.subr.bf16.mxu0 0
    %1118 = vmatpush1.bf16.msra.mxu0 0
    %1119 = vmatprep.subr.bf16.mxu0 0
    %1120 = vmatpush1.bf16.msra.mxu0 0
    %1121 = vmatprep.subr.bf16.mxu0 0
    %1122 = vmatpush1.bf16.msra.mxu0 0
    %1123 = vmatprep.subr.bf16.mxu0 0
    %1124 = vmatpush1.bf16.msra.mxu0 0
    %1125 = vmatprep.subr.bf16.mxu0 %v507
    %1126 = vmatpush1.bf16.msra.mxu0 %v506
    %1127 = vmatprep.subr.bf16.mxu0 %v475
    %1128 = vmatpush1.bf16.msra.mxu0 %v474
    %1129 = vmatprep.subr.bf16.mxu0 0
    %1130 = vmatpush2.bf16.msra.mxu0 0
    %1131 = vmatprep.subr.bf16.mxu0 0
    %1132 = vmatpush2.bf16.msra.mxu0 0
    %1133 = vmatprep.subr.bf16.mxu0 0
    %1134 = vmatpush2.bf16.msra.mxu0 0
    %1135 = vmatprep.subr.bf16.mxu0 0
    %1136 = vmatpush2.bf16.msra.mxu0 0
    %1137 = vmatprep.subr.bf16.mxu0 0
    %1138 = vmatpush2.bf16.msra.mxu0 0
    %1139 = vmatprep.subr.bf16.mxu0 0
    %1140 = vmatpush2.bf16.msra.mxu0 0
    %1141 = vmatprep.subr.bf16.mxu0 0
    %1142 = vmatpush2.bf16.msra.mxu0 0
    %1143 = vmatprep.subr.bf16.mxu0 0
    %1144 = vmatpush2.bf16.msra.mxu0 0
    %1145 = vmatprep.mubr.bf16.mxu0 0
    %1146 = vmatmul.mubr.bf16.gmra.mxu0 %v578
    %v1147 = vpop.f32.mrf.mxu0
    %v1148 = vadd.f32 %v203, %v1147
    %v1149 = vpop.f32.mrf.mxu0
    %v1150 = vadd.f32 %v207, %v1149
    %v1151 = vpop.f32.mrf.mxu0
    %v1152 = vpop.f32.mrf.mxu0
    %1153 = vdwg.mxu0
    %1154 = vmatprep.subr.bf16.mxu0 0
    %1155 = vmatpush1.bf16.msra.mxu0 0
    %1156 = vmatprep.subr.bf16.mxu0 0
    %1157 = vmatpush1.bf16.msra.mxu0 0
    %1158 = vmatprep.subr.bf16.mxu0 0
    %1159 = vmatpush1.bf16.msra.mxu0 0
    %1160 = vmatprep.subr.bf16.mxu0 0
    %1161 = vmatpush1.bf16.msra.mxu0 0
    %1162 = vmatprep.subr.bf16.mxu0 0
    %1163 = vmatpush1.bf16.msra.mxu0 0
    %1164 = vmatprep.subr.bf16.mxu0 0
    %1165 = vmatpush1.bf16.msra.mxu0 0
    %1166 = vmatprep.subr.bf16.mxu0 %v509
    %1167 = vmatpush1.bf16.msra.mxu0 %v508
    %1168 = vmatprep.subr.bf16.mxu0 %v477
    %1169 = vmatpush1.bf16.msra.mxu0 %v476
    %1170 = vmatprep.subr.bf16.mxu0 0
    %1171 = vmatpush2.bf16.msra.mxu0 0
    %1172 = vmatprep.subr.bf16.mxu0 0
    %1173 = vmatpush2.bf16.msra.mxu0 0
    %1174 = vmatprep.subr.bf16.mxu0 0
    %1175 = vmatpush2.bf16.msra.mxu0 0
    %1176 = vmatprep.subr.bf16.mxu0 0
    %1177 = vmatpush2.bf16.msra.mxu0 0
    %1178 = vmatprep.subr.bf16.mxu0 0
    %1179 = vmatpush2.bf16.msra.mxu0 0
    %1180 = vmatprep.subr.bf16.mxu0 0
    %1181 = vmatpush2.bf16.msra.mxu0 0
    %1182 = vmatprep.subr.bf16.mxu0 0
    %1183 = vmatpush2.bf16.msra.mxu0 0
    %1184 = vmatprep.subr.bf16.mxu0 0
    %1185 = vmatpush2.bf16.msra.mxu0 0
    %1186 = vmatprep.mubr.bf16.mxu0 0
    %1187 = vmatmul.mubr.bf16.gmra.mxu0 %v578
    %v1188 = vpop.f32.mrf.mxu0
    %v1189 = vadd.f32 %v211, %v1188
    %v1190 = vpop.f32.mrf.mxu0
    %v1191 = vadd.f32 %v215, %v1190
    %v1192 = vpop.f32.mrf.mxu0
    %v1193 = vpop.f32.mrf.mxu0
    %1194 = vdwg.mxu0
    %1195 = vmatprep.subr.bf16.mxu0 0
    %1196 = vmatpush1.bf16.msra.mxu0 0
    %1197 = vmatprep.subr.bf16.mxu0 0
    %1198 = vmatpush1.bf16.msra.mxu0 0
    %1199 = vmatprep.subr.bf16.mxu0 0
    %1200 = vmatpush1.bf16.msra.mxu0 0
    %1201 = vmatprep.subr.bf16.mxu0 0
    %1202 = vmatpush1.bf16.msra.mxu0 0
    %1203 = vmatprep.subr.bf16.mxu0 0
    %1204 = vmatpush1.bf16.msra.mxu0 0
    %1205 = vmatprep.subr.bf16.mxu0 0
    %1206 = vmatpush1.bf16.msra.mxu0 0
    %1207 = vmatprep.subr.bf16.mxu0 %v511
    %1208 = vmatpush1.bf16.msra.mxu0 %v510
    %1209 = vmatprep.subr.bf16.mxu0 %v479
    %1210 = vmatpush1.bf16.msra.mxu0 %v478
    %1211 = vmatprep.subr.bf16.mxu0 0
    %1212 = vmatpush2.bf16.msra.mxu0 0
    %1213 = vmatprep.subr.bf16.mxu0 0
    %1214 = vmatpush2.bf16.msra.mxu0 0
    %1215 = vmatprep.subr.bf16.mxu0 0
    %1216 = vmatpush2.bf16.msra.mxu0 0
    %1217 = vmatprep.subr.bf16.mxu0 0
    %1218 = vmatpush2.bf16.msra.mxu0 0
    %1219 = vmatprep.subr.bf16.mxu0 0
    %1220 = vmatpush2.bf16.msra.mxu0 0
    %1221 = vmatprep.subr.bf16.mxu0 0
    %1222 = vmatpush2.bf16.msra.mxu0 0
    %1223 = vmatprep.subr.bf16.mxu0 0
    %1224 = vmatpush2.bf16.msra.mxu0 0
    %1225 = vmatprep.subr.bf16.mxu0 0
    %1226 = vmatpush2.bf16.msra.mxu0 0
    %1227 = vmatprep.mubr.bf16.mxu0 0
    %1228 = vmatmul.mubr.bf16.gmra.mxu0 %v578
    %v1229 = vpop.f32.mrf.mxu0
    %v1230 = vadd.f32 %v219, %v1229
    %v1231 = vpop.f32.mrf.mxu0
    %v1232 = vadd.f32 %v223, %v1231
    %v1233 = vpop.f32.mrf.mxu0
    %v1234 = vpop.f32.mrf.mxu0
    %1235 = vdwg.mxu0
    %v1236 = vmax.f32 %v615, 0.0
    %v1237 = vmax.f32 %v617, 0.0
    %v1238 = vmax.f32 %v656, 0.0
    %v1239 = vmax.f32 %v658, 0.0
    %v1240 = vmax.f32 %v697, 0.0
    %v1241 = vmax.f32 %v699, 0.0
    %v1242 = vmax.f32 %v738, 0.0
    %v1243 = vmax.f32 %v740, 0.0
    %v1244 = vmax.f32 %v779, 0.0
    %v1245 = vmax.f32 %v781, 0.0
    %v1246 = vmax.f32 %v820, 0.0
    %v1247 = vmax.f32 %v822, 0.0
    %v1248 = vmax.f32 %v861, 0.0
    %v1249 = vmax.f32 %v863, 0.0
    %v1250 = vmax.f32 %v902, 0.0
    %v1251 = vmax.f32 %v904, 0.0
    %v1252 = vmax.f32 %v943, 0.0
    %v1253 = vmax.f32 %v945, 0.0
    %v1254 = vmax.f32 %v984, 0.0
    %v1255 = vmax.f32 %v986, 0.0
    %v1256 = vmax.f32 %v1025, 0.0
    %v1257 = vmax.f32 %v1027, 0.0
    %v1258 = vmax.f32 %v1066, 0.0
    %v1259 = vmax.f32 %v1068, 0.0
    %v1260 = vmax.f32 %v1107, 0.0
    %v1261 = vmax.f32 %v1109, 0.0
    %v1262 = vmax.f32 %v1148, 0.0
    %v1263 = vmax.f32 %v1150, 0.0
    %v1264 = vmax.f32 %v1189, 0.0
    %v1265 = vmax.f32 %v1191, 0.0
    %v1266 = vmax.f32 %v1230, 0.0
    %v1267 = vmax.f32 %v1232, 0.0
    %v1268 = vpack.c.bf16 %v1236, %v1236
    %v1269 = vpack.c.bf16 %v1237, %v1237
    %v1270 = vpack.c.bf16 %v1238, %v1238
    %v1271 = vpack.c.bf16 %v1239, %v1239
    %v1272 = vpack.c.bf16 %v1240, %v1240
    %v1273 = vpack.c.bf16 %v1241, %v1241
    %v1274 = vpack.c.bf16 %v1242, %v1242
    %v1275 = vpack.c.bf16 %v1243, %v1243
    %v1276 = vpack.c.bf16 %v1244, %v1244
    %v1277 = vpack.c.bf16 %v1245, %v1245
    %v1278 = vpack.c.bf16 %v1246, %v1246
    %v1279 = vpack.c.bf16 %v1247, %v1247
    %v1280 = vpack.c.bf16 %v1248, %v1248
    %v1281 = vpack.c.bf16 %v1249, %v1249
    %v1282 = vpack.c.bf16 %v1250, %v1250
    %v1283 = vpack.c.bf16 %v1251, %v1251
    %v1284 = vpack.c.bf16 %v1252, %v1252
    %v1285 = vpack.c.bf16 %v1253, %v1253
    %v1286 = vpack.c.bf16 %v1254, %v1254
    %v1287 = vpack.c.bf16 %v1255, %v1255
    %v1288 = vpack.c.bf16 %v1256, %v1256
    %v1289 = vpack.c.bf16 %v1257, %v1257
    %v1290 = vpack.c.bf16 %v1258, %v1258
    %v1291 = vpack.c.bf16 %v1259, %v1259
    %v1292 = vpack.c.bf16 %v1260, %v1260
    %v1293 = vpack.c.bf16 %v1261, %v1261
    %v1294 = vpack.c.bf16 %v1262, %v1262
    %v1295 = vpack.c.bf16 %v1263, %v1263
    %v1296 = vpack.c.bf16 %v1264, %v1264
    %v1297 = vpack.c.bf16 %v1265, %v1265
    %v1298 = vpack.c.bf16 %v1266, %v1266
    %v1299 = vpack.c.bf16 %v1267, %v1267
    %v1300 = vld [vmem:[%s3] sm:$0xf]
    %v1301 = vld [vmem:[%s3 + $0x4] sm:$0xf]
    %v1302 = vld [vmem:[%s3 + $0x8] sm:$0xf]
    %v1303 = vld [vmem:[%s3 + $0xc] sm:$0xf]
    %v1304 = vld [vmem:[%s3 + $0x10] sm:$0xf]
    %v1305 = vld [vmem:[%s3 + $0x14] sm:$0xf]
    %v1306 = vld [vmem:[%s3 + $0x18] sm:$0xf]
    %v1307 = vld [vmem:[%s3 + $0x1c] sm:$0xf]
    %v1308 = vld [vmem:[%s3 + $0x20] sm:$0xf]
    %v1309 = vld [vmem:[%s3 + $0x24] sm:$0xf]
    %v1310 = vld [vmem:[%s3 + $0x28] sm:$0xf]
    %v1311 = vld [vmem:[%s3 + $0x2c] sm:$0xf]
    %v1312 = vld [vmem:[%s3 + $0x30] sm:$0xf]
    %v1313 = vld [vmem:[%s3 + $0x34] sm:$0xf]
    %v1314 = vld [vmem:[%s3 + $0x38] sm:$0xf]
    %v1315 = vld [vmem:[%s3 + $0x3c] sm:$0xf]
    %v1316 = vld [vmem:[%s3 + $0x40] sm:$0xf]
    %v1317 = vld [vmem:[%s3 + $0x44] sm:$0xf]
    %v1318 = vld [vmem:[%s3 + $0x48] sm:$0xf]
    %v1319 = vld [vmem:[%s3 + $0x4c] sm:$0xf]
    %v1320 = vld [vmem:[%s3 + $0x50] sm:$0xf]
    %v1321 = vld [vmem:[%s3 + $0x54] sm:$0xf]
    %v1322 = vld [vmem:[%s3 + $0x58] sm:$0xf]
    %v1323 = vld [vmem:[%s3 + $0x5c] sm:$0xf]
    %v1324 = vld [vmem:[%s3 + $0x60] sm:$0xf]
    %v1325 = vld [vmem:[%s3 + $0x64] sm:$0xf]
    %v1326 = vld [vmem:[%s3 + $0x68] sm:$0xf]
    %v1327 = vld [vmem:[%s3 + $0x6c] sm:$0xf]
    %v1328 = vld [vmem:[%s3 + $0x70] sm:$0xf]
    %v1329 = vld [vmem:[%s3 + $0x74] sm:$0xf]
    %v1330 = vld [vmem:[%s3 + $0x78] sm:$0xf]
    %v1331 = vld [vmem:[%s3 + $0x7c] sm:$0xf]
    %v1332 = vld [vmem:[%s3 + $0x80] sm:$0xf]
    %v1333 = vld [vmem:[%s3 + $0x84] sm:$0xf]
    %v1334 = vld [vmem:[%s3 + $0x88] sm:$0xf]
    %v1335 = vld [vmem:[%s3 + $0x8c] sm:$0xf]
    %v1336 = vld [vmem:[%s3 + $0x90] sm:$0xf]
    %v1337 = vld [vmem:[%s3 + $0x94] sm:$0xf]
    %v1338 = vld [vmem:[%s3 + $0x98] sm:$0xf]
    %v1339 = vld [vmem:[%s3 + $0x9c] sm:$0xf]
    %v1340 = vld [vmem:[%s3 + $0xa0] sm:$0xf]
    %v1341 = vld [vmem:[%s3 + $0xa4] sm:$0xf]
    %v1342 = vld [vmem:[%s3 + $0xa8] sm:$0xf]
    %v1343 = vld [vmem:[%s3 + $0xac] sm:$0xf]
    %v1344 = vld [vmem:[%s3 + $0xb0] sm:$0xf]
    %v1345 = vld [vmem:[%s3 + $0xb4] sm:$0xf]
    %v1346 = vld [vmem:[%s3 + $0xb8] sm:$0xf]
    %v1347 = vld [vmem:[%s3 + $0xbc] sm:$0xf]
    %v1348 = vld [vmem:[%s3 + $0xc0] sm:$0xf]
    %v1349 = vld [vmem:[%s3 + $0xc4] sm:$0xf]
    %v1350 = vld [vmem:[%s3 + $0xc8] sm:$0xf]
    %v1351 = vld [vmem:[%s3 + $0xcc] sm:$0xf]
    %v1352 = vld [vmem:[%s3 + $0xd0] sm:$0xf]
    %v1353 = vld [vmem:[%s3 + $0xd4] sm:$0xf]
    %v1354 = vld [vmem:[%s3 + $0xd8] sm:$0xf]
    %v1355 = vld [vmem:[%s3 + $0xdc] sm:$0xf]
    %v1356 = vld [vmem:[%s3 + $0xe0] sm:$0xf]
    %v1357 = vld [vmem:[%s3 + $0xe4] sm:$0xf]
    %v1358 = vld [vmem:[%s3 + $0xe8] sm:$0xf]
    %v1359 = vld [vmem:[%s3 + $0xec] sm:$0xf]
    %v1360 = vld [vmem:[%s3 + $0xf0] sm:$0xf]
    %v1361 = vld [vmem:[%s3 + $0xf4] sm:$0xf]
    %v1362 = vld [vmem:[%s3 + $0xf8] sm:$0xf]
    %v1363 = vld [vmem:[%s3 + $0xfc] sm:$0xf]
    %v1364 = vld [vmem:[%s3 + $0x100] sm:$0xf]
    %v1365 = vld [vmem:[%s3 + $0x104] sm:$0xf]
    %v1366 = vld [vmem:[%s3 + $0x108] sm:$0xf]
    %v1367 = vld [vmem:[%s3 + $0x10c] sm:$0xf]
    %v1368 = vld [vmem:[%s3 + $0x110] sm:$0xf]
    %v1369 = vld [vmem:[%s3 + $0x114] sm:$0xf]
    %v1370 = vld [vmem:[%s3 + $0x118] sm:$0xf]
    %v1371 = vld [vmem:[%s3 + $0x11c] sm:$0xf]
    %v1372 = vld [vmem:[%s3 + $0x120] sm:$0xf]
    %v1373 = vld [vmem:[%s3 + $0x124] sm:$0xf]
    %v1374 = vld [vmem:[%s3 + $0x128] sm:$0xf]
    %v1375 = vld [vmem:[%s3 + $0x12c] sm:$0xf]
    %v1376 = vld [vmem:[%s3 + $0x130] sm:$0xf]
    %v1377 = vld [vmem:[%s3 + $0x134] sm:$0xf]
    %v1378 = vld [vmem:[%s3 + $0x138] sm:$0xf]
    %v1379 = vld [vmem:[%s3 + $0x13c] sm:$0xf]
    %v1380 = vld [vmem:[%s3 + $0x140] sm:$0xf]
    %v1381 = vld [vmem:[%s3 + $0x144] sm:$0xf]
    %v1382 = vld [vmem:[%s3 + $0x148] sm:$0xf]
    %v1383 = vld [vmem:[%s3 + $0x14c] sm:$0xf]
    %v1384 = vld [vmem:[%s3 + $0x150] sm:$0xf]
    %v1385 = vld [vmem:[%s3 + $0x154] sm:$0xf]
    %v1386 = vld [vmem:[%s3 + $0x158] sm:$0xf]
    %v1387 = vld [vmem:[%s3 + $0x15c] sm:$0xf]
    %v1388 = vld [vmem:[%s3 + $0x160] sm:$0xf]
    %v1389 = vld [vmem:[%s3 + $0x164] sm:$0xf]
    %v1390 = vld [vmem:[%s3 + $0x168] sm:$0xf]
    %v1391 = vld [vmem:[%s3 + $0x16c] sm:$0xf]
    %v1392 = vld [vmem:[%s3 + $0x170] sm:$0xf]
    %v1393 = vld [vmem:[%s3 + $0x174] sm:$0xf]
    %v1394 = vld [vmem:[%s3 + $0x178] sm:$0xf]
    %v1395 = vld [vmem:[%s3 + $0x17c] sm:$0xf]
    %v1396 = vld [vmem:[%s3 + $0x180] sm:$0xf]
    %v1397 = vld [vmem:[%s3 + $0x184] sm:$0xf]
    %v1398 = vld [vmem:[%s3 + $0x188] sm:$0xf]
    %v1399 = vld [vmem:[%s3 + $0x18c] sm:$0xf]
    %v1400 = vld [vmem:[%s3 + $0x190] sm:$0xf]
    %v1401 = vld [vmem:[%s3 + $0x194] sm:$0xf]
    %v1402 = vld [vmem:[%s3 + $0x198] sm:$0xf]
    %v1403 = vld [vmem:[%s3 + $0x19c] sm:$0xf]
    %v1404 = vld [vmem:[%s3 + $0x1a0] sm:$0xf]
    %v1405 = vld [vmem:[%s3 + $0x1a4] sm:$0xf]
    %v1406 = vld [vmem:[%s3 + $0x1a8] sm:$0xf]
    %v1407 = vld [vmem:[%s3 + $0x1ac] sm:$0xf]
    %v1408 = vld [vmem:[%s3 + $0x1b0] sm:$0xf]
    %v1409 = vld [vmem:[%s3 + $0x1b4] sm:$0xf]
    %v1410 = vld [vmem:[%s3 + $0x1b8] sm:$0xf]
    %v1411 = vld [vmem:[%s3 + $0x1bc] sm:$0xf]
    %v1412 = vld [vmem:[%s3 + $0x1c0] sm:$0xf]
    %v1413 = vld [vmem:[%s3 + $0x1c4] sm:$0xf]
    %v1414 = vld [vmem:[%s3 + $0x1c8] sm:$0xf]
    %v1415 = vld [vmem:[%s3 + $0x1cc] sm:$0xf]
    %v1416 = vld [vmem:[%s3 + $0x1d0] sm:$0xf]
    %v1417 = vld [vmem:[%s3 + $0x1d4] sm:$0xf]
    %v1418 = vld [vmem:[%s3 + $0x1d8] sm:$0xf]
    %v1419 = vld [vmem:[%s3 + $0x1dc] sm:$0xf]
    %v1420 = vld [vmem:[%s3 + $0x1e0] sm:$0xf]
    %v1421 = vld [vmem:[%s3 + $0x1e4] sm:$0xf]
    %v1422 = vld [vmem:[%s3 + $0x1e8] sm:$0xf]
    %v1423 = vld [vmem:[%s3 + $0x1ec] sm:$0xf]
    %v1424 = vld [vmem:[%s3 + $0x1f0] sm:$0xf]
    %v1425 = vld [vmem:[%s3 + $0x1f4] sm:$0xf]
    %v1426 = vld [vmem:[%s3 + $0x1f8] sm:$0xf]
    %v1427 = vld [vmem:[%s3 + $0x1fc] sm:$0xf]
    %v1428 = vld [vmem:[%s3 + $0x200] sm:$0xf]
    %v1429 = vld [vmem:[%s3 + $0x204] sm:$0xf]
    %v1430 = vld [vmem:[%s3 + $0x208] sm:$0xf]
    %v1431 = vld [vmem:[%s3 + $0x20c] sm:$0xf]
    %v1432 = vld [vmem:[%s3 + $0x210] sm:$0xf]
    %v1433 = vld [vmem:[%s3 + $0x214] sm:$0xf]
    %v1434 = vld [vmem:[%s3 + $0x218] sm:$0xf]
    %v1435 = vld [vmem:[%s3 + $0x21c] sm:$0xf]
    %v1436 = vld [vmem:[%s3 + $0x220] sm:$0xf]
    %v1437 = vld [vmem:[%s3 + $0x224] sm:$0xf]
    %v1438 = vld [vmem:[%s3 + $0x228] sm:$0xf]
    %v1439 = vld [vmem:[%s3 + $0x22c] sm:$0xf]
    %v1440 = vld [vmem:[%s3 + $0x230] sm:$0xf]
    %v1441 = vld [vmem:[%s3 + $0x234] sm:$0xf]
    %v1442 = vld [vmem:[%s3 + $0x238] sm:$0xf]
    %v1443 = vld [vmem:[%s3 + $0x23c] sm:$0xf]
    %v1444 = vld [vmem:[%s3 + $0x240] sm:$0xf]
    %v1445 = vld [vmem:[%s3 + $0x244] sm:$0xf]
    %v1446 = vld [vmem:[%s3 + $0x248] sm:$0xf]
    %v1447 = vld [vmem:[%s3 + $0x24c] sm:$0xf]
    %v1448 = vld [vmem:[%s3 + $0x250] sm:$0xf]
    %v1449 = vld [vmem:[%s3 + $0x254] sm:$0xf]
    %v1450 = vld [vmem:[%s3 + $0x258] sm:$0xf]
    %v1451 = vld [vmem:[%s3 + $0x25c] sm:$0xf]
    %v1452 = vld [vmem:[%s3 + $0x260] sm:$0xf]
    %v1453 = vld [vmem:[%s3 + $0x264] sm:$0xf]
    %v1454 = vld [vmem:[%s3 + $0x268] sm:$0xf]
    %v1455 = vld [vmem:[%s3 + $0x26c] sm:$0xf]
    %v1456 = vld [vmem:[%s3 + $0x270] sm:$0xf]
    %v1457 = vld [vmem:[%s3 + $0x274] sm:$0xf]
    %v1458 = vld [vmem:[%s3 + $0x278] sm:$0xf]
    %v1459 = vld [vmem:[%s3 + $0x27c] sm:$0xf]
    %v1460 = vld [vmem:[%s3 + $0x280] sm:$0xf]
    %v1461 = vld [vmem:[%s3 + $0x284] sm:$0xf]
    %v1462 = vld [vmem:[%s3 + $0x288] sm:$0xf]
    %v1463 = vld [vmem:[%s3 + $0x28c] sm:$0xf]
    %v1464 = vld [vmem:[%s3 + $0x290] sm:$0xf]
    %v1465 = vld [vmem:[%s3 + $0x294] sm:$0xf]
    %v1466 = vld [vmem:[%s3 + $0x298] sm:$0xf]
    %v1467 = vld [vmem:[%s3 + $0x29c] sm:$0xf]
    %v1468 = vld [vmem:[%s3 + $0x2a0] sm:$0xf]
    %v1469 = vld [vmem:[%s3 + $0x2a4] sm:$0xf]
    %v1470 = vld [vmem:[%s3 + $0x2a8] sm:$0xf]
    %v1471 = vld [vmem:[%s3 + $0x2ac] sm:$0xf]
    %v1472 = vld [vmem:[%s3 + $0x2b0] sm:$0xf]
    %v1473 = vld [vmem:[%s3 + $0x2b4] sm:$0xf]
    %v1474 = vld [vmem:[%s3 + $0x2b8] sm:$0xf]
    %v1475 = vld [vmem:[%s3 + $0x2bc] sm:$0xf]
    %v1476 = vld [vmem:[%s3 + $0x2c0] sm:$0xf]
    %v1477 = vld [vmem:[%s3 + $0x2c4] sm:$0xf]
    %v1478 = vld [vmem:[%s3 + $0x2c8] sm:$0xf]
    %v1479 = vld [vmem:[%s3 + $0x2cc] sm:$0xf]
    %v1480 = vld [vmem:[%s3 + $0x2d0] sm:$0xf]
    %v1481 = vld [vmem:[%s3 + $0x2d4] sm:$0xf]
    %v1482 = vld [vmem:[%s3 + $0x2d8] sm:$0xf]
    %v1483 = vld [vmem:[%s3 + $0x2dc] sm:$0xf]
    %v1484 = vld [vmem:[%s3 + $0x2e0] sm:$0xf]
    %v1485 = vld [vmem:[%s3 + $0x2e4] sm:$0xf]
    %v1486 = vld [vmem:[%s3 + $0x2e8] sm:$0xf]
    %v1487 = vld [vmem:[%s3 + $0x2ec] sm:$0xf]
    %v1488 = vld [vmem:[%s3 + $0x2f0] sm:$0xf]
    %v1489 = vld [vmem:[%s3 + $0x2f4] sm:$0xf]
    %v1490 = vld [vmem:[%s3 + $0x2f8] sm:$0xf]
    %v1491 = vld [vmem:[%s3 + $0x2fc] sm:$0xf]
    %v1492 = vld [vmem:[%s3 + $0x300] sm:$0xf]
    %v1493 = vld [vmem:[%s3 + $0x304] sm:$0xf]
    %v1494 = vld [vmem:[%s3 + $0x308] sm:$0xf]
    %v1495 = vld [vmem:[%s3 + $0x30c] sm:$0xf]
    %v1496 = vld [vmem:[%s3 + $0x310] sm:$0xf]
    %v1497 = vld [vmem:[%s3 + $0x314] sm:$0xf]
    %v1498 = vld [vmem:[%s3 + $0x318] sm:$0xf]
    %v1499 = vld [vmem:[%s3 + $0x31c] sm:$0xf]
    %v1500 = vld [vmem:[%s3 + $0x320] sm:$0xf]
    %v1501 = vld [vmem:[%s3 + $0x324] sm:$0xf]
    %v1502 = vld [vmem:[%s3 + $0x328] sm:$0xf]
    %v1503 = vld [vmem:[%s3 + $0x32c] sm:$0xf]
    %v1504 = vld [vmem:[%s3 + $0x330] sm:$0xf]
    %v1505 = vld [vmem:[%s3 + $0x334] sm:$0xf]
    %v1506 = vld [vmem:[%s3 + $0x338] sm:$0xf]
    %v1507 = vld [vmem:[%s3 + $0x33c] sm:$0xf]
    %v1508 = vld [vmem:[%s3 + $0x340] sm:$0xf]
    %v1509 = vld [vmem:[%s3 + $0x344] sm:$0xf]
    %v1510 = vld [vmem:[%s3 + $0x348] sm:$0xf]
    %v1511 = vld [vmem:[%s3 + $0x34c] sm:$0xf]
    %v1512 = vld [vmem:[%s3 + $0x350] sm:$0xf]
    %v1513 = vld [vmem:[%s3 + $0x354] sm:$0xf]
    %v1514 = vld [vmem:[%s3 + $0x358] sm:$0xf]
    %v1515 = vld [vmem:[%s3 + $0x35c] sm:$0xf]
    %v1516 = vld [vmem:[%s3 + $0x360] sm:$0xf]
    %v1517 = vld [vmem:[%s3 + $0x364] sm:$0xf]
    %v1518 = vld [vmem:[%s3 + $0x368] sm:$0xf]
    %v1519 = vld [vmem:[%s3 + $0x36c] sm:$0xf]
    %v1520 = vld [vmem:[%s3 + $0x370] sm:$0xf]
    %v1521 = vld [vmem:[%s3 + $0x374] sm:$0xf]
    %v1522 = vld [vmem:[%s3 + $0x378] sm:$0xf]
    %v1523 = vld [vmem:[%s3 + $0x37c] sm:$0xf]
    %v1524 = vld [vmem:[%s3 + $0x380] sm:$0xf]
    %v1525 = vld [vmem:[%s3 + $0x384] sm:$0xf]
    %v1526 = vld [vmem:[%s3 + $0x388] sm:$0xf]
    %v1527 = vld [vmem:[%s3 + $0x38c] sm:$0xf]
    %v1528 = vld [vmem:[%s3 + $0x390] sm:$0xf]
    %v1529 = vld [vmem:[%s3 + $0x394] sm:$0xf]
    %v1530 = vld [vmem:[%s3 + $0x398] sm:$0xf]
    %v1531 = vld [vmem:[%s3 + $0x39c] sm:$0xf]
    %v1532 = vld [vmem:[%s3 + $0x3a0] sm:$0xf]
    %v1533 = vld [vmem:[%s3 + $0x3a4] sm:$0xf]
    %v1534 = vld [vmem:[%s3 + $0x3a8] sm:$0xf]
    %v1535 = vld [vmem:[%s3 + $0x3ac] sm:$0xf]
    %v1536 = vld [vmem:[%s3 + $0x3b0] sm:$0xf]
    %v1537 = vld [vmem:[%s3 + $0x3b4] sm:$0xf]
    %v1538 = vld [vmem:[%s3 + $0x3b8] sm:$0xf]
    %v1539 = vld [vmem:[%s3 + $0x3bc] sm:$0xf]
    %v1540 = vld [vmem:[%s3 + $0x3c0] sm:$0xf]
    %v1541 = vld [vmem:[%s3 + $0x3c4] sm:$0xf]
    %v1542 = vld [vmem:[%s3 + $0x3c8] sm:$0xf]
    %v1543 = vld [vmem:[%s3 + $0x3cc] sm:$0xf]
    %v1544 = vld [vmem:[%s3 + $0x3d0] sm:$0xf]
    %v1545 = vld [vmem:[%s3 + $0x3d4] sm:$0xf]
    %v1546 = vld [vmem:[%s3 + $0x3d8] sm:$0xf]
    %v1547 = vld [vmem:[%s3 + $0x3dc] sm:$0xf]
    %v1548 = vld [vmem:[%s3 + $0x3e0] sm:$0xf]
    %v1549 = vld [vmem:[%s3 + $0x3e4] sm:$0xf]
    %v1550 = vld [vmem:[%s3 + $0x3e8] sm:$0xf]
    %v1551 = vld [vmem:[%s3 + $0x3ec] sm:$0xf]
    %v1552 = vld [vmem:[%s3 + $0x3f0] sm:$0xf]
    %v1553 = vld [vmem:[%s3 + $0x3f4] sm:$0xf]
    %v1554 = vld [vmem:[%s3 + $0x3f8] sm:$0xf]
    %v1555 = vld [vmem:[%s3 + $0x3fc] sm:$0xf]
    %v1556 = vld [vmem:[%s3 + $0x400] sm:$0xf]
    %v1557 = vld [vmem:[%s3 + $0x404] sm:$0xf]
    %v1558 = vld [vmem:[%s3 + $0x408] sm:$0xf]
    %v1559 = vld [vmem:[%s3 + $0x40c] sm:$0xf]
    %v1560 = vld [vmem:[%s3 + $0x410] sm:$0xf]
    %v1561 = vld [vmem:[%s3 + $0x414] sm:$0xf]
    %v1562 = vld [vmem:[%s3 + $0x418] sm:$0xf]
    %v1563 = vld [vmem:[%s3 + $0x41c] sm:$0xf]
    %v1564 = vld [vmem:[%s3 + $0x420] sm:$0xf]
    %v1565 = vld [vmem:[%s3 + $0x424] sm:$0xf]
    %v1566 = vld [vmem:[%s3 + $0x428] sm:$0xf]
    %v1567 = vld [vmem:[%s3 + $0x42c] sm:$0xf]
    %v1568 = vld [vmem:[%s3 + $0x430] sm:$0xf]
    %v1569 = vld [vmem:[%s3 + $0x434] sm:$0xf]
    %v1570 = vld [vmem:[%s3 + $0x438] sm:$0xf]
    %v1571 = vld [vmem:[%s3 + $0x43c] sm:$0xf]
    %v1572 = vld [vmem:[%s3 + $0x440] sm:$0xf]
    %v1573 = vld [vmem:[%s3 + $0x444] sm:$0xf]
    %v1574 = vld [vmem:[%s3 + $0x448] sm:$0xf]
    %v1575 = vld [vmem:[%s3 + $0x44c] sm:$0xf]
    %v1576 = vld [vmem:[%s3 + $0x450] sm:$0xf]
    %v1577 = vld [vmem:[%s3 + $0x454] sm:$0xf]
    %v1578 = vld [vmem:[%s3 + $0x458] sm:$0xf]
    %v1579 = vld [vmem:[%s3 + $0x45c] sm:$0xf]
    %v1580 = vld [vmem:[%s3 + $0x460] sm:$0xf]
    %v1581 = vld [vmem:[%s3 + $0x464] sm:$0xf]
    %v1582 = vld [vmem:[%s3 + $0x468] sm:$0xf]
    %v1583 = vld [vmem:[%s3 + $0x46c] sm:$0xf]
    %v1584 = vld [vmem:[%s3 + $0x470] sm:$0xf]
    %v1585 = vld [vmem:[%s3 + $0x474] sm:$0xf]
    %v1586 = vld [vmem:[%s3 + $0x478] sm:$0xf]
    %v1587 = vld [vmem:[%s3 + $0x47c] sm:$0xf]
    %v1588 = vld [vmem:[%s3 + $0x480] sm:$0xf]
    %v1589 = vld [vmem:[%s3 + $0x484] sm:$0xf]
    %v1590 = vld [vmem:[%s3 + $0x488] sm:$0xf]
    %v1591 = vld [vmem:[%s3 + $0x48c] sm:$0xf]
    %v1592 = vld [vmem:[%s3 + $0x490] sm:$0xf]
    %v1593 = vld [vmem:[%s3 + $0x494] sm:$0xf]
    %v1594 = vld [vmem:[%s3 + $0x498] sm:$0xf]
    %v1595 = vld [vmem:[%s3 + $0x49c] sm:$0xf]
    %v1596 = vld [vmem:[%s3 + $0x4a0] sm:$0xf]
    %v1597 = vld [vmem:[%s3 + $0x4a4] sm:$0xf]
    %v1598 = vld [vmem:[%s3 + $0x4a8] sm:$0xf]
    %v1599 = vld [vmem:[%s3 + $0x4ac] sm:$0xf]
    %v1600 = vld [vmem:[%s3 + $0x4b0] sm:$0xf]
    %v1601 = vld [vmem:[%s3 + $0x4b4] sm:$0xf]
    %v1602 = vld [vmem:[%s3 + $0x4b8] sm:$0xf]
    %v1603 = vld [vmem:[%s3 + $0x4bc] sm:$0xf]
    %v1604 = vld [vmem:[%s3 + $0x4c0] sm:$0xf]
    %v1605 = vld [vmem:[%s3 + $0x4c4] sm:$0xf]
    %v1606 = vld [vmem:[%s3 + $0x4c8] sm:$0xf]
    %v1607 = vld [vmem:[%s3 + $0x4cc] sm:$0xf]
    %v1608 = vld [vmem:[%s3 + $0x4d0] sm:$0xf]
    %v1609 = vld [vmem:[%s3 + $0x4d4] sm:$0xf]
    %v1610 = vld [vmem:[%s3 + $0x4d8] sm:$0xf]
    %v1611 = vld [vmem:[%s3 + $0x4dc] sm:$0xf]
    %v1612 = vld [vmem:[%s3 + $0x4e0] sm:$0xf]
    %v1613 = vld [vmem:[%s3 + $0x4e4] sm:$0xf]
    %v1614 = vld [vmem:[%s3 + $0x4e8] sm:$0xf]
    %v1615 = vld [vmem:[%s3 + $0x4ec] sm:$0xf]
    %v1616 = vld [vmem:[%s3 + $0x4f0] sm:$0xf]
    %v1617 = vld [vmem:[%s3 + $0x4f4] sm:$0xf]
    %v1618 = vld [vmem:[%s3 + $0x4f8] sm:$0xf]
    %v1619 = vld [vmem:[%s3 + $0x4fc] sm:$0xf]
    %v1620 = vld [vmem:[%s3 + $0x500] sm:$0xf]
    %v1621 = vld [vmem:[%s3 + $0x504] sm:$0xf]
    %v1622 = vld [vmem:[%s3 + $0x508] sm:$0xf]
    %v1623 = vld [vmem:[%s3 + $0x50c] sm:$0xf]
    %v1624 = vld [vmem:[%s3 + $0x510] sm:$0xf]
    %v1625 = vld [vmem:[%s3 + $0x514] sm:$0xf]
    %v1626 = vld [vmem:[%s3 + $0x518] sm:$0xf]
    %v1627 = vld [vmem:[%s3 + $0x51c] sm:$0xf]
    %v1628 = vld [vmem:[%s3 + $0x520] sm:$0xf]
    %v1629 = vld [vmem:[%s3 + $0x524] sm:$0xf]
    %v1630 = vld [vmem:[%s3 + $0x528] sm:$0xf]
    %v1631 = vld [vmem:[%s3 + $0x52c] sm:$0xf]
    %v1632 = vld [vmem:[%s3 + $0x530] sm:$0xf]
    %v1633 = vld [vmem:[%s3 + $0x534] sm:$0xf]
    %v1634 = vld [vmem:[%s3 + $0x538] sm:$0xf]
    %v1635 = vld [vmem:[%s3 + $0x53c] sm:$0xf]
    %v1636 = vld [vmem:[%s3 + $0x540] sm:$0xf]
    %v1637 = vld [vmem:[%s3 + $0x544] sm:$0xf]
    %v1638 = vld [vmem:[%s3 + $0x548] sm:$0xf]
    %v1639 = vld [vmem:[%s3 + $0x54c] sm:$0xf]
    %v1640 = vld [vmem:[%s3 + $0x550] sm:$0xf]
    %v1641 = vld [vmem:[%s3 + $0x554] sm:$0xf]
    %v1642 = vld [vmem:[%s3 + $0x558] sm:$0xf]
    %v1643 = vld [vmem:[%s3 + $0x55c] sm:$0xf]
    %v1644 = vld [vmem:[%s3 + $0x560] sm:$0xf]
    %v1645 = vld [vmem:[%s3 + $0x564] sm:$0xf]
    %v1646 = vld [vmem:[%s3 + $0x568] sm:$0xf]
    %v1647 = vld [vmem:[%s3 + $0x56c] sm:$0xf]
    %v1648 = vld [vmem:[%s3 + $0x570] sm:$0xf]
    %v1649 = vld [vmem:[%s3 + $0x574] sm:$0xf]
    %v1650 = vld [vmem:[%s3 + $0x578] sm:$0xf]
    %v1651 = vld [vmem:[%s3 + $0x57c] sm:$0xf]
    %v1652 = vld [vmem:[%s3 + $0x580] sm:$0xf]
    %v1653 = vld [vmem:[%s3 + $0x584] sm:$0xf]
    %v1654 = vld [vmem:[%s3 + $0x588] sm:$0xf]
    %v1655 = vld [vmem:[%s3 + $0x58c] sm:$0xf]
    %v1656 = vld [vmem:[%s3 + $0x590] sm:$0xf]
    %v1657 = vld [vmem:[%s3 + $0x594] sm:$0xf]
    %v1658 = vld [vmem:[%s3 + $0x598] sm:$0xf]
    %v1659 = vld [vmem:[%s3 + $0x59c] sm:$0xf]
    %v1660 = vld [vmem:[%s3 + $0x5a0] sm:$0xf]
    %v1661 = vld [vmem:[%s3 + $0x5a4] sm:$0xf]
    %v1662 = vld [vmem:[%s3 + $0x5a8] sm:$0xf]
    %v1663 = vld [vmem:[%s3 + $0x5ac] sm:$0xf]
    %v1664 = vld [vmem:[%s3 + $0x5b0] sm:$0xf]
    %v1665 = vld [vmem:[%s3 + $0x5b4] sm:$0xf]
    %v1666 = vld [vmem:[%s3 + $0x5b8] sm:$0xf]
    %v1667 = vld [vmem:[%s3 + $0x5bc] sm:$0xf]
    %v1668 = vld [vmem:[%s3 + $0x5c0] sm:$0xf]
    %v1669 = vld [vmem:[%s3 + $0x5c4] sm:$0xf]
    %v1670 = vld [vmem:[%s3 + $0x5c8] sm:$0xf]
    %v1671 = vld [vmem:[%s3 + $0x5cc] sm:$0xf]
    %v1672 = vld [vmem:[%s3 + $0x5d0] sm:$0xf]
    %v1673 = vld [vmem:[%s3 + $0x5d4] sm:$0xf]
    %v1674 = vld [vmem:[%s3 + $0x5d8] sm:$0xf]
    %v1675 = vld [vmem:[%s3 + $0x5dc] sm:$0xf]
    %v1676 = vld [vmem:[%s3 + $0x5e0] sm:$0xf]
    %v1677 = vld [vmem:[%s3 + $0x5e4] sm:$0xf]
    %v1678 = vld [vmem:[%s3 + $0x5e8] sm:$0xf]
    %v1679 = vld [vmem:[%s3 + $0x5ec] sm:$0xf]
    %v1680 = vld [vmem:[%s3 + $0x5f0] sm:$0xf]
    %v1681 = vld [vmem:[%s3 + $0x5f4] sm:$0xf]
    %v1682 = vld [vmem:[%s3 + $0x5f8] sm:$0xf]
    %v1683 = vld [vmem:[%s3 + $0x5fc] sm:$0xf]
    %v1684 = vld [vmem:[%s3 + $0x600] sm:$0xf]
    %v1685 = vld [vmem:[%s3 + $0x604] sm:$0xf]
    %v1686 = vld [vmem:[%s3 + $0x608] sm:$0xf]
    %v1687 = vld [vmem:[%s3 + $0x60c] sm:$0xf]
    %v1688 = vld [vmem:[%s3 + $0x610] sm:$0xf]
    %v1689 = vld [vmem:[%s3 + $0x614] sm:$0xf]
    %v1690 = vld [vmem:[%s3 + $0x618] sm:$0xf]
    %v1691 = vld [vmem:[%s3 + $0x61c] sm:$0xf]
    %v1692 = vld [vmem:[%s3 + $0x620] sm:$0xf]
    %v1693 = vld [vmem:[%s3 + $0x624] sm:$0xf]
    %v1694 = vld [vmem:[%s3 + $0x628] sm:$0xf]
    %v1695 = vld [vmem:[%s3 + $0x62c] sm:$0xf]
    %v1696 = vld [vmem:[%s3 + $0x630] sm:$0xf]
    %v1697 = vld [vmem:[%s3 + $0x634] sm:$0xf]
    %v1698 = vld [vmem:[%s3 + $0x638] sm:$0xf]
    %v1699 = vld [vmem:[%s3 + $0x63c] sm:$0xf]
    %v1700 = vld [vmem:[%s3 + $0x640] sm:$0xf]
    %v1701 = vld [vmem:[%s3 + $0x644] sm:$0xf]
    %v1702 = vld [vmem:[%s3 + $0x648] sm:$0xf]
    %v1703 = vld [vmem:[%s3 + $0x64c] sm:$0xf]
    %v1704 = vld [vmem:[%s3 + $0x650] sm:$0xf]
    %v1705 = vld [vmem:[%s3 + $0x654] sm:$0xf]
    %v1706 = vld [vmem:[%s3 + $0x658] sm:$0xf]
    %v1707 = vld [vmem:[%s3 + $0x65c] sm:$0xf]
    %v1708 = vld [vmem:[%s3 + $0x660] sm:$0xf]
    %v1709 = vld [vmem:[%s3 + $0x664] sm:$0xf]
    %v1710 = vld [vmem:[%s3 + $0x668] sm:$0xf]
    %v1711 = vld [vmem:[%s3 + $0x66c] sm:$0xf]
    %v1712 = vld [vmem:[%s3 + $0x670] sm:$0xf]
    %v1713 = vld [vmem:[%s3 + $0x674] sm:$0xf]
    %v1714 = vld [vmem:[%s3 + $0x678] sm:$0xf]
    %v1715 = vld [vmem:[%s3 + $0x67c] sm:$0xf]
    %v1716 = vld [vmem:[%s3 + $0x680] sm:$0xf]
    %v1717 = vld [vmem:[%s3 + $0x684] sm:$0xf]
    %v1718 = vld [vmem:[%s3 + $0x688] sm:$0xf]
    %v1719 = vld [vmem:[%s3 + $0x68c] sm:$0xf]
    %v1720 = vld [vmem:[%s3 + $0x690] sm:$0xf]
    %v1721 = vld [vmem:[%s3 + $0x694] sm:$0xf]
    %v1722 = vld [vmem:[%s3 + $0x698] sm:$0xf]
    %v1723 = vld [vmem:[%s3 + $0x69c] sm:$0xf]
    %v1724 = vld [vmem:[%s3 + $0x6a0] sm:$0xf]
    %v1725 = vld [vmem:[%s3 + $0x6a4] sm:$0xf]
    %v1726 = vld [vmem:[%s3 + $0x6a8] sm:$0xf]
    %v1727 = vld [vmem:[%s3 + $0x6ac] sm:$0xf]
    %v1728 = vld [vmem:[%s3 + $0x6b0] sm:$0xf]
    %v1729 = vld [vmem:[%s3 + $0x6b4] sm:$0xf]
    %v1730 = vld [vmem:[%s3 + $0x6b8] sm:$0xf]
    %v1731 = vld [vmem:[%s3 + $0x6bc] sm:$0xf]
    %v1732 = vld [vmem:[%s3 + $0x6c0] sm:$0xf]
    %v1733 = vld [vmem:[%s3 + $0x6c4] sm:$0xf]
    %v1734 = vld [vmem:[%s3 + $0x6c8] sm:$0xf]
    %v1735 = vld [vmem:[%s3 + $0x6cc] sm:$0xf]
    %v1736 = vld [vmem:[%s3 + $0x6d0] sm:$0xf]
    %v1737 = vld [vmem:[%s3 + $0x6d4] sm:$0xf]
    %v1738 = vld [vmem:[%s3 + $0x6d8] sm:$0xf]
    %v1739 = vld [vmem:[%s3 + $0x6dc] sm:$0xf]
    %v1740 = vld [vmem:[%s3 + $0x6e0] sm:$0xf]
    %v1741 = vld [vmem:[%s3 + $0x6e4] sm:$0xf]
    %v1742 = vld [vmem:[%s3 + $0x6e8] sm:$0xf]
    %v1743 = vld [vmem:[%s3 + $0x6ec] sm:$0xf]
    %v1744 = vld [vmem:[%s3 + $0x6f0] sm:$0xf]
    %v1745 = vld [vmem:[%s3 + $0x6f4] sm:$0xf]
    %v1746 = vld [vmem:[%s3 + $0x6f8] sm:$0xf]
    %v1747 = vld [vmem:[%s3 + $0x6fc] sm:$0xf]
    %v1748 = vld [vmem:[%s3 + $0x700] sm:$0xf]
    %v1749 = vld [vmem:[%s3 + $0x704] sm:$0xf]
    %v1750 = vld [vmem:[%s3 + $0x708] sm:$0xf]
    %v1751 = vld [vmem:[%s3 + $0x70c] sm:$0xf]
    %v1752 = vld [vmem:[%s3 + $0x710] sm:$0xf]
    %v1753 = vld [vmem:[%s3 + $0x714] sm:$0xf]
    %v1754 = vld [vmem:[%s3 + $0x718] sm:$0xf]
    %v1755 = vld [vmem:[%s3 + $0x71c] sm:$0xf]
    %v1756 = vld [vmem:[%s3 + $0x720] sm:$0xf]
    %v1757 = vld [vmem:[%s3 + $0x724] sm:$0xf]
    %v1758 = vld [vmem:[%s3 + $0x728] sm:$0xf]
    %v1759 = vld [vmem:[%s3 + $0x72c] sm:$0xf]
    %v1760 = vld [vmem:[%s3 + $0x730] sm:$0xf]
    %v1761 = vld [vmem:[%s3 + $0x734] sm:$0xf]
    %v1762 = vld [vmem:[%s3 + $0x738] sm:$0xf]
    %v1763 = vld [vmem:[%s3 + $0x73c] sm:$0xf]
    %v1764 = vld [vmem:[%s3 + $0x740] sm:$0xf]
    %v1765 = vld [vmem:[%s3 + $0x744] sm:$0xf]
    %v1766 = vld [vmem:[%s3 + $0x748] sm:$0xf]
    %v1767 = vld [vmem:[%s3 + $0x74c] sm:$0xf]
    %v1768 = vld [vmem:[%s3 + $0x750] sm:$0xf]
    %v1769 = vld [vmem:[%s3 + $0x754] sm:$0xf]
    %v1770 = vld [vmem:[%s3 + $0x758] sm:$0xf]
    %v1771 = vld [vmem:[%s3 + $0x75c] sm:$0xf]
    %v1772 = vld [vmem:[%s3 + $0x760] sm:$0xf]
    %v1773 = vld [vmem:[%s3 + $0x764] sm:$0xf]
    %v1774 = vld [vmem:[%s3 + $0x768] sm:$0xf]
    %v1775 = vld [vmem:[%s3 + $0x76c] sm:$0xf]
    %v1776 = vld [vmem:[%s3 + $0x770] sm:$0xf]
    %v1777 = vld [vmem:[%s3 + $0x774] sm:$0xf]
    %v1778 = vld [vmem:[%s3 + $0x778] sm:$0xf]
    %v1779 = vld [vmem:[%s3 + $0x77c] sm:$0xf]
    %v1780 = vld [vmem:[%s3 + $0x780] sm:$0xf]
    %v1781 = vld [vmem:[%s3 + $0x784] sm:$0xf]
    %v1782 = vld [vmem:[%s3 + $0x788] sm:$0xf]
    %v1783 = vld [vmem:[%s3 + $0x78c] sm:$0xf]
    %v1784 = vld [vmem:[%s3 + $0x790] sm:$0xf]
    %v1785 = vld [vmem:[%s3 + $0x794] sm:$0xf]
    %v1786 = vld [vmem:[%s3 + $0x798] sm:$0xf]
    %v1787 = vld [vmem:[%s3 + $0x79c] sm:$0xf]
    %v1788 = vld [vmem:[%s3 + $0x7a0] sm:$0xf]
    %v1789 = vld [vmem:[%s3 + $0x7a4] sm:$0xf]
    %v1790 = vld [vmem:[%s3 + $0x7a8] sm:$0xf]
    %v1791 = vld [vmem:[%s3 + $0x7ac] sm:$0xf]
    %v1792 = vld [vmem:[%s3 + $0x7b0] sm:$0xf]
    %v1793 = vld [vmem:[%s3 + $0x7b4] sm:$0xf]
    %v1794 = vld [vmem:[%s3 + $0x7b8] sm:$0xf]
    %v1795 = vld [vmem:[%s3 + $0x7bc] sm:$0xf]
    %v1796 = vld [vmem:[%s3 + $0x7c0] sm:$0xf]
    %v1797 = vld [vmem:[%s3 + $0x7c4] sm:$0xf]
    %v1798 = vld [vmem:[%s3 + $0x7c8] sm:$0xf]
    %v1799 = vld [vmem:[%s3 + $0x7cc] sm:$0xf]
    %v1800 = vld [vmem:[%s3 + $0x7d0] sm:$0xf]
    %v1801 = vld [vmem:[%s3 + $0x7d4] sm:$0xf]
    %v1802 = vld [vmem:[%s3 + $0x7d8] sm:$0xf]
    %v1803 = vld [vmem:[%s3 + $0x7dc] sm:$0xf]
    %v1804 = vld [vmem:[%s3 + $0x7e0] sm:$0xf]
    %v1805 = vld [vmem:[%s3 + $0x7e4] sm:$0xf]
    %v1806 = vld [vmem:[%s3 + $0x7e8] sm:$0xf]
    %v1807 = vld [vmem:[%s3 + $0x7ec] sm:$0xf]
    %v1808 = vld [vmem:[%s3 + $0x7f0] sm:$0xf]
    %v1809 = vld [vmem:[%s3 + $0x7f4] sm:$0xf]
    %v1810 = vld [vmem:[%s3 + $0x7f8] sm:$0xf]
    %v1811 = vld [vmem:[%s3 + $0x7fc] sm:$0xf]
    %v1812 = vld [vmem:[%s4] sm:$0x1]
    %v1814 = vlaneseq
    %v1815 = vshrl.u32 %v1814, 7
    %v1816 = vsub.s32 0, %v1815
    %v1817 = vrot.slane %v1812, %v1816
    %v2331 = vunpack.c.l.b16 %v1300
    %v2332 = vunpack.c.l.b16 %v1301
    %v2333 = vunpack.c.l.b16 %v1302
    %v2334 = vunpack.c.l.b16 %v1303
    %v2335 = vunpack.c.l.b16 %v1304
    %v2336 = vunpack.c.l.b16 %v1305
    %v2337 = vunpack.c.l.b16 %v1306
    %v2338 = vunpack.c.l.b16 %v1307
    %v2339 = vunpack.c.l.b16 %v1308
    %v2340 = vunpack.c.l.b16 %v1309
    %v2341 = vunpack.c.l.b16 %v1310
    %v2342 = vunpack.c.l.b16 %v1311
    %v2343 = vunpack.c.l.b16 %v1312
    %v2344 = vunpack.c.l.b16 %v1313
    %v2345 = vunpack.c.l.b16 %v1314
    %v2346 = vunpack.c.l.b16 %v1315
    %v2347 = vunpack.c.l.b16 %v1316
    %v2348 = vunpack.c.l.b16 %v1317
    %v2349 = vunpack.c.l.b16 %v1318
    %v2350 = vunpack.c.l.b16 %v1319
    %v2351 = vunpack.c.l.b16 %v1320
    %v2352 = vunpack.c.l.b16 %v1321
    %v2353 = vunpack.c.l.b16 %v1322
    %v2354 = vunpack.c.l.b16 %v1323
    %v2355 = vunpack.c.l.b16 %v1324
    %v2356 = vunpack.c.l.b16 %v1325
    %v2357 = vunpack.c.l.b16 %v1326
    %v2358 = vunpack.c.l.b16 %v1327
    %v2359 = vunpack.c.l.b16 %v1328
    %v2360 = vunpack.c.l.b16 %v1329
    %v2361 = vunpack.c.l.b16 %v1330
    %v2362 = vunpack.c.l.b16 %v1331
    %v2363 = vunpack.c.l.b16 %v1332
    %v2364 = vunpack.c.l.b16 %v1333
    %v2365 = vunpack.c.l.b16 %v1334
    %v2366 = vunpack.c.l.b16 %v1335
    %v2367 = vunpack.c.l.b16 %v1336
    %v2368 = vunpack.c.l.b16 %v1337
    %v2369 = vunpack.c.l.b16 %v1338
    %v2370 = vunpack.c.l.b16 %v1339
    %v2371 = vunpack.c.l.b16 %v1340
    %v2372 = vunpack.c.l.b16 %v1341
    %v2373 = vunpack.c.l.b16 %v1342
    %v2374 = vunpack.c.l.b16 %v1343
    %v2375 = vunpack.c.l.b16 %v1344
    %v2376 = vunpack.c.l.b16 %v1345
    %v2377 = vunpack.c.l.b16 %v1346
    %v2378 = vunpack.c.l.b16 %v1347
    %v2379 = vunpack.c.l.b16 %v1348
    %v2380 = vunpack.c.l.b16 %v1349
    %v2381 = vunpack.c.l.b16 %v1350
    %v2382 = vunpack.c.l.b16 %v1351
    %v2383 = vunpack.c.l.b16 %v1352
    %v2384 = vunpack.c.l.b16 %v1353
    %v2385 = vunpack.c.l.b16 %v1354
    %v2386 = vunpack.c.l.b16 %v1355
    %v2387 = vunpack.c.l.b16 %v1356
    %v2388 = vunpack.c.l.b16 %v1357
    %v2389 = vunpack.c.l.b16 %v1358
    %v2390 = vunpack.c.l.b16 %v1359
    %v2391 = vunpack.c.l.b16 %v1360
    %v2392 = vunpack.c.l.b16 %v1361
    %v2393 = vunpack.c.l.b16 %v1362
    %v2394 = vunpack.c.l.b16 %v1363
    %v2395 = vunpack.c.l.b16 %v1364
    %v2396 = vunpack.c.l.b16 %v1365
    %v2397 = vunpack.c.l.b16 %v1366
    %v2398 = vunpack.c.l.b16 %v1367
    %v2399 = vunpack.c.l.b16 %v1368
    %v2400 = vunpack.c.l.b16 %v1369
    %v2401 = vunpack.c.l.b16 %v1370
    %v2402 = vunpack.c.l.b16 %v1371
    %v2403 = vunpack.c.l.b16 %v1372
    %v2404 = vunpack.c.l.b16 %v1373
    %v2405 = vunpack.c.l.b16 %v1374
    %v2406 = vunpack.c.l.b16 %v1375
    %v2407 = vunpack.c.l.b16 %v1376
    %v2408 = vunpack.c.l.b16 %v1377
    %v2409 = vunpack.c.l.b16 %v1378
    %v2410 = vunpack.c.l.b16 %v1379
    %v2411 = vunpack.c.l.b16 %v1380
    %v2412 = vunpack.c.l.b16 %v1381
    %v2413 = vunpack.c.l.b16 %v1382
    %v2414 = vunpack.c.l.b16 %v1383
    %v2415 = vunpack.c.l.b16 %v1384
    %v2416 = vunpack.c.l.b16 %v1385
    %v2417 = vunpack.c.l.b16 %v1386
    %v2418 = vunpack.c.l.b16 %v1387
    %v2419 = vunpack.c.l.b16 %v1388
    %v2420 = vunpack.c.l.b16 %v1389
    %v2421 = vunpack.c.l.b16 %v1390
    %v2422 = vunpack.c.l.b16 %v1391
    %v2423 = vunpack.c.l.b16 %v1392
    %v2424 = vunpack.c.l.b16 %v1393
    %v2425 = vunpack.c.l.b16 %v1394
    %v2426 = vunpack.c.l.b16 %v1395
    %v2427 = vunpack.c.l.b16 %v1396
    %v2428 = vunpack.c.l.b16 %v1397
    %v2429 = vunpack.c.l.b16 %v1398
    %v2430 = vunpack.c.l.b16 %v1399
    %v2431 = vunpack.c.l.b16 %v1400
    %v2432 = vunpack.c.l.b16 %v1401
    %v2433 = vunpack.c.l.b16 %v1402
    %v2434 = vunpack.c.l.b16 %v1403
    %v2435 = vunpack.c.l.b16 %v1404
    %v2436 = vunpack.c.l.b16 %v1405
    %v2437 = vunpack.c.l.b16 %v1406
    %v2438 = vunpack.c.l.b16 %v1407
    %v2439 = vunpack.c.l.b16 %v1408
    %v2440 = vunpack.c.l.b16 %v1409
    %v2441 = vunpack.c.l.b16 %v1410
    %v2442 = vunpack.c.l.b16 %v1411
    %v2443 = vunpack.c.l.b16 %v1412
    %v2444 = vunpack.c.l.b16 %v1413
    %v2445 = vunpack.c.l.b16 %v1414
    %v2446 = vunpack.c.l.b16 %v1415
    %v2447 = vunpack.c.l.b16 %v1416
    %v2448 = vunpack.c.l.b16 %v1417
    %v2449 = vunpack.c.l.b16 %v1418
    %v2450 = vunpack.c.l.b16 %v1419
    %v2451 = vunpack.c.l.b16 %v1420
    %v2452 = vunpack.c.l.b16 %v1421
    %v2453 = vunpack.c.l.b16 %v1422
    %v2454 = vunpack.c.l.b16 %v1423
    %v2455 = vunpack.c.l.b16 %v1424
    %v2456 = vunpack.c.l.b16 %v1425
    %v2457 = vunpack.c.l.b16 %v1426
    %v2458 = vunpack.c.l.b16 %v1427
    %v2459 = vunpack.c.l.b16 %v1428
    %v2460 = vunpack.c.l.b16 %v1429
    %v2461 = vunpack.c.l.b16 %v1430
    %v2462 = vunpack.c.l.b16 %v1431
    %v2463 = vunpack.c.l.b16 %v1432
    %v2464 = vunpack.c.l.b16 %v1433
    %v2465 = vunpack.c.l.b16 %v1434
    %v2466 = vunpack.c.l.b16 %v1435
    %v2467 = vunpack.c.l.b16 %v1436
    %v2468 = vunpack.c.l.b16 %v1437
    %v2469 = vunpack.c.l.b16 %v1438
    %v2470 = vunpack.c.l.b16 %v1439
    %v2471 = vunpack.c.l.b16 %v1440
    %v2472 = vunpack.c.l.b16 %v1441
    %v2473 = vunpack.c.l.b16 %v1442
    %v2474 = vunpack.c.l.b16 %v1443
    %v2475 = vunpack.c.l.b16 %v1444
    %v2476 = vunpack.c.l.b16 %v1445
    %v2477 = vunpack.c.l.b16 %v1446
    %v2478 = vunpack.c.l.b16 %v1447
    %v2479 = vunpack.c.l.b16 %v1448
    %v2480 = vunpack.c.l.b16 %v1449
    %v2481 = vunpack.c.l.b16 %v1450
    %v2482 = vunpack.c.l.b16 %v1451
    %v2483 = vunpack.c.l.b16 %v1452
    %v2484 = vunpack.c.l.b16 %v1453
    %v2485 = vunpack.c.l.b16 %v1454
    %v2486 = vunpack.c.l.b16 %v1455
    %v2487 = vunpack.c.l.b16 %v1456
    %v2488 = vunpack.c.l.b16 %v1457
    %v2489 = vunpack.c.l.b16 %v1458
    %v2490 = vunpack.c.l.b16 %v1459
    %v2491 = vunpack.c.l.b16 %v1460
    %v2492 = vunpack.c.l.b16 %v1461
    %v2493 = vunpack.c.l.b16 %v1462
    %v2494 = vunpack.c.l.b16 %v1463
    %v2495 = vunpack.c.l.b16 %v1464
    %v2496 = vunpack.c.l.b16 %v1465
    %v2497 = vunpack.c.l.b16 %v1466
    %v2498 = vunpack.c.l.b16 %v1467
    %v2499 = vunpack.c.l.b16 %v1468
    %v2500 = vunpack.c.l.b16 %v1469
    %v2501 = vunpack.c.l.b16 %v1470
    %v2502 = vunpack.c.l.b16 %v1471
    %v2503 = vunpack.c.l.b16 %v1472
    %v2504 = vunpack.c.l.b16 %v1473
    %v2505 = vunpack.c.l.b16 %v1474
    %v2506 = vunpack.c.l.b16 %v1475
    %v2507 = vunpack.c.l.b16 %v1476
    %v2508 = vunpack.c.l.b16 %v1477
    %v2509 = vunpack.c.l.b16 %v1478
    %v2510 = vunpack.c.l.b16 %v1479
    %v2511 = vunpack.c.l.b16 %v1480
    %v2512 = vunpack.c.l.b16 %v1481
    %v2513 = vunpack.c.l.b16 %v1482
    %v2514 = vunpack.c.l.b16 %v1483
    %v2515 = vunpack.c.l.b16 %v1484
    %v2516 = vunpack.c.l.b16 %v1485
    %v2517 = vunpack.c.l.b16 %v1486
    %v2518 = vunpack.c.l.b16 %v1487
    %v2519 = vunpack.c.l.b16 %v1488
    %v2520 = vunpack.c.l.b16 %v1489
    %v2521 = vunpack.c.l.b16 %v1490
    %v2522 = vunpack.c.l.b16 %v1491
    %v2523 = vunpack.c.l.b16 %v1492
    %v2524 = vunpack.c.l.b16 %v1493
    %v2525 = vunpack.c.l.b16 %v1494
    %v2526 = vunpack.c.l.b16 %v1495
    %v2527 = vunpack.c.l.b16 %v1496
    %v2528 = vunpack.c.l.b16 %v1497
    %v2529 = vunpack.c.l.b16 %v1498
    %v2530 = vunpack.c.l.b16 %v1499
    %v2531 = vunpack.c.l.b16 %v1500
    %v2532 = vunpack.c.l.b16 %v1501
    %v2533 = vunpack.c.l.b16 %v1502
    %v2534 = vunpack.c.l.b16 %v1503
    %v2535 = vunpack.c.l.b16 %v1504
    %v2536 = vunpack.c.l.b16 %v1505
    %v2537 = vunpack.c.l.b16 %v1506
    %v2538 = vunpack.c.l.b16 %v1507
    %v2539 = vunpack.c.l.b16 %v1508
    %v2540 = vunpack.c.l.b16 %v1509
    %v2541 = vunpack.c.l.b16 %v1510
    %v2542 = vunpack.c.l.b16 %v1511
    %v2543 = vunpack.c.l.b16 %v1512
    %v2544 = vunpack.c.l.b16 %v1513
    %v2545 = vunpack.c.l.b16 %v1514
    %v2546 = vunpack.c.l.b16 %v1515
    %v2547 = vunpack.c.l.b16 %v1516
    %v2548 = vunpack.c.l.b16 %v1517
    %v2549 = vunpack.c.l.b16 %v1518
    %v2550 = vunpack.c.l.b16 %v1519
    %v2551 = vunpack.c.l.b16 %v1520
    %v2552 = vunpack.c.l.b16 %v1521
    %v2553 = vunpack.c.l.b16 %v1522
    %v2554 = vunpack.c.l.b16 %v1523
    %v2555 = vunpack.c.l.b16 %v1524
    %v2556 = vunpack.c.l.b16 %v1525
    %v2557 = vunpack.c.l.b16 %v1526
    %v2558 = vunpack.c.l.b16 %v1527
    %v2559 = vunpack.c.l.b16 %v1528
    %v2560 = vunpack.c.l.b16 %v1529
    %v2561 = vunpack.c.l.b16 %v1530
    %v2562 = vunpack.c.l.b16 %v1531
    %v2563 = vunpack.c.l.b16 %v1532
    %v2564 = vunpack.c.l.b16 %v1533
    %v2565 = vunpack.c.l.b16 %v1534
    %v2566 = vunpack.c.l.b16 %v1535
    %v2567 = vunpack.c.l.b16 %v1536
    %v2568 = vunpack.c.l.b16 %v1537
    %v2569 = vunpack.c.l.b16 %v1538
    %v2570 = vunpack.c.l.b16 %v1539
    %v2571 = vunpack.c.l.b16 %v1540
    %v2572 = vunpack.c.l.b16 %v1541
    %v2573 = vunpack.c.l.b16 %v1542
    %v2574 = vunpack.c.l.b16 %v1543
    %v2575 = vunpack.c.l.b16 %v1544
    %v2576 = vunpack.c.l.b16 %v1545
    %v2577 = vunpack.c.l.b16 %v1546
    %v2578 = vunpack.c.l.b16 %v1547
    %v2579 = vunpack.c.l.b16 %v1548
    %v2580 = vunpack.c.l.b16 %v1549
    %v2581 = vunpack.c.l.b16 %v1550
    %v2582 = vunpack.c.l.b16 %v1551
    %v2583 = vunpack.c.l.b16 %v1552
    %v2584 = vunpack.c.l.b16 %v1553
    %v2585 = vunpack.c.l.b16 %v1554
    %v2586 = vunpack.c.l.b16 %v1555
    %v2587 = vunpack.c.l.b16 %v1556
    %v2588 = vunpack.c.l.b16 %v1557
    %v2589 = vunpack.c.l.b16 %v1558
    %v2590 = vunpack.c.l.b16 %v1559
    %v2591 = vunpack.c.l.b16 %v1560
    %v2592 = vunpack.c.l.b16 %v1561
    %v2593 = vunpack.c.l.b16 %v1562
    %v2594 = vunpack.c.l.b16 %v1563
    %v2595 = vunpack.c.l.b16 %v1564
    %v2596 = vunpack.c.l.b16 %v1565
    %v2597 = vunpack.c.l.b16 %v1566
    %v2598 = vunpack.c.l.b16 %v1567
    %v2599 = vunpack.c.l.b16 %v1568
    %v2600 = vunpack.c.l.b16 %v1569
    %v2601 = vunpack.c.l.b16 %v1570
    %v2602 = vunpack.c.l.b16 %v1571
    %v2603 = vunpack.c.l.b16 %v1572
    %v2604 = vunpack.c.l.b16 %v1573
    %v2605 = vunpack.c.l.b16 %v1574
    %v2606 = vunpack.c.l.b16 %v1575
    %v2607 = vunpack.c.l.b16 %v1576
    %v2608 = vunpack.c.l.b16 %v1577
    %v2609 = vunpack.c.l.b16 %v1578
    %v2610 = vunpack.c.l.b16 %v1579
    %v2611 = vunpack.c.l.b16 %v1580
    %v2612 = vunpack.c.l.b16 %v1581
    %v2613 = vunpack.c.l.b16 %v1582
    %v2614 = vunpack.c.l.b16 %v1583
    %v2615 = vunpack.c.l.b16 %v1584
    %v2616 = vunpack.c.l.b16 %v1585
    %v2617 = vunpack.c.l.b16 %v1586
    %v2618 = vunpack.c.l.b16 %v1587
    %v2619 = vunpack.c.l.b16 %v1588
    %v2620 = vunpack.c.l.b16 %v1589
    %v2621 = vunpack.c.l.b16 %v1590
    %v2622 = vunpack.c.l.b16 %v1591
    %v2623 = vunpack.c.l.b16 %v1592
    %v2624 = vunpack.c.l.b16 %v1593
    %v2625 = vunpack.c.l.b16 %v1594
    %v2626 = vunpack.c.l.b16 %v1595
    %v2627 = vunpack.c.l.b16 %v1596
    %v2628 = vunpack.c.l.b16 %v1597
    %v2629 = vunpack.c.l.b16 %v1598
    %v2630 = vunpack.c.l.b16 %v1599
    %v2631 = vunpack.c.l.b16 %v1600
    %v2632 = vunpack.c.l.b16 %v1601
    %v2633 = vunpack.c.l.b16 %v1602
    %v2634 = vunpack.c.l.b16 %v1603
    %v2635 = vunpack.c.l.b16 %v1604
    %v2636 = vunpack.c.l.b16 %v1605
    %v2637 = vunpack.c.l.b16 %v1606
    %v2638 = vunpack.c.l.b16 %v1607
    %v2639 = vunpack.c.l.b16 %v1608
    %v2640 = vunpack.c.l.b16 %v1609
    %v2641 = vunpack.c.l.b16 %v1610
    %v2642 = vunpack.c.l.b16 %v1611
    %v2643 = vunpack.c.l.b16 %v1612
    %v2644 = vunpack.c.l.b16 %v1613
    %v2645 = vunpack.c.l.b16 %v1614
    %v2646 = vunpack.c.l.b16 %v1615
    %v2647 = vunpack.c.l.b16 %v1616
    %v2648 = vunpack.c.l.b16 %v1617
    %v2649 = vunpack.c.l.b16 %v1618
    %v2650 = vunpack.c.l.b16 %v1619
    %v2651 = vunpack.c.l.b16 %v1620
    %v2652 = vunpack.c.l.b16 %v1621
    %v2653 = vunpack.c.l.b16 %v1622
    %v2654 = vunpack.c.l.b16 %v1623
    %v2655 = vunpack.c.l.b16 %v1624
    %v2656 = vunpack.c.l.b16 %v1625
    %v2657 = vunpack.c.l.b16 %v1626
    %v2658 = vunpack.c.l.b16 %v1627
    %v2659 = vunpack.c.l.b16 %v1628
    %v2660 = vunpack.c.l.b16 %v1629
    %v2661 = vunpack.c.l.b16 %v1630
    %v2662 = vunpack.c.l.b16 %v1631
    %v2663 = vunpack.c.l.b16 %v1632
    %v2664 = vunpack.c.l.b16 %v1633
    %v2665 = vunpack.c.l.b16 %v1634
    %v2666 = vunpack.c.l.b16 %v1635
    %v2667 = vunpack.c.l.b16 %v1636
    %v2668 = vunpack.c.l.b16 %v1637
    %v2669 = vunpack.c.l.b16 %v1638
    %v2670 = vunpack.c.l.b16 %v1639
    %v2671 = vunpack.c.l.b16 %v1640
    %v2672 = vunpack.c.l.b16 %v1641
    %v2673 = vunpack.c.l.b16 %v1642
    %v2674 = vunpack.c.l.b16 %v1643
    %v2675 = vunpack.c.l.b16 %v1644
    %v2676 = vunpack.c.l.b16 %v1645
    %v2677 = vunpack.c.l.b16 %v1646
    %v2678 = vunpack.c.l.b16 %v1647
    %v2679 = vunpack.c.l.b16 %v1648
    %v2680 = vunpack.c.l.b16 %v1649
    %v2681 = vunpack.c.l.b16 %v1650
    %v2682 = vunpack.c.l.b16 %v1651
    %v2683 = vunpack.c.l.b16 %v1652
    %v2684 = vunpack.c.l.b16 %v1653
    %v2685 = vunpack.c.l.b16 %v1654
    %v2686 = vunpack.c.l.b16 %v1655
    %v2687 = vunpack.c.l.b16 %v1656
    %v2688 = vunpack.c.l.b16 %v1657
    %v2689 = vunpack.c.l.b16 %v1658
    %v2690 = vunpack.c.l.b16 %v1659
    %v2691 = vunpack.c.l.b16 %v1660
    %v2692 = vunpack.c.l.b16 %v1661
    %v2693 = vunpack.c.l.b16 %v1662
    %v2694 = vunpack.c.l.b16 %v1663
    %v2695 = vunpack.c.l.b16 %v1664
    %v2696 = vunpack.c.l.b16 %v1665
    %v2697 = vunpack.c.l.b16 %v1666
    %v2698 = vunpack.c.l.b16 %v1667
    %v2699 = vunpack.c.l.b16 %v1668
    %v2700 = vunpack.c.l.b16 %v1669
    %v2701 = vunpack.c.l.b16 %v1670
    %v2702 = vunpack.c.l.b16 %v1671
    %v2703 = vunpack.c.l.b16 %v1672
    %v2704 = vunpack.c.l.b16 %v1673
    %v2705 = vunpack.c.l.b16 %v1674
    %v2706 = vunpack.c.l.b16 %v1675
    %v2707 = vunpack.c.l.b16 %v1676
    %v2708 = vunpack.c.l.b16 %v1677
    %v2709 = vunpack.c.l.b16 %v1678
    %v2710 = vunpack.c.l.b16 %v1679
    %v2711 = vunpack.c.l.b16 %v1680
    %v2712 = vunpack.c.l.b16 %v1681
    %v2713 = vunpack.c.l.b16 %v1682
    %v2714 = vunpack.c.l.b16 %v1683
    %v2715 = vunpack.c.l.b16 %v1684
    %v2716 = vunpack.c.l.b16 %v1685
    %v2717 = vunpack.c.l.b16 %v1686
    %v2718 = vunpack.c.l.b16 %v1687
    %v2719 = vunpack.c.l.b16 %v1688
    %v2720 = vunpack.c.l.b16 %v1689
    %v2721 = vunpack.c.l.b16 %v1690
    %v2722 = vunpack.c.l.b16 %v1691
    %v2723 = vunpack.c.l.b16 %v1692
    %v2724 = vunpack.c.l.b16 %v1693
    %v2725 = vunpack.c.l.b16 %v1694
    %v2726 = vunpack.c.l.b16 %v1695
    %v2727 = vunpack.c.l.b16 %v1696
    %v2728 = vunpack.c.l.b16 %v1697
    %v2729 = vunpack.c.l.b16 %v1698
    %v2730 = vunpack.c.l.b16 %v1699
    %v2731 = vunpack.c.l.b16 %v1700
    %v2732 = vunpack.c.l.b16 %v1701
    %v2733 = vunpack.c.l.b16 %v1702
    %v2734 = vunpack.c.l.b16 %v1703
    %v2735 = vunpack.c.l.b16 %v1704
    %v2736 = vunpack.c.l.b16 %v1705
    %v2737 = vunpack.c.l.b16 %v1706
    %v2738 = vunpack.c.l.b16 %v1707
    %v2739 = vunpack.c.l.b16 %v1708
    %v2740 = vunpack.c.l.b16 %v1709
    %v2741 = vunpack.c.l.b16 %v1710
    %v2742 = vunpack.c.l.b16 %v1711
    %v2743 = vunpack.c.l.b16 %v1712
    %v2744 = vunpack.c.l.b16 %v1713
    %v2745 = vunpack.c.l.b16 %v1714
    %v2746 = vunpack.c.l.b16 %v1715
    %v2747 = vunpack.c.l.b16 %v1716
    %v2748 = vunpack.c.l.b16 %v1717
    %v2749 = vunpack.c.l.b16 %v1718
    %v2750 = vunpack.c.l.b16 %v1719
    %v2751 = vunpack.c.l.b16 %v1720
    %v2752 = vunpack.c.l.b16 %v1721
    %v2753 = vunpack.c.l.b16 %v1722
    %v2754 = vunpack.c.l.b16 %v1723
    %v2755 = vunpack.c.l.b16 %v1724
    %v2756 = vunpack.c.l.b16 %v1725
    %v2757 = vunpack.c.l.b16 %v1726
    %v2758 = vunpack.c.l.b16 %v1727
    %v2759 = vunpack.c.l.b16 %v1728
    %v2760 = vunpack.c.l.b16 %v1729
    %v2761 = vunpack.c.l.b16 %v1730
    %v2762 = vunpack.c.l.b16 %v1731
    %v2763 = vunpack.c.l.b16 %v1732
    %v2764 = vunpack.c.l.b16 %v1733
    %v2765 = vunpack.c.l.b16 %v1734
    %v2766 = vunpack.c.l.b16 %v1735
    %v2767 = vunpack.c.l.b16 %v1736
    %v2768 = vunpack.c.l.b16 %v1737
    %v2769 = vunpack.c.l.b16 %v1738
    %v2770 = vunpack.c.l.b16 %v1739
    %v2771 = vunpack.c.l.b16 %v1740
    %v2772 = vunpack.c.l.b16 %v1741
    %v2773 = vunpack.c.l.b16 %v1742
    %v2774 = vunpack.c.l.b16 %v1743
    %v2775 = vunpack.c.l.b16 %v1744
    %v2776 = vunpack.c.l.b16 %v1745
    %v2777 = vunpack.c.l.b16 %v1746
    %v2778 = vunpack.c.l.b16 %v1747
    %v2779 = vunpack.c.l.b16 %v1748
    %v2780 = vunpack.c.l.b16 %v1749
    %v2781 = vunpack.c.l.b16 %v1750
    %v2782 = vunpack.c.l.b16 %v1751
    %v2783 = vunpack.c.l.b16 %v1752
    %v2784 = vunpack.c.l.b16 %v1753
    %v2785 = vunpack.c.l.b16 %v1754
    %v2786 = vunpack.c.l.b16 %v1755
    %v2787 = vunpack.c.l.b16 %v1756
    %v2788 = vunpack.c.l.b16 %v1757
    %v2789 = vunpack.c.l.b16 %v1758
    %v2790 = vunpack.c.l.b16 %v1759
    %v2791 = vunpack.c.l.b16 %v1760
    %v2792 = vunpack.c.l.b16 %v1761
    %v2793 = vunpack.c.l.b16 %v1762
    %v2794 = vunpack.c.l.b16 %v1763
    %v2795 = vunpack.c.l.b16 %v1764
    %v2796 = vunpack.c.l.b16 %v1765
    %v2797 = vunpack.c.l.b16 %v1766
    %v2798 = vunpack.c.l.b16 %v1767
    %v2799 = vunpack.c.l.b16 %v1768
    %v2800 = vunpack.c.l.b16 %v1769
    %v2801 = vunpack.c.l.b16 %v1770
    %v2802 = vunpack.c.l.b16 %v1771
    %v2803 = vunpack.c.l.b16 %v1772
    %v2804 = vunpack.c.l.b16 %v1773
    %v2805 = vunpack.c.l.b16 %v1774
    %v2806 = vunpack.c.l.b16 %v1775
    %v2807 = vunpack.c.l.b16 %v1776
    %v2808 = vunpack.c.l.b16 %v1777
    %v2809 = vunpack.c.l.b16 %v1778
    %v2810 = vunpack.c.l.b16 %v1779
    %v2811 = vunpack.c.l.b16 %v1780
    %v2812 = vunpack.c.l.b16 %v1781
    %v2813 = vunpack.c.l.b16 %v1782
    %v2814 = vunpack.c.l.b16 %v1783
    %v2815 = vunpack.c.l.b16 %v1784
    %v2816 = vunpack.c.l.b16 %v1785
    %v2817 = vunpack.c.l.b16 %v1786
    %v2818 = vunpack.c.l.b16 %v1787
    %v2819 = vunpack.c.l.b16 %v1788
    %v2820 = vunpack.c.l.b16 %v1789
    %v2821 = vunpack.c.l.b16 %v1790
    %v2822 = vunpack.c.l.b16 %v1791
    %v2823 = vunpack.c.l.b16 %v1792
    %v2824 = vunpack.c.l.b16 %v1793
    %v2825 = vunpack.c.l.b16 %v1794
    %v2826 = vunpack.c.l.b16 %v1795
    %v2827 = vunpack.c.l.b16 %v1796
    %v2828 = vunpack.c.l.b16 %v1797
    %v2829 = vunpack.c.l.b16 %v1798
    %v2830 = vunpack.c.l.b16 %v1799
    %v2831 = vunpack.c.l.b16 %v1800
    %v2832 = vunpack.c.l.b16 %v1801
    %v2833 = vunpack.c.l.b16 %v1802
    %v2834 = vunpack.c.l.b16 %v1803
    %v2835 = vunpack.c.l.b16 %v1804
    %v2836 = vunpack.c.l.b16 %v1805
    %v2837 = vunpack.c.l.b16 %v1806
    %v2838 = vunpack.c.l.b16 %v1807
    %v2839 = vunpack.c.l.b16 %v1808
    %v2840 = vunpack.c.l.b16 %v1809
    %v2841 = vunpack.c.l.b16 %v1810
    %v2842 = vunpack.c.l.b16 %v1811
    %v2843 = vpack.c.b16 %v2332, %v2331
    %v2844 = vpack.c.b16 %v2334, %v2333
    %v2845 = vpack.c.b16 %v2336, %v2335
    %v2846 = vpack.c.b16 %v2338, %v2337
    %v2847 = vpack.c.b16 %v2340, %v2339
    %v2848 = vpack.c.b16 %v2342, %v2341
    %v2849 = vpack.c.b16 %v2344, %v2343
    %v2850 = vpack.c.b16 %v2346, %v2345
    %v2851 = vpack.c.b16 %v2348, %v2347
    %v2852 = vpack.c.b16 %v2350, %v2349
    %v2853 = vpack.c.b16 %v2352, %v2351
    %v2854 = vpack.c.b16 %v2354, %v2353
    %v2855 = vpack.c.b16 %v2356, %v2355
    %v2856 = vpack.c.b16 %v2358, %v2357
    %v2857 = vpack.c.b16 %v2360, %v2359
    %v2858 = vpack.c.b16 %v2362, %v2361
    %v2859 = vpack.c.b16 %v2364, %v2363
    %v2860 = vpack.c.b16 %v2366, %v2365
    %v2861 = vpack.c.b16 %v2368, %v2367
    %v2862 = vpack.c.b16 %v2370, %v2369
    %v2863 = vpack.c.b16 %v2372, %v2371
    %v2864 = vpack.c.b16 %v2374, %v2373
    %v2865 = vpack.c.b16 %v2376, %v2375
    %v2866 = vpack.c.b16 %v2378, %v2377
    %v2867 = vpack.c.b16 %v2380, %v2379
    %v2868 = vpack.c.b16 %v2382, %v2381
    %v2869 = vpack.c.b16 %v2384, %v2383
    %v2870 = vpack.c.b16 %v2386, %v2385
    %v2871 = vpack.c.b16 %v2388, %v2387
    %v2872 = vpack.c.b16 %v2390, %v2389
    %v2873 = vpack.c.b16 %v2392, %v2391
    %v2874 = vpack.c.b16 %v2394, %v2393
    %v2875 = vpack.c.b16 %v2396, %v2395
    %v2876 = vpack.c.b16 %v2398, %v2397
    %v2877 = vpack.c.b16 %v2400, %v2399
    %v2878 = vpack.c.b16 %v2402, %v2401
    %v2879 = vpack.c.b16 %v2404, %v2403
    %v2880 = vpack.c.b16 %v2406, %v2405
    %v2881 = vpack.c.b16 %v2408, %v2407
    %v2882 = vpack.c.b16 %v2410, %v2409
    %v2883 = vpack.c.b16 %v2412, %v2411
    %v2884 = vpack.c.b16 %v2414, %v2413
    %v2885 = vpack.c.b16 %v2416, %v2415
    %v2886 = vpack.c.b16 %v2418, %v2417
    %v2887 = vpack.c.b16 %v2420, %v2419
    %v2888 = vpack.c.b16 %v2422, %v2421
    %v2889 = vpack.c.b16 %v2424, %v2423
    %v2890 = vpack.c.b16 %v2426, %v2425
    %v2891 = vpack.c.b16 %v2428, %v2427
    %v2892 = vpack.c.b16 %v2430, %v2429
    %v2893 = vpack.c.b16 %v2432, %v2431
    %v2894 = vpack.c.b16 %v2434, %v2433
    %v2895 = vpack.c.b16 %v2436, %v2435
    %v2896 = vpack.c.b16 %v2438, %v2437
    %v2897 = vpack.c.b16 %v2440, %v2439
    %v2898 = vpack.c.b16 %v2442, %v2441
    %v2899 = vpack.c.b16 %v2444, %v2443
    %v2900 = vpack.c.b16 %v2446, %v2445
    %v2901 = vpack.c.b16 %v2448, %v2447
    %v2902 = vpack.c.b16 %v2450, %v2449
    %v2903 = vpack.c.b16 %v2452, %v2451
    %v2904 = vpack.c.b16 %v2454, %v2453
    %v2905 = vpack.c.b16 %v2456, %v2455
    %v2906 = vpack.c.b16 %v2458, %v2457
    %v2907 = vpack.c.b16 %v2460, %v2459
    %v2908 = vpack.c.b16 %v2462, %v2461
    %v2909 = vpack.c.b16 %v2464, %v2463
    %v2910 = vpack.c.b16 %v2466, %v2465
    %v2911 = vpack.c.b16 %v2468, %v2467
    %v2912 = vpack.c.b16 %v2470, %v2469
    %v2913 = vpack.c.b16 %v2472, %v2471
    %v2914 = vpack.c.b16 %v2474, %v2473
    %v2915 = vpack.c.b16 %v2476, %v2475
    %v2916 = vpack.c.b16 %v2478, %v2477
    %v2917 = vpack.c.b16 %v2480, %v2479
    %v2918 = vpack.c.b16 %v2482, %v2481
    %v2919 = vpack.c.b16 %v2484, %v2483
    %v2920 = vpack.c.b16 %v2486, %v2485
    %v2921 = vpack.c.b16 %v2488, %v2487
    %v2922 = vpack.c.b16 %v2490, %v2489
    %v2923 = vpack.c.b16 %v2492, %v2491
    %v2924 = vpack.c.b16 %v2494, %v2493
    %v2925 = vpack.c.b16 %v2496, %v2495
    %v2926 = vpack.c.b16 %v2498, %v2497
    %v2927 = vpack.c.b16 %v2500, %v2499
    %v2928 = vpack.c.b16 %v2502, %v2501
    %v2929 = vpack.c.b16 %v2504, %v2503
    %v2930 = vpack.c.b16 %v2506, %v2505
    %v2931 = vpack.c.b16 %v2508, %v2507
    %v2932 = vpack.c.b16 %v2510, %v2509
    %v2933 = vpack.c.b16 %v2512, %v2511
    %v2934 = vpack.c.b16 %v2514, %v2513
    %v2935 = vpack.c.b16 %v2516, %v2515
    %v2936 = vpack.c.b16 %v2518, %v2517
    %v2937 = vpack.c.b16 %v2520, %v2519
    %v2938 = vpack.c.b16 %v2522, %v2521
    %v2939 = vpack.c.b16 %v2524, %v2523
    %v2940 = vpack.c.b16 %v2526, %v2525
    %v2941 = vpack.c.b16 %v2528, %v2527
    %v2942 = vpack.c.b16 %v2530, %v2529
    %v2943 = vpack.c.b16 %v2532, %v2531
    %v2944 = vpack.c.b16 %v2534, %v2533
    %v2945 = vpack.c.b16 %v2536, %v2535
    %v2946 = vpack.c.b16 %v2538, %v2537
    %v2947 = vpack.c.b16 %v2540, %v2539
    %v2948 = vpack.c.b16 %v2542, %v2541
    %v2949 = vpack.c.b16 %v2544, %v2543
    %v2950 = vpack.c.b16 %v2546, %v2545
    %v2951 = vpack.c.b16 %v2548, %v2547
    %v2952 = vpack.c.b16 %v2550, %v2549
    %v2953 = vpack.c.b16 %v2552, %v2551
    %v2954 = vpack.c.b16 %v2554, %v2553
    %v2955 = vpack.c.b16 %v2556, %v2555
    %v2956 = vpack.c.b16 %v2558, %v2557
    %v2957 = vpack.c.b16 %v2560, %v2559
    %v2958 = vpack.c.b16 %v2562, %v2561
    %v2959 = vpack.c.b16 %v2564, %v2563
    %v2960 = vpack.c.b16 %v2566, %v2565
    %v2961 = vpack.c.b16 %v2568, %v2567
    %v2962 = vpack.c.b16 %v2570, %v2569
    %v2963 = vpack.c.b16 %v2572, %v2571
    %v2964 = vpack.c.b16 %v2574, %v2573
    %v2965 = vpack.c.b16 %v2576, %v2575
    %v2966 = vpack.c.b16 %v2578, %v2577
    %v2967 = vpack.c.b16 %v2580, %v2579
    %v2968 = vpack.c.b16 %v2582, %v2581
    %v2969 = vpack.c.b16 %v2584, %v2583
    %v2970 = vpack.c.b16 %v2586, %v2585
    %v2971 = vpack.c.b16 %v2588, %v2587
    %v2972 = vpack.c.b16 %v2590, %v2589
    %v2973 = vpack.c.b16 %v2592, %v2591
    %v2974 = vpack.c.b16 %v2594, %v2593
    %v2975 = vpack.c.b16 %v2596, %v2595
    %v2976 = vpack.c.b16 %v2598, %v2597
    %v2977 = vpack.c.b16 %v2600, %v2599
    %v2978 = vpack.c.b16 %v2602, %v2601
    %v2979 = vpack.c.b16 %v2604, %v2603
    %v2980 = vpack.c.b16 %v2606, %v2605
    %v2981 = vpack.c.b16 %v2608, %v2607
    %v2982 = vpack.c.b16 %v2610, %v2609
    %v2983 = vpack.c.b16 %v2612, %v2611
    %v2984 = vpack.c.b16 %v2614, %v2613
    %v2985 = vpack.c.b16 %v2616, %v2615
    %v2986 = vpack.c.b16 %v2618, %v2617
    %v2987 = vpack.c.b16 %v2620, %v2619
    %v2988 = vpack.c.b16 %v2622, %v2621
    %v2989 = vpack.c.b16 %v2624, %v2623
    %v2990 = vpack.c.b16 %v2626, %v2625
    %v2991 = vpack.c.b16 %v2628, %v2627
    %v2992 = vpack.c.b16 %v2630, %v2629
    %v2993 = vpack.c.b16 %v2632, %v2631
    %v2994 = vpack.c.b16 %v2634, %v2633
    %v2995 = vpack.c.b16 %v2636, %v2635
    %v2996 = vpack.c.b16 %v2638, %v2637
    %v2997 = vpack.c.b16 %v2640, %v2639
    %v2998 = vpack.c.b16 %v2642, %v2641
    %v2999 = vpack.c.b16 %v2644, %v2643
    %v3000 = vpack.c.b16 %v2646, %v2645
    %v3001 = vpack.c.b16 %v2648, %v2647
    %v3002 = vpack.c.b16 %v2650, %v2649
    %v3003 = vpack.c.b16 %v2652, %v2651
    %v3004 = vpack.c.b16 %v2654, %v2653
    %v3005 = vpack.c.b16 %v2656, %v2655
    %v3006 = vpack.c.b16 %v2658, %v2657
    %v3007 = vpack.c.b16 %v2660, %v2659
    %v3008 = vpack.c.b16 %v2662, %v2661
    %v3009 = vpack.c.b16 %v2664, %v2663
    %v3010 = vpack.c.b16 %v2666, %v2665
    %v3011 = vpack.c.b16 %v2668, %v2667
    %v3012 = vpack.c.b16 %v2670, %v2669
    %v3013 = vpack.c.b16 %v2672, %v2671
    %v3014 = vpack.c.b16 %v2674, %v2673
    %v3015 = vpack.c.b16 %v2676, %v2675
    %v3016 = vpack.c.b16 %v2678, %v2677
    %v3017 = vpack.c.b16 %v2680, %v2679
    %v3018 = vpack.c.b16 %v2682, %v2681
    %v3019 = vpack.c.b16 %v2684, %v2683
    %v3020 = vpack.c.b16 %v2686, %v2685
    %v3021 = vpack.c.b16 %v2688, %v2687
    %v3022 = vpack.c.b16 %v2690, %v2689
    %v3023 = vpack.c.b16 %v2692, %v2691
    %v3024 = vpack.c.b16 %v2694, %v2693
    %v3025 = vpack.c.b16 %v2696, %v2695
    %v3026 = vpack.c.b16 %v2698, %v2697
    %v3027 = vpack.c.b16 %v2700, %v2699
    %v3028 = vpack.c.b16 %v2702, %v2701
    %v3029 = vpack.c.b16 %v2704, %v2703
    %v3030 = vpack.c.b16 %v2706, %v2705
    %v3031 = vpack.c.b16 %v2708, %v2707
    %v3032 = vpack.c.b16 %v2710, %v2709
    %v3033 = vpack.c.b16 %v2712, %v2711
    %v3034 = vpack.c.b16 %v2714, %v2713
    %v3035 = vpack.c.b16 %v2716, %v2715
    %v3036 = vpack.c.b16 %v2718, %v2717
    %v3037 = vpack.c.b16 %v2720, %v2719
    %v3038 = vpack.c.b16 %v2722, %v2721
    %v3039 = vpack.c.b16 %v2724, %v2723
    %v3040 = vpack.c.b16 %v2726, %v2725
    %v3041 = vpack.c.b16 %v2728, %v2727
    %v3042 = vpack.c.b16 %v2730, %v2729
    %v3043 = vpack.c.b16 %v2732, %v2731
    %v3044 = vpack.c.b16 %v2734, %v2733
    %v3045 = vpack.c.b16 %v2736, %v2735
    %v3046 = vpack.c.b16 %v2738, %v2737
    %v3047 = vpack.c.b16 %v2740, %v2739
    %v3048 = vpack.c.b16 %v2742, %v2741
    %v3049 = vpack.c.b16 %v2744, %v2743
    %v3050 = vpack.c.b16 %v2746, %v2745
    %v3051 = vpack.c.b16 %v2748, %v2747
    %v3052 = vpack.c.b16 %v2750, %v2749
    %v3053 = vpack.c.b16 %v2752, %v2751
    %v3054 = vpack.c.b16 %v2754, %v2753
    %v3055 = vpack.c.b16 %v2756, %v2755
    %v3056 = vpack.c.b16 %v2758, %v2757
    %v3057 = vpack.c.b16 %v2760, %v2759
    %v3058 = vpack.c.b16 %v2762, %v2761
    %v3059 = vpack.c.b16 %v2764, %v2763
    %v3060 = vpack.c.b16 %v2766, %v2765
    %v3061 = vpack.c.b16 %v2768, %v2767
    %v3062 = vpack.c.b16 %v2770, %v2769
    %v3063 = vpack.c.b16 %v2772, %v2771
    %v3064 = vpack.c.b16 %v2774, %v2773
    %v3065 = vpack.c.b16 %v2776, %v2775
    %v3066 = vpack.c.b16 %v2778, %v2777
    %v3067 = vpack.c.b16 %v2780, %v2779
    %v3068 = vpack.c.b16 %v2782, %v2781
    %v3069 = vpack.c.b16 %v2784, %v2783
    %v3070 = vpack.c.b16 %v2786, %v2785
    %v3071 = vpack.c.b16 %v2788, %v2787
    %v3072 = vpack.c.b16 %v2790, %v2789
    %v3073 = vpack.c.b16 %v2792, %v2791
    %v3074 = vpack.c.b16 %v2794, %v2793
    %v3075 = vpack.c.b16 %v2796, %v2795
    %v3076 = vpack.c.b16 %v2798, %v2797
    %v3077 = vpack.c.b16 %v2800, %v2799
    %v3078 = vpack.c.b16 %v2802, %v2801
    %v3079 = vpack.c.b16 %v2804, %v2803
    %v3080 = vpack.c.b16 %v2806, %v2805
    %v3081 = vpack.c.b16 %v2808, %v2807
    %v3082 = vpack.c.b16 %v2810, %v2809
    %v3083 = vpack.c.b16 %v2812, %v2811
    %v3084 = vpack.c.b16 %v2814, %v2813
    %v3085 = vpack.c.b16 %v2816, %v2815
    %v3086 = vpack.c.b16 %v2818, %v2817
    %v3087 = vpack.c.b16 %v2820, %v2819
    %v3088 = vpack.c.b16 %v2822, %v2821
    %v3089 = vpack.c.b16 %v2824, %v2823
    %v3090 = vpack.c.b16 %v2826, %v2825
    %v3091 = vpack.c.b16 %v2828, %v2827
    %v3092 = vpack.c.b16 %v2830, %v2829
    %v3093 = vpack.c.b16 %v2832, %v2831
    %v3094 = vpack.c.b16 %v2834, %v2833
    %v3095 = vpack.c.b16 %v2836, %v2835
    %v3096 = vpack.c.b16 %v2838, %v2837
    %v3097 = vpack.c.b16 %v2840, %v2839
    %v3098 = vpack.c.b16 %v2842, %v2841
    %3355 = vmatprep.subr.bf16.mxu0 0
    %3356 = vmatpush1.bf16.msra.mxu0 %v2850
    %3357 = vmatprep.subr.bf16.mxu0 0
    %3358 = vmatpush1.bf16.msra.mxu0 %v2849
    %3359 = vmatprep.subr.bf16.mxu0 0
    %3360 = vmatpush1.bf16.msra.mxu0 %v2848
    %3361 = vmatprep.subr.bf16.mxu0 0
    %3362 = vmatpush1.bf16.msra.mxu0 %v2847
    %3363 = vmatprep.subr.bf16.mxu0 0
    %3364 = vmatpush1.bf16.msra.mxu0 %v2846
    %3365 = vmatprep.subr.bf16.mxu0 0
    %3366 = vmatpush1.bf16.msra.mxu0 %v2845
    %3367 = vmatprep.subr.bf16.mxu0 0
    %3368 = vmatpush1.bf16.msra.mxu0 %v2844
    %3369 = vmatprep.subr.bf16.mxu0 0
    %3370 = vmatpush1.bf16.msra.mxu0 %v2843
    %3371 = vmatprep.subr.bf16.mxu0 0
    %3372 = vmatpush2.bf16.msra.mxu0 %v2858
    %3373 = vmatprep.subr.bf16.mxu0 0
    %3374 = vmatpush2.bf16.msra.mxu0 %v2857
    %3375 = vmatprep.subr.bf16.mxu0 0
    %3376 = vmatpush2.bf16.msra.mxu0 %v2856
    %3377 = vmatprep.subr.bf16.mxu0 0
    %3378 = vmatpush2.bf16.msra.mxu0 %v2855
    %3379 = vmatprep.subr.bf16.mxu0 0
    %3380 = vmatpush2.bf16.msra.mxu0 %v2854
    %3381 = vmatprep.subr.bf16.mxu0 0
    %3382 = vmatpush2.bf16.msra.mxu0 %v2853
    %3383 = vmatprep.subr.bf16.mxu0 0
    %3384 = vmatpush2.bf16.msra.mxu0 %v2852
    %3385 = vmatprep.subr.bf16.mxu0 0
    %3386 = vmatpush2.bf16.msra.mxu0 %v2851
    %3387 = vmatprep.mubr.bf16.mxu0 %v1269
    %3388 = vmatmul.mubr.bf16.gmra.mxu0 %v1268
    %v3389 = vpop.f32.mrf.mxu0
    %v3390 = vadd.f32 %v1817, %v3389
    %v3391 = vpop.f32.mrf.mxu0
    %v3392 = vpop.f32.mrf.mxu0
    %v3393 = vpop.f32.mrf.mxu0
    %3394 = vdwg.mxu0
    %3395 = vmatprep.subr.bf16.mxu0 0
    %3396 = vmatpush1.bf16.msra.mxu0 %v2866
    %3397 = vmatprep.subr.bf16.mxu0 0
    %3398 = vmatpush1.bf16.msra.mxu0 %v2865
    %3399 = vmatprep.subr.bf16.mxu0 0
    %3400 = vmatpush1.bf16.msra.mxu0 %v2864
    %3401 = vmatprep.subr.bf16.mxu0 0
    %3402 = vmatpush1.bf16.msra.mxu0 %v2863
    %3403 = vmatprep.subr.bf16.mxu0 0
    %3404 = vmatpush1.bf16.msra.mxu0 %v2862
    %3405 = vmatprep.subr.bf16.mxu0 0
    %3406 = vmatpush1.bf16.msra.mxu0 %v2861
    %3407 = vmatprep.subr.bf16.mxu0 0
    %3408 = vmatpush1.bf16.msra.mxu0 %v2860
    %3409 = vmatprep.subr.bf16.mxu0 0
    %3410 = vmatpush1.bf16.msra.mxu0 %v2859
    %3411 = vmatprep.subr.bf16.mxu0 0
    %3412 = vmatpush2.bf16.msra.mxu0 %v2874
    %3413 = vmatprep.subr.bf16.mxu0 0
    %3414 = vmatpush2.bf16.msra.mxu0 %v2873
    %3415 = vmatprep.subr.bf16.mxu0 0
    %3416 = vmatpush2.bf16.msra.mxu0 %v2872
    %3417 = vmatprep.subr.bf16.mxu0 0
    %3418 = vmatpush2.bf16.msra.mxu0 %v2871
    %3419 = vmatprep.subr.bf16.mxu0 0
    %3420 = vmatpush2.bf16.msra.mxu0 %v2870
    %3421 = vmatprep.subr.bf16.mxu0 0
    %3422 = vmatpush2.bf16.msra.mxu0 %v2869
    %3423 = vmatprep.subr.bf16.mxu0 0
    %3424 = vmatpush2.bf16.msra.mxu0 %v2868
    %3425 = vmatprep.subr.bf16.mxu0 0
    %3426 = vmatpush2.bf16.msra.mxu0 %v2867
    %3427 = vmatprep.mubr.bf16.mxu0 %v1271
    %3428 = vmatmul.mubr.bf16.gmra.mxu0 %v1270
    %v3429 = vpop.f32.mrf.mxu0
    %v3430 = vadd.f32 %v3390, %v3429
    %v3431 = vpop.f32.mrf.mxu0
    %v3432 = vpop.f32.mrf.mxu0
    %v3433 = vpop.f32.mrf.mxu0
    %3434 = vdwg.mxu0
    %3435 = vmatprep.subr.bf16.mxu0 0
    %3436 = vmatpush1.bf16.msra.mxu0 %v2882
    %3437 = vmatprep.subr.bf16.mxu0 0
    %3438 = vmatpush1.bf16.msra.mxu0 %v2881
    %3439 = vmatprep.subr.bf16.mxu0 0
    %3440 = vmatpush1.bf16.msra.mxu0 %v2880
    %3441 = vmatprep.subr.bf16.mxu0 0
    %3442 = vmatpush1.bf16.msra.mxu0 %v2879
    %3443 = vmatprep.subr.bf16.mxu0 0
    %3444 = vmatpush1.bf16.msra.mxu0 %v2878
    %3445 = vmatprep.subr.bf16.mxu0 0
    %3446 = vmatpush1.bf16.msra.mxu0 %v2877
    %3447 = vmatprep.subr.bf16.mxu0 0
    %3448 = vmatpush1.bf16.msra.mxu0 %v2876
    %3449 = vmatprep.subr.bf16.mxu0 0
    %3450 = vmatpush1.bf16.msra.mxu0 %v2875
    %3451 = vmatprep.subr.bf16.mxu0 0
    %3452 = vmatpush2.bf16.msra.mxu0 %v2890
    %3453 = vmatprep.subr.bf16.mxu0 0
    %3454 = vmatpush2.bf16.msra.mxu0 %v2889
    %3455 = vmatprep.subr.bf16.mxu0 0
    %3456 = vmatpush2.bf16.msra.mxu0 %v2888
    %3457 = vmatprep.subr.bf16.mxu0 0
    %3458 = vmatpush2.bf16.msra.mxu0 %v2887
    %3459 = vmatprep.subr.bf16.mxu0 0
    %3460 = vmatpush2.bf16.msra.mxu0 %v2886
    %3461 = vmatprep.subr.bf16.mxu0 0
    %3462 = vmatpush2.bf16.msra.mxu0 %v2885
    %3463 = vmatprep.subr.bf16.mxu0 0
    %3464 = vmatpush2.bf16.msra.mxu0 %v2884
    %3465 = vmatprep.subr.bf16.mxu0 0
    %3466 = vmatpush2.bf16.msra.mxu0 %v2883
    %3467 = vmatprep.mubr.bf16.mxu0 %v1273
    %3468 = vmatmul.mubr.bf16.gmra.mxu0 %v1272
    %v3469 = vpop.f32.mrf.mxu0
    %v3470 = vadd.f32 %v3430, %v3469
    %v3471 = vpop.f32.mrf.mxu0
    %v3472 = vpop.f32.mrf.mxu0
    %v3473 = vpop.f32.mrf.mxu0
    %3474 = vdwg.mxu0
    %3475 = vmatprep.subr.bf16.mxu0 0
    %3476 = vmatpush1.bf16.msra.mxu0 %v2898
    %3477 = vmatprep.subr.bf16.mxu0 0
    %3478 = vmatpush1.bf16.msra.mxu0 %v2897
    %3479 = vmatprep.subr.bf16.mxu0 0
    %3480 = vmatpush1.bf16.msra.mxu0 %v2896
    %3481 = vmatprep.subr.bf16.mxu0 0
    %3482 = vmatpush1.bf16.msra.mxu0 %v2895
    %3483 = vmatprep.subr.bf16.mxu0 0
    %3484 = vmatpush1.bf16.msra.mxu0 %v2894
    %3485 = vmatprep.subr.bf16.mxu0 0
    %3486 = vmatpush1.bf16.msra.mxu0 %v2893
    %3487 = vmatprep.subr.bf16.mxu0 0
    %3488 = vmatpush1.bf16.msra.mxu0 %v2892
    %3489 = vmatprep.subr.bf16.mxu0 0
    %3490 = vmatpush1.bf16.msra.mxu0 %v2891
    %3491 = vmatprep.subr.bf16.mxu0 0
    %3492 = vmatpush2.bf16.msra.mxu0 %v2906
    %3493 = vmatprep.subr.bf16.mxu0 0
    %3494 = vmatpush2.bf16.msra.mxu0 %v2905
    %3495 = vmatprep.subr.bf16.mxu0 0
    %3496 = vmatpush2.bf16.msra.mxu0 %v2904
    %3497 = vmatprep.subr.bf16.mxu0 0
    %3498 = vmatpush2.bf16.msra.mxu0 %v2903
    %3499 = vmatprep.subr.bf16.mxu0 0
    %3500 = vmatpush2.bf16.msra.mxu0 %v2902
    %3501 = vmatprep.subr.bf16.mxu0 0
    %3502 = vmatpush2.bf16.msra.mxu0 %v2901
    %3503 = vmatprep.subr.bf16.mxu0 0
    %3504 = vmatpush2.bf16.msra.mxu0 %v2900
    %3505 = vmatprep.subr.bf16.mxu0 0
    %3506 = vmatpush2.bf16.msra.mxu0 %v2899
    %3507 = vmatprep.mubr.bf16.mxu0 %v1275
    %3508 = vmatmul.mubr.bf16.gmra.mxu0 %v1274
    %v3509 = vpop.f32.mrf.mxu0
    %v3510 = vadd.f32 %v3470, %v3509
    %v3511 = vpop.f32.mrf.mxu0
    %v3512 = vpop.f32.mrf.mxu0
    %v3513 = vpop.f32.mrf.mxu0
    %3514 = vdwg.mxu0
    %3515 = vmatprep.subr.bf16.mxu0 0
    %3516 = vmatpush1.bf16.msra.mxu0 %v2914
    %3517 = vmatprep.subr.bf16.mxu0 0
    %3518 = vmatpush1.bf16.msra.mxu0 %v2913
    %3519 = vmatprep.subr.bf16.mxu0 0
    %3520 = vmatpush1.bf16.msra.mxu0 %v2912
    %3521 = vmatprep.subr.bf16.mxu0 0
    %3522 = vmatpush1.bf16.msra.mxu0 %v2911
    %3523 = vmatprep.subr.bf16.mxu0 0
    %3524 = vmatpush1.bf16.msra.mxu0 %v2910
    %3525 = vmatprep.subr.bf16.mxu0 0
    %3526 = vmatpush1.bf16.msra.mxu0 %v2909
    %3527 = vmatprep.subr.bf16.mxu0 0
    %3528 = vmatpush1.bf16.msra.mxu0 %v2908
    %3529 = vmatprep.subr.bf16.mxu0 0
    %3530 = vmatpush1.bf16.msra.mxu0 %v2907
    %3531 = vmatprep.subr.bf16.mxu0 0
    %3532 = vmatpush2.bf16.msra.mxu0 %v2922
    %3533 = vmatprep.subr.bf16.mxu0 0
    %3534 = vmatpush2.bf16.msra.mxu0 %v2921
    %3535 = vmatprep.subr.bf16.mxu0 0
    %3536 = vmatpush2.bf16.msra.mxu0 %v2920
    %3537 = vmatprep.subr.bf16.mxu0 0
    %3538 = vmatpush2.bf16.msra.mxu0 %v2919
    %3539 = vmatprep.subr.bf16.mxu0 0
    %3540 = vmatpush2.bf16.msra.mxu0 %v2918
    %3541 = vmatprep.subr.bf16.mxu0 0
    %3542 = vmatpush2.bf16.msra.mxu0 %v2917
    %3543 = vmatprep.subr.bf16.mxu0 0
    %3544 = vmatpush2.bf16.msra.mxu0 %v2916
    %3545 = vmatprep.subr.bf16.mxu0 0
    %3546 = vmatpush2.bf16.msra.mxu0 %v2915
    %3547 = vmatprep.mubr.bf16.mxu0 %v1277
    %3548 = vmatmul.mubr.bf16.gmra.mxu0 %v1276
    %v3549 = vpop.f32.mrf.mxu0
    %v3550 = vadd.f32 %v3510, %v3549
    %v3551 = vpop.f32.mrf.mxu0
    %v3552 = vpop.f32.mrf.mxu0
    %v3553 = vpop.f32.mrf.mxu0
    %3554 = vdwg.mxu0
    %3555 = vmatprep.subr.bf16.mxu0 0
    %3556 = vmatpush1.bf16.msra.mxu0 %v2930
    %3557 = vmatprep.subr.bf16.mxu0 0
    %3558 = vmatpush1.bf16.msra.mxu0 %v2929
    %3559 = vmatprep.subr.bf16.mxu0 0
    %3560 = vmatpush1.bf16.msra.mxu0 %v2928
    %3561 = vmatprep.subr.bf16.mxu0 0
    %3562 = vmatpush1.bf16.msra.mxu0 %v2927
    %3563 = vmatprep.subr.bf16.mxu0 0
    %3564 = vmatpush1.bf16.msra.mxu0 %v2926
    %3565 = vmatprep.subr.bf16.mxu0 0
    %3566 = vmatpush1.bf16.msra.mxu0 %v2925
    %3567 = vmatprep.subr.bf16.mxu0 0
    %3568 = vmatpush1.bf16.msra.mxu0 %v2924
    %3569 = vmatprep.subr.bf16.mxu0 0
    %3570 = vmatpush1.bf16.msra.mxu0 %v2923
    %3571 = vmatprep.subr.bf16.mxu0 0
    %3572 = vmatpush2.bf16.msra.mxu0 %v2938
    %3573 = vmatprep.subr.bf16.mxu0 0
    %3574 = vmatpush2.bf16.msra.mxu0 %v2937
    %3575 = vmatprep.subr.bf16.mxu0 0
    %3576 = vmatpush2.bf16.msra.mxu0 %v2936
    %3577 = vmatprep.subr.bf16.mxu0 0
    %3578 = vmatpush2.bf16.msra.mxu0 %v2935
    %3579 = vmatprep.subr.bf16.mxu0 0
    %3580 = vmatpush2.bf16.msra.mxu0 %v2934
    %3581 = vmatprep.subr.bf16.mxu0 0
    %3582 = vmatpush2.bf16.msra.mxu0 %v2933
    %3583 = vmatprep.subr.bf16.mxu0 0
    %3584 = vmatpush2.bf16.msra.mxu0 %v2932
    %3585 = vmatprep.subr.bf16.mxu0 0
    %3586 = vmatpush2.bf16.msra.mxu0 %v2931
    %3587 = vmatprep.mubr.bf16.mxu0 %v1279
    %3588 = vmatmul.mubr.bf16.gmra.mxu0 %v1278
    %v3589 = vpop.f32.mrf.mxu0
    %v3590 = vadd.f32 %v3550, %v3589
    %v3591 = vpop.f32.mrf.mxu0
    %v3592 = vpop.f32.mrf.mxu0
    %v3593 = vpop.f32.mrf.mxu0
    %3594 = vdwg.mxu0
    %3595 = vmatprep.subr.bf16.mxu0 0
    %3596 = vmatpush1.bf16.msra.mxu0 %v2946
    %3597 = vmatprep.subr.bf16.mxu0 0
    %3598 = vmatpush1.bf16.msra.mxu0 %v2945
    %3599 = vmatprep.subr.bf16.mxu0 0
    %3600 = vmatpush1.bf16.msra.mxu0 %v2944
    %3601 = vmatprep.subr.bf16.mxu0 0
    %3602 = vmatpush1.bf16.msra.mxu0 %v2943
    %3603 = vmatprep.subr.bf16.mxu0 0
    %3604 = vmatpush1.bf16.msra.mxu0 %v2942
    %3605 = vmatprep.subr.bf16.mxu0 0
    %3606 = vmatpush1.bf16.msra.mxu0 %v2941
    %3607 = vmatprep.subr.bf16.mxu0 0
    %3608 = vmatpush1.bf16.msra.mxu0 %v2940
    %3609 = vmatprep.subr.bf16.mxu0 0
    %3610 = vmatpush1.bf16.msra.mxu0 %v2939
    %3611 = vmatprep.subr.bf16.mxu0 0
    %3612 = vmatpush2.bf16.msra.mxu0 %v2954
    %3613 = vmatprep.subr.bf16.mxu0 0
    %3614 = vmatpush2.bf16.msra.mxu0 %v2953
    %3615 = vmatprep.subr.bf16.mxu0 0
    %3616 = vmatpush2.bf16.msra.mxu0 %v2952
    %3617 = vmatprep.subr.bf16.mxu0 0
    %3618 = vmatpush2.bf16.msra.mxu0 %v2951
    %3619 = vmatprep.subr.bf16.mxu0 0
    %3620 = vmatpush2.bf16.msra.mxu0 %v2950
    %3621 = vmatprep.subr.bf16.mxu0 0
    %3622 = vmatpush2.bf16.msra.mxu0 %v2949
    %3623 = vmatprep.subr.bf16.mxu0 0
    %3624 = vmatpush2.bf16.msra.mxu0 %v2948
    %3625 = vmatprep.subr.bf16.mxu0 0
    %3626 = vmatpush2.bf16.msra.mxu0 %v2947
    %3627 = vmatprep.mubr.bf16.mxu0 %v1281
    %3628 = vmatmul.mubr.bf16.gmra.mxu0 %v1280
    %v3629 = vpop.f32.mrf.mxu0
    %v3630 = vadd.f32 %v3590, %v3629
    %v3631 = vpop.f32.mrf.mxu0
    %v3632 = vpop.f32.mrf.mxu0
    %v3633 = vpop.f32.mrf.mxu0
    %3634 = vdwg.mxu0
    %3635 = vmatprep.subr.bf16.mxu0 0
    %3636 = vmatpush1.bf16.msra.mxu0 %v2962
    %3637 = vmatprep.subr.bf16.mxu0 0
    %3638 = vmatpush1.bf16.msra.mxu0 %v2961
    %3639 = vmatprep.subr.bf16.mxu0 0
    %3640 = vmatpush1.bf16.msra.mxu0 %v2960
    %3641 = vmatprep.subr.bf16.mxu0 0
    %3642 = vmatpush1.bf16.msra.mxu0 %v2959
    %3643 = vmatprep.subr.bf16.mxu0 0
    %3644 = vmatpush1.bf16.msra.mxu0 %v2958
    %3645 = vmatprep.subr.bf16.mxu0 0
    %3646 = vmatpush1.bf16.msra.mxu0 %v2957
    %3647 = vmatprep.subr.bf16.mxu0 0
    %3648 = vmatpush1.bf16.msra.mxu0 %v2956
    %3649 = vmatprep.subr.bf16.mxu0 0
    %3650 = vmatpush1.bf16.msra.mxu0 %v2955
    %3651 = vmatprep.subr.bf16.mxu0 0
    %3652 = vmatpush2.bf16.msra.mxu0 %v2970
    %3653 = vmatprep.subr.bf16.mxu0 0
    %3654 = vmatpush2.bf16.msra.mxu0 %v2969
    %3655 = vmatprep.subr.bf16.mxu0 0
    %3656 = vmatpush2.bf16.msra.mxu0 %v2968
    %3657 = vmatprep.subr.bf16.mxu0 0
    %3658 = vmatpush2.bf16.msra.mxu0 %v2967
    %3659 = vmatprep.subr.bf16.mxu0 0
    %3660 = vmatpush2.bf16.msra.mxu0 %v2966
    %3661 = vmatprep.subr.bf16.mxu0 0
    %3662 = vmatpush2.bf16.msra.mxu0 %v2965
    %3663 = vmatprep.subr.bf16.mxu0 0
    %3664 = vmatpush2.bf16.msra.mxu0 %v2964
    %3665 = vmatprep.subr.bf16.mxu0 0
    %3666 = vmatpush2.bf16.msra.mxu0 %v2963
    %3667 = vmatprep.mubr.bf16.mxu0 %v1283
    %3668 = vmatmul.mubr.bf16.gmra.mxu0 %v1282
    %v3669 = vpop.f32.mrf.mxu0
    %v3670 = vadd.f32 %v3630, %v3669
    %v3671 = vpop.f32.mrf.mxu0
    %v3672 = vpop.f32.mrf.mxu0
    %v3673 = vpop.f32.mrf.mxu0
    %3674 = vdwg.mxu0
    %3675 = vmatprep.subr.bf16.mxu0 0
    %3676 = vmatpush1.bf16.msra.mxu0 %v2978
    %3677 = vmatprep.subr.bf16.mxu0 0
    %3678 = vmatpush1.bf16.msra.mxu0 %v2977
    %3679 = vmatprep.subr.bf16.mxu0 0
    %3680 = vmatpush1.bf16.msra.mxu0 %v2976
    %3681 = vmatprep.subr.bf16.mxu0 0
    %3682 = vmatpush1.bf16.msra.mxu0 %v2975
    %3683 = vmatprep.subr.bf16.mxu0 0
    %3684 = vmatpush1.bf16.msra.mxu0 %v2974
    %3685 = vmatprep.subr.bf16.mxu0 0
    %3686 = vmatpush1.bf16.msra.mxu0 %v2973
    %3687 = vmatprep.subr.bf16.mxu0 0
    %3688 = vmatpush1.bf16.msra.mxu0 %v2972
    %3689 = vmatprep.subr.bf16.mxu0 0
    %3690 = vmatpush1.bf16.msra.mxu0 %v2971
    %3691 = vmatprep.subr.bf16.mxu0 0
    %3692 = vmatpush2.bf16.msra.mxu0 %v2986
    %3693 = vmatprep.subr.bf16.mxu0 0
    %3694 = vmatpush2.bf16.msra.mxu0 %v2985
    %3695 = vmatprep.subr.bf16.mxu0 0
    %3696 = vmatpush2.bf16.msra.mxu0 %v2984
    %3697 = vmatprep.subr.bf16.mxu0 0
    %3698 = vmatpush2.bf16.msra.mxu0 %v2983
    %3699 = vmatprep.subr.bf16.mxu0 0
    %3700 = vmatpush2.bf16.msra.mxu0 %v2982
    %3701 = vmatprep.subr.bf16.mxu0 0
    %3702 = vmatpush2.bf16.msra.mxu0 %v2981
    %3703 = vmatprep.subr.bf16.mxu0 0
    %3704 = vmatpush2.bf16.msra.mxu0 %v2980
    %3705 = vmatprep.subr.bf16.mxu0 0
    %3706 = vmatpush2.bf16.msra.mxu0 %v2979
    %3707 = vmatprep.mubr.bf16.mxu0 %v1285
    %3708 = vmatmul.mubr.bf16.gmra.mxu0 %v1284
    %v3709 = vpop.f32.mrf.mxu0
    %v3710 = vadd.f32 %v3670, %v3709
    %v3711 = vpop.f32.mrf.mxu0
    %v3712 = vpop.f32.mrf.mxu0
    %v3713 = vpop.f32.mrf.mxu0
    %3714 = vdwg.mxu0
    %3715 = vmatprep.subr.bf16.mxu0 0
    %3716 = vmatpush1.bf16.msra.mxu0 %v2994
    %3717 = vmatprep.subr.bf16.mxu0 0
    %3718 = vmatpush1.bf16.msra.mxu0 %v2993
    %3719 = vmatprep.subr.bf16.mxu0 0
    %3720 = vmatpush1.bf16.msra.mxu0 %v2992
    %3721 = vmatprep.subr.bf16.mxu0 0
    %3722 = vmatpush1.bf16.msra.mxu0 %v2991
    %3723 = vmatprep.subr.bf16.mxu0 0
    %3724 = vmatpush1.bf16.msra.mxu0 %v2990
    %3725 = vmatprep.subr.bf16.mxu0 0
    %3726 = vmatpush1.bf16.msra.mxu0 %v2989
    %3727 = vmatprep.subr.bf16.mxu0 0
    %3728 = vmatpush1.bf16.msra.mxu0 %v2988
    %3729 = vmatprep.subr.bf16.mxu0 0
    %3730 = vmatpush1.bf16.msra.mxu0 %v2987
    %3731 = vmatprep.subr.bf16.mxu0 0
    %3732 = vmatpush2.bf16.msra.mxu0 %v3002
    %3733 = vmatprep.subr.bf16.mxu0 0
    %3734 = vmatpush2.bf16.msra.mxu0 %v3001
    %3735 = vmatprep.subr.bf16.mxu0 0
    %3736 = vmatpush2.bf16.msra.mxu0 %v3000
    %3737 = vmatprep.subr.bf16.mxu0 0
    %3738 = vmatpush2.bf16.msra.mxu0 %v2999
    %3739 = vmatprep.subr.bf16.mxu0 0
    %3740 = vmatpush2.bf16.msra.mxu0 %v2998
    %3741 = vmatprep.subr.bf16.mxu0 0
    %3742 = vmatpush2.bf16.msra.mxu0 %v2997
    %3743 = vmatprep.subr.bf16.mxu0 0
    %3744 = vmatpush2.bf16.msra.mxu0 %v2996
    %3745 = vmatprep.subr.bf16.mxu0 0
    %3746 = vmatpush2.bf16.msra.mxu0 %v2995
    %3747 = vmatprep.mubr.bf16.mxu0 %v1287
    %3748 = vmatmul.mubr.bf16.gmra.mxu0 %v1286
    %v3749 = vpop.f32.mrf.mxu0
    %v3750 = vadd.f32 %v3710, %v3749
    %v3751 = vpop.f32.mrf.mxu0
    %v3752 = vpop.f32.mrf.mxu0
    %v3753 = vpop.f32.mrf.mxu0
    %3754 = vdwg.mxu0
    %3755 = vmatprep.subr.bf16.mxu0 0
    %3756 = vmatpush1.bf16.msra.mxu0 %v3010
    %3757 = vmatprep.subr.bf16.mxu0 0
    %3758 = vmatpush1.bf16.msra.mxu0 %v3009
    %3759 = vmatprep.subr.bf16.mxu0 0
    %3760 = vmatpush1.bf16.msra.mxu0 %v3008
    %3761 = vmatprep.subr.bf16.mxu0 0
    %3762 = vmatpush1.bf16.msra.mxu0 %v3007
    %3763 = vmatprep.subr.bf16.mxu0 0
    %3764 = vmatpush1.bf16.msra.mxu0 %v3006
    %3765 = vmatprep.subr.bf16.mxu0 0
    %3766 = vmatpush1.bf16.msra.mxu0 %v3005
    %3767 = vmatprep.subr.bf16.mxu0 0
    %3768 = vmatpush1.bf16.msra.mxu0 %v3004
    %3769 = vmatprep.subr.bf16.mxu0 0
    %3770 = vmatpush1.bf16.msra.mxu0 %v3003
    %3771 = vmatprep.subr.bf16.mxu0 0
    %3772 = vmatpush2.bf16.msra.mxu0 %v3018
    %3773 = vmatprep.subr.bf16.mxu0 0
    %3774 = vmatpush2.bf16.msra.mxu0 %v3017
    %3775 = vmatprep.subr.bf16.mxu0 0
    %3776 = vmatpush2.bf16.msra.mxu0 %v3016
    %3777 = vmatprep.subr.bf16.mxu0 0
    %3778 = vmatpush2.bf16.msra.mxu0 %v3015
    %3779 = vmatprep.subr.bf16.mxu0 0
    %3780 = vmatpush2.bf16.msra.mxu0 %v3014
    %3781 = vmatprep.subr.bf16.mxu0 0
    %3782 = vmatpush2.bf16.msra.mxu0 %v3013
    %3783 = vmatprep.subr.bf16.mxu0 0
    %3784 = vmatpush2.bf16.msra.mxu0 %v3012
    %3785 = vmatprep.subr.bf16.mxu0 0
    %3786 = vmatpush2.bf16.msra.mxu0 %v3011
    %3787 = vmatprep.mubr.bf16.mxu0 %v1289
    %3788 = vmatmul.mubr.bf16.gmra.mxu0 %v1288
    %v3789 = vpop.f32.mrf.mxu0
    %v3790 = vadd.f32 %v3750, %v3789
    %v3791 = vpop.f32.mrf.mxu0
    %v3792 = vpop.f32.mrf.mxu0
    %v3793 = vpop.f32.mrf.mxu0
    %3794 = vdwg.mxu0
    %3795 = vmatprep.subr.bf16.mxu0 0
    %3796 = vmatpush1.bf16.msra.mxu0 %v3026
    %3797 = vmatprep.subr.bf16.mxu0 0
    %3798 = vmatpush1.bf16.msra.mxu0 %v3025
    %3799 = vmatprep.subr.bf16.mxu0 0
    %3800 = vmatpush1.bf16.msra.mxu0 %v3024
    %3801 = vmatprep.subr.bf16.mxu0 0
    %3802 = vmatpush1.bf16.msra.mxu0 %v3023
    %3803 = vmatprep.subr.bf16.mxu0 0
    %3804 = vmatpush1.bf16.msra.mxu0 %v3022
    %3805 = vmatprep.subr.bf16.mxu0 0
    %3806 = vmatpush1.bf16.msra.mxu0 %v3021
    %3807 = vmatprep.subr.bf16.mxu0 0
    %3808 = vmatpush1.bf16.msra.mxu0 %v3020
    %3809 = vmatprep.subr.bf16.mxu0 0
    %3810 = vmatpush1.bf16.msra.mxu0 %v3019
    %3811 = vmatprep.subr.bf16.mxu0 0
    %3812 = vmatpush2.bf16.msra.mxu0 %v3034
    %3813 = vmatprep.subr.bf16.mxu0 0
    %3814 = vmatpush2.bf16.msra.mxu0 %v3033
    %3815 = vmatprep.subr.bf16.mxu0 0
    %3816 = vmatpush2.bf16.msra.mxu0 %v3032
    %3817 = vmatprep.subr.bf16.mxu0 0
    %3818 = vmatpush2.bf16.msra.mxu0 %v3031
    %3819 = vmatprep.subr.bf16.mxu0 0
    %3820 = vmatpush2.bf16.msra.mxu0 %v3030
    %3821 = vmatprep.subr.bf16.mxu0 0
    %3822 = vmatpush2.bf16.msra.mxu0 %v3029
    %3823 = vmatprep.subr.bf16.mxu0 0
    %3824 = vmatpush2.bf16.msra.mxu0 %v3028
    %3825 = vmatprep.subr.bf16.mxu0 0
    %3826 = vmatpush2.bf16.msra.mxu0 %v3027
    %3827 = vmatprep.mubr.bf16.mxu0 %v1291
    %3828 = vmatmul.mubr.bf16.gmra.mxu0 %v1290
    %v3829 = vpop.f32.mrf.mxu0
    %v3830 = vadd.f32 %v3790, %v3829
    %v3831 = vpop.f32.mrf.mxu0
    %v3832 = vpop.f32.mrf.mxu0
    %v3833 = vpop.f32.mrf.mxu0
    %3834 = vdwg.mxu0
    %3835 = vmatprep.subr.bf16.mxu0 0
    %3836 = vmatpush1.bf16.msra.mxu0 %v3042
    %3837 = vmatprep.subr.bf16.mxu0 0
    %3838 = vmatpush1.bf16.msra.mxu0 %v3041
    %3839 = vmatprep.subr.bf16.mxu0 0
    %3840 = vmatpush1.bf16.msra.mxu0 %v3040
    %3841 = vmatprep.subr.bf16.mxu0 0
    %3842 = vmatpush1.bf16.msra.mxu0 %v3039
    %3843 = vmatprep.subr.bf16.mxu0 0
    %3844 = vmatpush1.bf16.msra.mxu0 %v3038
    %3845 = vmatprep.subr.bf16.mxu0 0
    %3846 = vmatpush1.bf16.msra.mxu0 %v3037
    %3847 = vmatprep.subr.bf16.mxu0 0
    %3848 = vmatpush1.bf16.msra.mxu0 %v3036
    %3849 = vmatprep.subr.bf16.mxu0 0
    %3850 = vmatpush1.bf16.msra.mxu0 %v3035
    %3851 = vmatprep.subr.bf16.mxu0 0
    %3852 = vmatpush2.bf16.msra.mxu0 %v3050
    %3853 = vmatprep.subr.bf16.mxu0 0
    %3854 = vmatpush2.bf16.msra.mxu0 %v3049
    %3855 = vmatprep.subr.bf16.mxu0 0
    %3856 = vmatpush2.bf16.msra.mxu0 %v3048
    %3857 = vmatprep.subr.bf16.mxu0 0
    %3858 = vmatpush2.bf16.msra.mxu0 %v3047
    %3859 = vmatprep.subr.bf16.mxu0 0
    %3860 = vmatpush2.bf16.msra.mxu0 %v3046
    %3861 = vmatprep.subr.bf16.mxu0 0
    %3862 = vmatpush2.bf16.msra.mxu0 %v3045
    %3863 = vmatprep.subr.bf16.mxu0 0
    %3864 = vmatpush2.bf16.msra.mxu0 %v3044
    %3865 = vmatprep.subr.bf16.mxu0 0
    %3866 = vmatpush2.bf16.msra.mxu0 %v3043
    %3867 = vmatprep.mubr.bf16.mxu0 %v1293
    %3868 = vmatmul.mubr.bf16.gmra.mxu0 %v1292
    %v3869 = vpop.f32.mrf.mxu0
    %v3870 = vadd.f32 %v3830, %v3869
    %v3871 = vpop.f32.mrf.mxu0
    %v3872 = vpop.f32.mrf.mxu0
    %v3873 = vpop.f32.mrf.mxu0
    %3874 = vdwg.mxu0
    %3875 = vmatprep.subr.bf16.mxu0 0
    %3876 = vmatpush1.bf16.msra.mxu0 %v3058
    %3877 = vmatprep.subr.bf16.mxu0 0
    %3878 = vmatpush1.bf16.msra.mxu0 %v3057
    %3879 = vmatprep.subr.bf16.mxu0 0
    %3880 = vmatpush1.bf16.msra.mxu0 %v3056
    %3881 = vmatprep.subr.bf16.mxu0 0
    %3882 = vmatpush1.bf16.msra.mxu0 %v3055
    %3883 = vmatprep.subr.bf16.mxu0 0
    %3884 = vmatpush1.bf16.msra.mxu0 %v3054
    %3885 = vmatprep.subr.bf16.mxu0 0
    %3886 = vmatpush1.bf16.msra.mxu0 %v3053
    %3887 = vmatprep.subr.bf16.mxu0 0
    %3888 = vmatpush1.bf16.msra.mxu0 %v3052
    %3889 = vmatprep.subr.bf16.mxu0 0
    %3890 = vmatpush1.bf16.msra.mxu0 %v3051
    %3891 = vmatprep.subr.bf16.mxu0 0
    %3892 = vmatpush2.bf16.msra.mxu0 %v3066
    %3893 = vmatprep.subr.bf16.mxu0 0
    %3894 = vmatpush2.bf16.msra.mxu0 %v3065
    %3895 = vmatprep.subr.bf16.mxu0 0
    %3896 = vmatpush2.bf16.msra.mxu0 %v3064
    %3897 = vmatprep.subr.bf16.mxu0 0
    %3898 = vmatpush2.bf16.msra.mxu0 %v3063
    %3899 = vmatprep.subr.bf16.mxu0 0
    %3900 = vmatpush2.bf16.msra.mxu0 %v3062
    %3901 = vmatprep.subr.bf16.mxu0 0
    %3902 = vmatpush2.bf16.msra.mxu0 %v3061
    %3903 = vmatprep.subr.bf16.mxu0 0
    %3904 = vmatpush2.bf16.msra.mxu0 %v3060
    %3905 = vmatprep.subr.bf16.mxu0 0
    %3906 = vmatpush2.bf16.msra.mxu0 %v3059
    %3907 = vmatprep.mubr.bf16.mxu0 %v1295
    %3908 = vmatmul.mubr.bf16.gmra.mxu0 %v1294
    %v3909 = vpop.f32.mrf.mxu0
    %v3910 = vadd.f32 %v3870, %v3909
    %v3911 = vpop.f32.mrf.mxu0
    %v3912 = vpop.f32.mrf.mxu0
    %v3913 = vpop.f32.mrf.mxu0
    %3914 = vdwg.mxu0
    %3915 = vmatprep.subr.bf16.mxu0 0
    %3916 = vmatpush1.bf16.msra.mxu0 %v3074
    %3917 = vmatprep.subr.bf16.mxu0 0
    %3918 = vmatpush1.bf16.msra.mxu0 %v3073
    %3919 = vmatprep.subr.bf16.mxu0 0
    %3920 = vmatpush1.bf16.msra.mxu0 %v3072
    %3921 = vmatprep.subr.bf16.mxu0 0
    %3922 = vmatpush1.bf16.msra.mxu0 %v3071
    %3923 = vmatprep.subr.bf16.mxu0 0
    %3924 = vmatpush1.bf16.msra.mxu0 %v3070
    %3925 = vmatprep.subr.bf16.mxu0 0
    %3926 = vmatpush1.bf16.msra.mxu0 %v3069
    %3927 = vmatprep.subr.bf16.mxu0 0
    %3928 = vmatpush1.bf16.msra.mxu0 %v3068
    %3929 = vmatprep.subr.bf16.mxu0 0
    %3930 = vmatpush1.bf16.msra.mxu0 %v3067
    %3931 = vmatprep.subr.bf16.mxu0 0
    %3932 = vmatpush2.bf16.msra.mxu0 %v3082
    %3933 = vmatprep.subr.bf16.mxu0 0
    %3934 = vmatpush2.bf16.msra.mxu0 %v3081
    %3935 = vmatprep.subr.bf16.mxu0 0
    %3936 = vmatpush2.bf16.msra.mxu0 %v3080
    %3937 = vmatprep.subr.bf16.mxu0 0
    %3938 = vmatpush2.bf16.msra.mxu0 %v3079
    %3939 = vmatprep.subr.bf16.mxu0 0
    %3940 = vmatpush2.bf16.msra.mxu0 %v3078
    %3941 = vmatprep.subr.bf16.mxu0 0
    %3942 = vmatpush2.bf16.msra.mxu0 %v3077
    %3943 = vmatprep.subr.bf16.mxu0 0
    %3944 = vmatpush2.bf16.msra.mxu0 %v3076
    %3945 = vmatprep.subr.bf16.mxu0 0
    %3946 = vmatpush2.bf16.msra.mxu0 %v3075
    %3947 = vmatprep.mubr.bf16.mxu0 %v1297
    %3948 = vmatmul.mubr.bf16.gmra.mxu0 %v1296
    %v3949 = vpop.f32.mrf.mxu0
    %v3950 = vadd.f32 %v3910, %v3949
    %v3951 = vpop.f32.mrf.mxu0
    %v3952 = vpop.f32.mrf.mxu0
    %v3953 = vpop.f32.mrf.mxu0
    %3954 = vdwg.mxu0
    %3955 = vmatprep.subr.bf16.mxu0 0
    %3956 = vmatpush1.bf16.msra.mxu0 %v3090
    %3957 = vmatprep.subr.bf16.mxu0 0
    %3958 = vmatpush1.bf16.msra.mxu0 %v3089
    %3959 = vmatprep.subr.bf16.mxu0 0
    %3960 = vmatpush1.bf16.msra.mxu0 %v3088
    %3961 = vmatprep.subr.bf16.mxu0 0
    %3962 = vmatpush1.bf16.msra.mxu0 %v3087
    %3963 = vmatprep.subr.bf16.mxu0 0
    %3964 = vmatpush1.bf16.msra.mxu0 %v3086
    %3965 = vmatprep.subr.bf16.mxu0 0
    %3966 = vmatpush1.bf16.msra.mxu0 %v3085
    %3967 = vmatprep.subr.bf16.mxu0 0
    %3968 = vmatpush1.bf16.msra.mxu0 %v3084
    %3969 = vmatprep.subr.bf16.mxu0 0
    %3970 = vmatpush1.bf16.msra.mxu0 %v3083
    %3971 = vmatprep.subr.bf16.mxu0 0
    %3972 = vmatpush2.bf16.msra.mxu0 %v3098
    %3973 = vmatprep.subr.bf16.mxu0 0
    %3974 = vmatpush2.bf16.msra.mxu0 %v3097
    %3975 = vmatprep.subr.bf16.mxu0 0
    %3976 = vmatpush2.bf16.msra.mxu0 %v3096
    %3977 = vmatprep.subr.bf16.mxu0 0
    %3978 = vmatpush2.bf16.msra.mxu0 %v3095
    %3979 = vmatprep.subr.bf16.mxu0 0
    %3980 = vmatpush2.bf16.msra.mxu0 %v3094
    %3981 = vmatprep.subr.bf16.mxu0 0
    %3982 = vmatpush2.bf16.msra.mxu0 %v3093
    %3983 = vmatprep.subr.bf16.mxu0 0
    %3984 = vmatpush2.bf16.msra.mxu0 %v3092
    %3985 = vmatprep.subr.bf16.mxu0 0
    %3986 = vmatpush2.bf16.msra.mxu0 %v3091
    %3987 = vmatprep.mubr.bf16.mxu0 %v1299
    %3988 = vmatmul.mubr.bf16.gmra.mxu0 %v1298
    %v3989 = vpop.f32.mrf.mxu0
    %v3990 = vadd.f32 %v3950, %v3989
    %v3991 = vpop.f32.mrf.mxu0
    %v3992 = vpop.f32.mrf.mxu0
    %v3993 = vpop.f32.mrf.mxu0
    %3994 = vdwg.mxu0
    %v3995 = vxor.u32 %v3990, 2147483648
    %v3996 = vmul.f32 %v3995, 1.442695
    %v3997 = vpow.pop %v3996
    %v3998 = vadd.f32 %v3997, 1.0
    %v3999 = vrcp.pop %v3998
    %v4000 = vmul.f32 1.0, %v3999
    %vm4001 = vcmask 130048
    %4002 = vst.msk [vmem:[#allocation2] sm:$0xff] %vm4001, %v4000
    // Predicated region
    $region22: #{mlp_forward.1} parent=1 // pred_check
      _
    $region23: #{mlp_forward.1} parent=1 // pred_check_branch
      %4004 = sbr.rel (0) target = $region25
    $region24: #{mlp_forward.1} parent=1 // pred_region
      %s4006 = ssub.s32 128, 128
      %4007 = vsyncadd [#allocation3], %s4006
      %s4009 = sshll.u32 [#allocation2], 4
      %s4010 = int_to_ptr.vmem [resolvable:$true] %s4009
      %4012 = dma.vmem_to_hbm [thread:$0]  %s4010, 128, %s5, [#allocation3]
    $region25: #{mlp_forward.1} parent=1 // pred_fallthru
      _
    // Predicated region
    $region26: #{mlp_forward.1} parent=1 // pred_check
      _
    $region27: #{mlp_forward.1} parent=1 // pred_check_branch
      %4014 = sbr.rel (0) target = $region29
    $region28: #{mlp_forward.1} parent=1 // pred_region
      %4015 = dma.done [#allocation3], 128
    $region29: #{mlp_forward.1} parent=1 // pred_fallthru
      _
    %4016 = vsyncpa [#allocation3], 1

</llo_original>
